<compile_context>
chip_gen: v5e
topology: v5e:2x2
jax: 0.10.0
libtpu: 0.0.40
codegen_flags: <defaults>
</compile_context>

<pallas_src>
import functools

import numpy as np
import jax
import jax.numpy as jnp
from jax.experimental import pallas as pl
from jax.experimental.pallas import tpu as pltpu

# ----------------------------- module config --------------------------------
NC = 80                        # number of classes (Detect default)
NO = NC + 5                    # outputs per anchor
NA = 3                         # anchors per level
NL = 3                         # number of levels
N = NA * NO                    # 255 real output columns
NP = 256                       # lane-dense padded column count
TM_MAX = 256                   # rows per grid step (fits v5e 16MiB..v7x 64MiB VMEM)

ANCHORS = np.array(
    [[10, 13, 16, 30, 33, 23],
     [30, 61, 62, 45, 59, 119],
     [116, 90, 156, 198, 373, 326]], dtype=np.float32).reshape(NL, NA, 2)
STRIDES = np.array([8.0, 16.0, 32.0], dtype=np.float32)
WIDTH_MULTIPLE = 1.25          # size == 'x'
CH = (np.array([256, 512, 1024]) * WIDTH_MULTIPLE).astype(int)  # [320, 640, 1280]


def _round_up(x, m):
    return (x + m - 1) // m * m


# ------------------------------- kernel -------------------------------------
def detect_level_kernel(stride, nx, spatial,
                        x_ref, w_ref, b_ref, amul_ref, mxy_ref, mwh_ref,
                        gxsel_ref, gysel_ref, p_ref, y_ref):
    """Fused 1x1-conv (bf16 matmul, f32 acc) + bias + sigmoid + YOLO decode.

    x_ref:     (TM, Cin)  bf16 flattened NHWC feature rows (streamed tile)
    w_ref:     (Cin, 256) bf16 conv weight, columns a*no + c (VMEM resident)
    b_ref:     (1, 256)   f32 bias
    amul_ref:  (1, 256)   anchor*stride on wh columns, 1 elsewhere
    mxy_ref:   (1, 256)   1.0 on columns c in {0,1}
    mwh_ref:   (1, 256)   1.0 on columns c in {2,3}
    gxsel_ref: (1, 256)   1.0 on column c == 0 (x grid coordinate)
    gysel_ref: (1, 256)   1.0 on column c == 1 (y grid coordinate)
    p_ref:     (TM, 256)  raw conv output (pre-sigmoid) -> PyTorch `x` return
    y_ref:     (TM, 256)  decoded predictions           -> the `z` return
    """
    tm = x_ref.shape[0]

    p = jnp.dot(x_ref[...], w_ref[...],
                preferred_element_type=jnp.float32) + b_ref[...]
    p_ref[...] = p

    # sigmoid via EUP exp + approx reciprocal (keeps the f32 divide off VALU)
    s = pl.reciprocal(1.0 + jnp.exp(-p), approx=True)

    # Synthesize grid-cell coords from the row index (rows ordered (b, y, x)).
    # Float floor/divide is exact for these small integer ranges.
    row = (jax.lax.broadcasted_iota(jnp.int32, (tm, 1), 0).astype(jnp.float32)
           + (pl.program_id(0) * tm).astype(jnp.float32))
    sp = row - jnp.floor(row / float(spatial)) * float(spatial)   # row % (ny*nx)
    gy = jnp.floor(sp / float(nx))
    gx = sp - gy * float(nx)
    grid_add = gx * gxsel_ref[...] + gy * gysel_ref[...]          # (TM, 256)

    s2 = s * 2.0
    xy = (s2 - 0.5 + grid_add) * stride                            # cols 0:2
    wh = s2 * s2 * amul_ref[...]                                   # cols 2:4
    y_ref[...] = s + mxy_ref[...] * (xy - s) + mwh_ref[...] * (wh - s)


def detect_level(x_flat, w, b, amul, mxy, mwh, gxsel, gysel,
                 stride, nx, spatial, tm):
    mp, cin = x_flat.shape
    kernel = functools.partial(detect_level_kernel,
                               float(stride), int(nx), int(spatial))
    col_spec = pl.BlockSpec((1, NP), lambda i: (0, 0))
    p, y = pl.pallas_call(
        kernel,
        grid=(mp // tm,),
        in_specs=[
            pl.BlockSpec((tm, cin), lambda i: (i, 0)),   # streamed feature rows
            pl.BlockSpec((cin, NP), lambda i: (0, 0)),   # weight: VMEM resident
            col_spec, col_spec, col_spec, col_spec, col_spec, col_spec,
        ],
        out_specs=(
            pl.BlockSpec((tm, NP), lambda i: (i, 0)),
            pl.BlockSpec((tm, NP), lambda i: (i, 0)),
        ),
        out_shape=(
            jax.ShapeDtypeStruct((mp, NP), jnp.float32),
            jax.ShapeDtypeStruct((mp, NP), jnp.float32),
        ),
        compiler_params=pltpu.CompilerParams(
            dimension_semantics=("parallel",)),   # megacore-shardable on v7x
    )(x_flat, w, b, amul, mxy, mwh, gxsel, gysel)
    return p, y


# ----------------------------- glue / wrapper --------------------------------
def _level_constants(level):
    """(1, 256) column-wise constants: anchor scale, masks, grid selectors."""
    col = np.arange(NP)
    valid = col < N
    col_c = np.where(valid, col % NO, NO)   # pad column -> dead channel id
    col_a = np.where(valid, col // NO, 0)

    scaled = ANCHORS[level] * STRIDES[level]          # (na, 2)
    sc = scaled[col_a]                                # (NP, 2)
    amul = np.where(col_c == 2, sc[:, 0],
                    np.where(col_c == 3, sc[:, 1], 1.0))
    mxy = (col_c < 2).astype(np.float32)
    mwh = ((col_c >= 2) & (col_c < 4)).astype(np.float32)
    gxsel = (col_c == 0).astype(np.float32)
    gysel = (col_c == 1).astype(np.float32)
    return tuple(jnp.asarray(a.reshape(1, NP).astype(np.float32))
                 for a in (amul, mxy, mwh, gxsel, gysel))


def detect_forward(feats, weights, biases):
    """Inference-mode Detect.forward: returns (cat(z, 1), [x0, x1, x2])."""
    zs, xs = [], []
    for i in range(NL):
        x = feats[i]
        bs, cin, ny, nx = x.shape
        M = bs * ny * nx
        tm = min(TM_MAX, _round_up(M, 8))
        mp = _round_up(M, tm)

        # NCHW -> (M, Cin) rows; bf16 halves the dominant HBM read.
        # (If the producer emitted NHWC directly this transpose disappears.)
        x_flat = jnp.transpose(x, (0, 2, 3, 1)).reshape(M, cin).astype(jnp.bfloat16)
        if mp != M:
            x_flat = jnp.pad(x_flat, ((0, mp - M), (0, 0)))

        # Pad the output-column dim 255 -> 256 (lane-dense); slice off below.
        w = jnp.pad(weights[i], ((0, 0), (0, NP - N))).astype(jnp.bfloat16)
        b = jnp.pad(biases[i], (0, NP - N)).reshape(1, NP).astype(jnp.float32)
        amul, mxy, mwh, gxsel, gysel = _level_constants(i)

        p, y = detect_level(x_flat, w, b, amul, mxy, mwh, gxsel, gysel,
                            STRIDES[i], nx, ny * nx, tm)
        p = p[:M, :N]
        y = y[:M, :N]

        # (M, N) -> (bs, na, ny, nx, no), matching PyTorch view+permute.
        x_out = p.reshape(bs, ny, nx, NA, NO).transpose(0, 3, 1, 2, 4)
        z_i = (y.reshape(bs, ny, nx, NA, NO)
                .transpose(0, 3, 1, 2, 4)
                .reshape(bs, -1, NO))
        xs.append(x_out)
        zs.append(z_i)
    return jnp.concatenate(zs, axis=1), xs


# ------------------------------ JAX reference --------------------------------
def ref_forward(feats, weights, biases):
    zs, xs = [], []
    for i in range(NL):
        x = feats[i]
        bs, cin, ny, nx = x.shape
        p = jnp.einsum("bchw,cn->bnhw", x, weights[i]) + biases[i][None, :, None, None]
        xr = p.reshape(bs, NA, NO, ny, nx).transpose(0, 1, 3, 4, 2)
        y = jax.nn.sigmoid(xr)
        gy, gx = jnp.meshgrid(jnp.arange(ny), jnp.arange(nx), indexing="ij")
        grid = jnp.stack([gx, gy], -1).astype(jnp.float32)[None, None]
        ag = (jnp.asarray(ANCHORS[i]) * STRIDES[i]).reshape(1, NA, 1, 1, 2)
        xy = (y[..., 0:2] * 2 - 0.5 + grid) * STRIDES[i]
        wh = (y[..., 2:4] * 2) ** 2 * ag
        y = jnp.concatenate([xy, wh, y[..., 4:]], axis=-1)
        zs.append(y.reshape(bs, -1, NO))
        xs.append(xr)
    return jnp.concatenate(zs, axis=1), xs


# --------------------------------- main ---------------------------------------
if __name__ == "__main__":
    key = jax.random.PRNGKey(0)
    bs = 2
    # small image (128x128) -> feature sizes 16, 8, 4 for strides 8, 16, 32
    spatials = [(16, 16), (8, 8), (4, 4)]

    feats, weights, biases = [], [], []
    for i in range(NL):
        key, kx, kw, kb = jax.random.split(key, 4)
        ny, nx = spatials[i]
        cin = int(CH[i])
        feats.append(jax.random.normal(kx, (bs, cin, ny, nx), dtype=jnp.float32))
        # deterministic synthetic conv params: weight (Cin, na*no), bias (na*no,)
        weights.append(jax.random.normal(kw, (cin, N), dtype=jnp.float32)
                       / jnp.sqrt(jnp.float32(cin)))
        biases.append(0.01 * jax.random.normal(kb, (N,), dtype=jnp.float32))

    z, xs = detect_forward(feats, weights, biases)
    z = jax.block_until_ready(z)
    xs = [jax.block_until_ready(x) for x in xs]

    z_ref, xs_ref = ref_forward(feats, weights, biases)
    assert z.shape == (bs, NA * sum(ny * nx for ny, nx in spatials), NO)
    # Tolerances account for bf16 matmul inputs (f32 accumulation) and the EUP
    # approx-reciprocal sigmoid; wh values scale with anchor*stride (~1e4), so
    # the box check is rtol-dominated there.
    np.testing.assert_allclose(np.asarray(z), np.asarray(z_ref), rtol=5e-2, atol=0.5)
    for a, b in zip(xs, xs_ref):
        np.testing.assert_allclose(np.asarray(a), np.asarray(b), rtol=2e-2, atol=0.1)

    print("KERNEL_OK")
</pallas_src>

<mosaic_0001>
module attributes {stable_mosaic.version = 11 : i64} {
  func.func @detect_level_kernel(%arg0: i32, %arg1: memref<256x320xbf16, #tpu.memory_space<vmem>>, %arg2: memref<320x256xbf16, #tpu.memory_space<vmem>>, %arg3: memref<1x256xf32, #tpu.memory_space<vmem>>, %arg4: memref<1x256xf32, #tpu.memory_space<vmem>>, %arg5: memref<1x256xf32, #tpu.memory_space<vmem>>, %arg6: memref<1x256xf32, #tpu.memory_space<vmem>>, %arg7: memref<1x256xf32, #tpu.memory_space<vmem>>, %arg8: memref<1x256xf32, #tpu.memory_space<vmem>>, %arg9: memref<256x256xf32, #tpu.memory_space<vmem>>, %arg10: memref<256x256xf32, #tpu.memory_space<vmem>>) attributes {dimension_semantics = [#tpu.dimension_semantics<parallel>], iteration_bounds = array<i64: 2>, scalar_prefetch = 0 : i64, scratch_operands = 0 : i64, tpu.core_type = #tpu.core_type<tc>, window_params = [{transform_indices = @transform_0, window_bounds = array<i64: 256, 320>}, {pipeline_mode = #tpu.pipeline_mode<synchronous>, transform_indices = @transform_1, window_bounds = array<i64: 320, 256>}, {pipeline_mode = #tpu.pipeline_mode<synchronous>, transform_indices = @transform_2, window_bounds = array<i64: 1, 256>}, {pipeline_mode = #tpu.pipeline_mode<synchronous>, transform_indices = @transform_3, window_bounds = array<i64: 1, 256>}, {pipeline_mode = #tpu.pipeline_mode<synchronous>, transform_indices = @transform_4, window_bounds = array<i64: 1, 256>}, {pipeline_mode = #tpu.pipeline_mode<synchronous>, transform_indices = @transform_5, window_bounds = array<i64: 1, 256>}, {pipeline_mode = #tpu.pipeline_mode<synchronous>, transform_indices = @transform_6, window_bounds = array<i64: 1, 256>}, {pipeline_mode = #tpu.pipeline_mode<synchronous>, transform_indices = @transform_7, window_bounds = array<i64: 1, 256>}, {transform_indices = @transform_8, window_bounds = array<i64: 256, 256>}, {transform_indices = @transform_9, window_bounds = array<i64: 256, 256>}]} {
    %c0 = arith.constant 0 : index
    %c0_0 = arith.constant 0 : index
    %0 = vector.load %arg1[%c0, %c0_0] : memref<256x320xbf16, #tpu.memory_space<vmem>>, vector<256x320xbf16>
    %c0_1 = arith.constant 0 : index
    %c0_2 = arith.constant 0 : index
    %1 = vector.load %arg2[%c0_1, %c0_2] : memref<320x256xbf16, #tpu.memory_space<vmem>>, vector<320x256xbf16>
    %cst = arith.constant dense<0.000000e+00> : vector<256x256xf32>
    %2 = tpu.matmul %0, %1, %cst {dimension_numbers = #tpu.dot_dimension_numbers<[1], [0], [0], [1], [0, 0, 1, 1], [], []>} : vector<256x320xbf16>, vector<320x256xbf16>, vector<256x256xf32> -> vector<256x256xf32>
    %c0_3 = arith.constant 0 : index
    %c0_4 = arith.constant 0 : index
    %3 = vector.load %arg3[%c0_3, %c0_4] : memref<1x256xf32, #tpu.memory_space<vmem>>, vector<1x256xf32>
    %4 = vector.broadcast %3 : vector<1x256xf32> to vector<256x256xf32>
    %5 = arith.addf %2, %4 : vector<256x256xf32>
    %c0_5 = arith.constant 0 : index
    %c0_6 = arith.constant 0 : index
    %6 = vector.load %arg9[%c0_5, %c0_6] : memref<256x256xf32, #tpu.memory_space<vmem>>, vector<256x256xf32>
    tpu.vector_store %arg9[%c0_5, %c0_6], %5 {strides = array<i32>} : memref<256x256xf32, #tpu.memory_space<vmem>>, vector<256x256xf32>,
    %cst_7 = arith.constant 0.000000e+00 : f32
    %7 = vector.broadcast %cst_7 : f32 to vector<256x256xf32>
    %8 = arith.subf %7, %5 : vector<256x256xf32>
    %9 = math.exp %8 : vector<256x256xf32>
    %cst_8 = arith.constant 1.000000e+00 : f32
    %10 = vector.broadcast %cst_8 : f32 to vector<256x256xf32>
    %11 = arith.addf %10, %9 : vector<256x256xf32>
    %12 = tpu.reciprocal %11 {approx = true} : vector<256x256xf32> -> vector<256x256xf32>
    %13 = tpu.iota {dimensions = array<i32: 0>} : vector<256x1xi32>
    %14 = arith.sitofp %13 : vector<256x1xi32> to vector<256x1xf32>
    %c256_i32 = arith.constant 256 : i32
    %15 = arith.muli %arg0, %c256_i32 : i32
    %16 = arith.sitofp %15 : i32 to f32
    %17 = vector.broadcast %16 : f32 to vector<256x1xf32>
    %18 = arith.addf %14, %17 : vector<256x1xf32>
    %cst_9 = arith.constant 2.560000e+02 : f32
    %19 = vector.broadcast %cst_9 : f32 to vector<256x1xf32>
    %20 = arith.divf %18, %19 : vector<256x1xf32>
    %21 = math.floor %20 : vector<256x1xf32>
    %cst_10 = arith.constant 2.560000e+02 : f32
    %22 = vector.broadcast %cst_10 : f32 to vector<256x1xf32>
    %23 = arith.mulf %21, %22 : vector<256x1xf32>
    %24 = arith.subf %18, %23 : vector<256x1xf32>
    %cst_11 = arith.constant 1.600000e+01 : f32
    %25 = vector.broadcast %cst_11 : f32 to vector<256x1xf32>
    %26 = arith.divf %24, %25 : vector<256x1xf32>
    %27 = math.floor %26 : vector<256x1xf32>
    %cst_12 = arith.constant 1.600000e+01 : f32
    %28 = vector.broadcast %cst_12 : f32 to vector<256x1xf32>
    %29 = arith.mulf %27, %28 : vector<256x1xf32>
    %30 = arith.subf %24, %29 : vector<256x1xf32>
    %c0_13 = arith.constant 0 : index
    %c0_14 = arith.constant 0 : index
    %31 = vector.load %arg7[%c0_13, %c0_14] : memref<1x256xf32, #tpu.memory_space<vmem>>, vector<1x256xf32>
    %32 = vector.broadcast %30 : vector<256x1xf32> to vector<256x256xf32>
    %33 = vector.broadcast %31 : vector<1x256xf32> to vector<256x256xf32>
    %34 = arith.mulf %32, %33 : vector<256x256xf32>
    %c0_15 = arith.constant 0 : index
    %c0_16 = arith.constant 0 : index
    %35 = vector.load %arg8[%c0_15, %c0_16] : memref<1x256xf32, #tpu.memory_space<vmem>>, vector<1x256xf32>
    %36 = vector.broadcast %27 : vector<256x1xf32> to vector<256x256xf32>
    %37 = vector.broadcast %35 : vector<1x256xf32> to vector<256x256xf32>
    %38 = arith.mulf %36, %37 : vector<256x256xf32>
    %39 = arith.addf %34, %38 : vector<256x256xf32>
    %cst_17 = arith.constant 2.000000e+00 : f32
    %40 = vector.broadcast %cst_17 : f32 to vector<256x256xf32>
    %41 = arith.mulf %12, %40 : vector<256x256xf32>
    %cst_18 = arith.constant 5.000000e-01 : f32
    %42 = vector.broadcast %cst_18 : f32 to vector<256x256xf32>
    %43 = arith.subf %41, %42 : vector<256x256xf32>
    %44 = arith.addf %43, %39 : vector<256x256xf32>
    %cst_19 = arith.constant 8.000000e+00 : f32
    %45 = vector.broadcast %cst_19 : f32 to vector<256x256xf32>
    %46 = arith.mulf %44, %45 : vector<256x256xf32>
    %47 = arith.mulf %41, %41 : vector<256x256xf32>
    %c0_20 = arith.constant 0 : index
    %c0_21 = arith.constant 0 : index
    %48 = vector.load %arg4[%c0_20, %c0_21] : memref<1x256xf32, #tpu.memory_space<vmem>>, vector<1x256xf32>
    %49 = vector.broadcast %48 : vector<1x256xf32> to vector<256x256xf32>
    %50 = arith.mulf %47, %49 : vector<256x256xf32>
    %c0_22 = arith.constant 0 : index
    %c0_23 = arith.constant 0 : index
    %51 = vector.load %arg5[%c0_22, %c0_23] : memref<1x256xf32, #tpu.memory_space<vmem>>, vector<1x256xf32>
    %52 = arith.subf %46, %12 : vector<256x256xf32>
    %53 = vector.broadcast %51 : vector<1x256xf32> to vector<256x256xf32>
    %54 = arith.mulf %53, %52 : vector<256x256xf32>
    %55 = arith.addf %12, %54 : vector<256x256xf32>
    %c0_24 = arith.constant 0 : index
    %c0_25 = arith.constant 0 : index
    %56 = vector.load %arg6[%c0_24, %c0_25] : memref<1x256xf32, #tpu.memory_space<vmem>>, vector<1x256xf32>
    %57 = arith.subf %50, %12 : vector<256x256xf32>
    %58 = vector.broadcast %56 : vector<1x256xf32> to vector<256x256xf32>
    %59 = arith.mulf %58, %57 : vector<256x256xf32>
    %60 = arith.addf %55, %59 : vector<256x256xf32>
    %c0_26 = arith.constant 0 : index
    %c0_27 = arith.constant 0 : index
    %61 = vector.load %arg10[%c0_26, %c0_27] : memref<256x256xf32, #tpu.memory_space<vmem>>, vector<256x256xf32>
    tpu.vector_store %arg10[%c0_26, %c0_27], %60 {strides = array<i32>} : memref<256x256xf32, #tpu.memory_space<vmem>>, vector<256x256xf32>,
    return
  }
  func.func @transform_0(%arg0: i32) -> (i32, i32) {
    %c0_i32 = arith.constant 0 : i32
    %c0_i32_0 = arith.constant 0 : i32
    return %arg0, %c0_i32 : i32, i32
  }
  func.func @transform_1(%arg0: i32) -> (i32, i32) {
    %c0_i32 = arith.constant 0 : i32
    %c0_i32_0 = arith.constant 0 : i32
    %c0_i32_1 = arith.constant 0 : i32
    return %c0_i32, %c0_i32_0 : i32, i32
  }
  func.func @transform_2(%arg0: i32) -> (i32, i32) {
    %c0_i32 = arith.constant 0 : i32
    %c0_i32_0 = arith.constant 0 : i32
    %c0_i32_1 = arith.constant 0 : i32
    return %c0_i32, %c0_i32_0 : i32, i32
  }
  func.func @transform_3(%arg0: i32) -> (i32, i32) {
    %c0_i32 = arith.constant 0 : i32
    %c0_i32_0 = arith.constant 0 : i32
    %c0_i32_1 = arith.constant 0 : i32
    return %c0_i32, %c0_i32_0 : i32, i32
  }
  func.func @transform_4(%arg0: i32) -> (i32, i32) {
    %c0_i32 = arith.constant 0 : i32
    %c0_i32_0 = arith.constant 0 : i32
    %c0_i32_1 = arith.constant 0 : i32
    return %c0_i32, %c0_i32_0 : i32, i32
  }
  func.func @transform_5(%arg0: i32) -> (i32, i32) {
    %c0_i32 = arith.constant 0 : i32
    %c0_i32_0 = arith.constant 0 : i32
    %c0_i32_1 = arith.constant 0 : i32
    return %c0_i32, %c0_i32_0 : i32, i32
  }
  func.func @transform_6(%arg0: i32) -> (i32, i32) {
    %c0_i32 = arith.constant 0 : i32
    %c0_i32_0 = arith.constant 0 : i32
    %c0_i32_1 = arith.constant 0 : i32
    return %c0_i32, %c0_i32_0 : i32, i32
  }
  func.func @transform_7(%arg0: i32) -> (i32, i32) {
    %c0_i32 = arith.constant 0 : i32
    %c0_i32_0 = arith.constant 0 : i32
    %c0_i32_1 = arith.constant 0 : i32
    return %c0_i32, %c0_i32_0 : i32, i32
  }
  func.func @transform_8(%arg0: i32) -> (i32, i32) {
    %c0_i32 = arith.constant 0 : i32
    %c0_i32_0 = arith.constant 0 : i32
    return %arg0, %c0_i32 : i32, i32
  }
  func.func @transform_9(%arg0: i32) -> (i32, i32) {
    %c0_i32 = arith.constant 0 : i32
    %c0_i32_0 = arith.constant 0 : i32
    return %arg0, %c0_i32 : i32, i32
  }
}

</mosaic_0001>

<llo_original>
// kernel: tpu_custom_call.1
$region0: #{tpu_custom_call.1}
  #allocation0 [shape = 'u32[]', space=smem, size = 0x4, offset = 0x4, fixed_abs, tag = 'smem constant byte address 0x4 - core index']
  #allocation1 [shape = 'u32[72,128]{1,0:T(1,128)}', space=vmem, size = 0x9000, scoped, tag = 'internal scratch']
  %s0 = inlined_call_operand.vmem [shape: bf16[512,320], index: 0, kind: input, shape index: {}]
  %s1 = inlined_call_operand.vmem [shape: bf16[320,256], index: 1, kind: input, shape index: {}]
  %s2 = inlined_call_operand.vmem [shape: f32[1,256], index: 2, kind: input, shape index: {}]
  %s3 = inlined_call_operand.vmem [shape: f32[1,256], index: 3, kind: input, shape index: {}]
  %s4 = inlined_call_operand.vmem [shape: f32[1,256], index: 4, kind: input, shape index: {}]
  %s5 = inlined_call_operand.vmem [shape: f32[1,256], index: 5, kind: input, shape index: {}]
  %s6 = inlined_call_operand.vmem [shape: f32[1,256], index: 6, kind: input, shape index: {}]
  %s7 = inlined_call_operand.vmem [shape: f32[1,256], index: 7, kind: input, shape index: {}]
  %s8 = inlined_call_operand.hbm [shape: f32[512,256], index: 8, kind: output, shape index: {0}]
  %s9 = inlined_call_operand.hbm [shape: f32[512,256], index: 9, kind: output, shape index: {1}]
  %10 = xla_tuple %s8, %s9
  %s11 = sld [smem:[#allocation0]]
  $region73: #{tpu_custom_call.1} parent=0
    _
  %s13 = ssub.s32 1, %s11
  %s14 = scalar_select 0, %s13, %s11
  $region1: #{tpu_custom_call.1} parent=0
    #allocation2 [shape = 'u8[524288]{0}', space=vmem, size = 0x80000, scoped, tag = 'output window, operand 0']
    #allocation3 [shape = 's32[2]{0}', space=sflag, size = 0x8, scoped, tag = 'scoped memory for tpu_custom_call.1']
    #allocation4 [shape = 'u8[524288]{0}', space=vmem, size = 0x80000, scoped, tag = 'output window, operand 1']
    #allocation5 [shape = 's32[2]{0}', space=sflag, size = 0x8, scoped, tag = 'scoped memory for tpu_custom_call.1']
    %15 = vsyncpa [#allocation3], 0
    %s16 = scalar_lea.sflag [#allocation3], 1
    %17 = vsyncpa %s16, 0
    %18 = vsyncpa [#allocation5], 0
    %s19 = scalar_lea.sflag [#allocation5], 1
    %20 = vsyncpa %s19, 0
    loop: start=0, step=1, limit=4
    $region2: #{tpu_custom_call.1} parent=1 // loop_pre_header
      _
    $region3: #{tpu_custom_call.1} parent=1 // loop_header
      %s22 = sphi 0, %s26
      %p23 = scmp.ge.s32.totalorder %s22, 4
      %s32 = sphi 0, %s34
      %s35 = sphi 0, %s32
      %s36 = sphi 0, %s35
      %s52 = sphi 0, %s36
      %s56 = sphi 0, %s56
      %s58 = sphi 0, %s56
      %s59 = sphi 0, %s58
      %s73 = sphi 0, %s59
      %s77 = sphi 0, %s77
      %s79 = sphi 0, %s77
      %s80 = sphi 0, %s79
      %s94 = sphi 0, %s80
      %s98 = sphi 0, %s98
      %s100 = sphi 0, %s98
      %s101 = sphi 0, %s100
      %s115 = sphi 0, %s101
      %s119 = sphi 0, %s119
      %s121 = sphi 0, %s119
      %s122 = sphi 0, %s121
      %s136 = sphi 0, %s122
      %s140 = sphi 0, %s140
      %s142 = sphi 0, %s140
      %s143 = sphi 0, %s142
      %s157 = sphi 0, %s143
      %s161 = sphi 0, %s161
      %s163 = sphi 0, %s161
      %s164 = sphi 0, %s163
      %s178 = sphi 0, %s164
      %s182 = sphi 0, %s182
      %s184 = sphi 0, %s182
      %s185 = sphi 0, %s184
      %s199 = sphi 0, %s185
      %s205 = sphi 0, %s207
      %s208 = sphi 0, %s205
      %s209 = sphi 0, %s208
      %s225 = sphi 0, %s209
      %s231 = sphi 0, %s233
      %s234 = sphi 0, %s231
      %s235 = sphi 0, %s234
      %s251 = sphi 0, %s235
    $region4: #{tpu_custom_call.1} parent=1 // loop_header_branch
      %25 = sbr.rel (%p23) target = $region8
    $region5: #{tpu_custom_call.1} parent=1 // loop_body
      %s27 = ssub.s32 %s22, 1
      %s28 = ssub.s32 %s22, 2
      %s29 = sadd.s32 %s22, 1
      %s30 = ssub.s32 %s22, %s29
      %p31 = scmp.eq.s32.totalorder %s30, 0
      %s33 = sadd.s32 %s32, 1
      %s34 = scalar_select %p31, %s32, %s33
      %p37 = pneg %p31
      %p38 = scmp.eq.s32.totalorder %s22, 1
      %p39 = por %p37, %p38
      %p40 = scmp.ne.s32.totalorder %s32, %s35
      %p41 = scmp.eq.s32.totalorder %s22, 0
      %p42 = por %p40, %p41
      %p43 = scmp.ne.s32.totalorder %s32, %s35
      %p44 = scmp.eq.s32.totalorder %s27, 1
      %p45 = por %p43, %p44
      %p46 = scmp.ne.s32.totalorder %s35, %s36
      %p47 = scmp.eq.s32.totalorder %s27, 0
      %p48 = por %p46, %p47
      %p49 = scmp.ne.s32.totalorder %s35, %s36
      %p50 = scmp.eq.s32.totalorder %s28, 1
      %p51 = por %p49, %p50
      %p53 = scmp.ne.s32.totalorder %s36, %s52
      %p54 = scmp.eq.s32.totalorder %s28, 0
      %p55 = por %p53, %p54
      %s57 = sadd.s32 %s56, 1
      %p60 = scmp.eq.s32.totalorder %s22, 1
      %p61 = scmp.ne.s32.totalorder %s56, %s58
      %p62 = scmp.eq.s32.totalorder %s22, 0
      %p63 = por %p61, %p62
      %p64 = scmp.ne.s32.totalorder %s56, %s58
      %p65 = scmp.eq.s32.totalorder %s27, 1
      %p66 = por %p64, %p65
      %p67 = scmp.ne.s32.totalorder %s58, %s59
      %p68 = scmp.eq.s32.totalorder %s27, 0
      %p69 = por %p67, %p68
      %p70 = scmp.ne.s32.totalorder %s58, %s59
      %p71 = scmp.eq.s32.totalorder %s28, 1
      %p72 = por %p70, %p71
      %p74 = scmp.ne.s32.totalorder %s59, %s73
      %p75 = scmp.eq.s32.totalorder %s28, 0
      %p76 = por %p74, %p75
      %s78 = sadd.s32 %s77, 1
      %p81 = scmp.eq.s32.totalorder %s22, 1
      %p82 = scmp.ne.s32.totalorder %s77, %s79
      %p83 = scmp.eq.s32.totalorder %s22, 0
      %p84 = por %p82, %p83
      %p85 = scmp.ne.s32.totalorder %s77, %s79
      %p86 = scmp.eq.s32.totalorder %s27, 1
      %p87 = por %p85, %p86
      %p88 = scmp.ne.s32.totalorder %s79, %s80
      %p89 = scmp.eq.s32.totalorder %s27, 0
      %p90 = por %p88, %p89
      %p91 = scmp.ne.s32.totalorder %s79, %s80
      %p92 = scmp.eq.s32.totalorder %s28, 1
      %p93 = por %p91, %p92
      %p95 = scmp.ne.s32.totalorder %s80, %s94
      %p96 = scmp.eq.s32.totalorder %s28, 0
      %p97 = por %p95, %p96
      %s99 = sadd.s32 %s98, 1
      %p102 = scmp.eq.s32.totalorder %s22, 1
      %p103 = scmp.ne.s32.totalorder %s98, %s100
      %p104 = scmp.eq.s32.totalorder %s22, 0
      %p105 = por %p103, %p104
      %p106 = scmp.ne.s32.totalorder %s98, %s100
      %p107 = scmp.eq.s32.totalorder %s27, 1
      %p108 = por %p106, %p107
      %p109 = scmp.ne.s32.totalorder %s100, %s101
      %p110 = scmp.eq.s32.totalorder %s27, 0
      %p111 = por %p109, %p110
      %p112 = scmp.ne.s32.totalorder %s100, %s101
      %p113 = scmp.eq.s32.totalorder %s28, 1
      %p114 = por %p112, %p113
      %p116 = scmp.ne.s32.totalorder %s101, %s115
      %p117 = scmp.eq.s32.totalorder %s28, 0
      %p118 = por %p116, %p117
      %s120 = sadd.s32 %s119, 1
      %p123 = scmp.eq.s32.totalorder %s22, 1
      %p124 = scmp.ne.s32.totalorder %s119, %s121
      %p125 = scmp.eq.s32.totalorder %s22, 0
      %p126 = por %p124, %p125
      %p127 = scmp.ne.s32.totalorder %s119, %s121
      %p128 = scmp.eq.s32.totalorder %s27, 1
      %p129 = por %p127, %p128
      %p130 = scmp.ne.s32.totalorder %s121, %s122
      %p131 = scmp.eq.s32.totalorder %s27, 0
      %p132 = por %p130, %p131
      %p133 = scmp.ne.s32.totalorder %s121, %s122
      %p134 = scmp.eq.s32.totalorder %s28, 1
      %p135 = por %p133, %p134
      %p137 = scmp.ne.s32.totalorder %s122, %s136
      %p138 = scmp.eq.s32.totalorder %s28, 0
      %p139 = por %p137, %p138
      %s141 = sadd.s32 %s140, 1
      %p144 = scmp.eq.s32.totalorder %s22, 1
      %p145 = scmp.ne.s32.totalorder %s140, %s142
      %p146 = scmp.eq.s32.totalorder %s22, 0
      %p147 = por %p145, %p146
      %p148 = scmp.ne.s32.totalorder %s140, %s142
      %p149 = scmp.eq.s32.totalorder %s27, 1
      %p150 = por %p148, %p149
      %p151 = scmp.ne.s32.totalorder %s142, %s143
      %p152 = scmp.eq.s32.totalorder %s27, 0
      %p153 = por %p151, %p152
      %p154 = scmp.ne.s32.totalorder %s142, %s143
      %p155 = scmp.eq.s32.totalorder %s28, 1
      %p156 = por %p154, %p155
      %p158 = scmp.ne.s32.totalorder %s143, %s157
      %p159 = scmp.eq.s32.totalorder %s28, 0
      %p160 = por %p158, %p159
      %s162 = sadd.s32 %s161, 1
      %p165 = scmp.eq.s32.totalorder %s22, 1
      %p166 = scmp.ne.s32.totalorder %s161, %s163
      %p167 = scmp.eq.s32.totalorder %s22, 0
      %p168 = por %p166, %p167
      %p169 = scmp.ne.s32.totalorder %s161, %s163
      %p170 = scmp.eq.s32.totalorder %s27, 1
      %p171 = por %p169, %p170
      %p172 = scmp.ne.s32.totalorder %s163, %s164
      %p173 = scmp.eq.s32.totalorder %s27, 0
      %p174 = por %p172, %p173
      %p175 = scmp.ne.s32.totalorder %s163, %s164
      %p176 = scmp.eq.s32.totalorder %s28, 1
      %p177 = por %p175, %p176
      %p179 = scmp.ne.s32.totalorder %s164, %s178
      %p180 = scmp.eq.s32.totalorder %s28, 0
      %p181 = por %p179, %p180
      %s183 = sadd.s32 %s182, 1
      %p186 = scmp.eq.s32.totalorder %s22, 1
      %p187 = scmp.ne.s32.totalorder %s182, %s184
      %p188 = scmp.eq.s32.totalorder %s22, 0
      %p189 = por %p187, %p188
      %p190 = scmp.ne.s32.totalorder %s182, %s184
      %p191 = scmp.eq.s32.totalorder %s27, 1
      %p192 = por %p190, %p191
      %p193 = scmp.ne.s32.totalorder %s184, %s185
      %p194 = scmp.eq.s32.totalorder %s27, 0
      %p195 = por %p193, %p194
      %p196 = scmp.ne.s32.totalorder %s184, %s185
      %p197 = scmp.eq.s32.totalorder %s28, 1
      %p198 = por %p196, %p197
      %p200 = scmp.ne.s32.totalorder %s185, %s199
      %p201 = scmp.eq.s32.totalorder %s28, 0
      %p202 = por %p200, %p201
      %s203 = ssub.s32 %s22, %s29
      %p204 = scmp.eq.s32.totalorder %s203, 0
      %s206 = sadd.s32 %s205, 1
      %s207 = scalar_select %p204, %s205, %s206
      %p210 = pneg %p204
      %p211 = scmp.eq.s32.totalorder %s22, 1
      %p212 = por %p210, %p211
      %p213 = scmp.ne.s32.totalorder %s205, %s208
      %p214 = scmp.eq.s32.totalorder %s22, 0
      %p215 = por %p213, %p214
      %p216 = scmp.ne.s32.totalorder %s205, %s208
      %p217 = scmp.eq.s32.totalorder %s27, 1
      %p218 = por %p216, %p217
      %p219 = scmp.ne.s32.totalorder %s208, %s209
      %p220 = scmp.eq.s32.totalorder %s27, 0
      %p221 = por %p219, %p220
      %p222 = scmp.ne.s32.totalorder %s208, %s209
      %p223 = scmp.eq.s32.totalorder %s28, 1
      %p224 = por %p222, %p223
      %p226 = scmp.ne.s32.totalorder %s209, %s225
      %p227 = scmp.eq.s32.totalorder %s28, 0
      %p228 = por %p226, %p227
      %s229 = ssub.s32 %s22, %s29
      %p230 = scmp.eq.s32.totalorder %s229, 0
      %s232 = sadd.s32 %s231, 1
      %s233 = scalar_select %p230, %s231, %s232
      %p236 = pneg %p230
      %p237 = scmp.eq.s32.totalorder %s22, 1
      %p238 = por %p236, %p237
      %p239 = scmp.ne.s32.totalorder %s231, %s234
      %p240 = scmp.eq.s32.totalorder %s22, 0
      %p241 = por %p239, %p240
      %p242 = scmp.ne.s32.totalorder %s231, %s234
      %p243 = scmp.eq.s32.totalorder %s27, 1
      %p244 = por %p242, %p243
      %p245 = scmp.ne.s32.totalorder %s234, %s235
      %p246 = scmp.eq.s32.totalorder %s27, 0
      %p247 = por %p245, %p246
      %p248 = scmp.ne.s32.totalorder %s234, %s235
      %p249 = scmp.eq.s32.totalorder %s28, 1
      %p250 = por %p248, %p249
      %p252 = scmp.ne.s32.totalorder %s235, %s251
      %p253 = scmp.eq.s32.totalorder %s28, 0
      %p254 = por %p252, %p253
      %p255 = scmp.le.s32.totalorder 1, %s22
      %p256 = scmp.lt.s32.totalorder %s22, 3
      %p257 = pnand %p255, %p256
      %p258 = pneg %p257
      // Predicated region
      $region9: #{tpu_custom_call.1} parent=5 // pred_check
        _
      $region10: #{tpu_custom_call.1} parent=5 // pred_check_branch
        %260 = sbr.rel (%p257) target = $region12
      $region11: #{tpu_custom_call.1} parent=5 // pred_region
        %s261 = ssub.s32 %s22, 1
        // Predicated region
        $region13: #{tpu_custom_call.1} parent=11 // pred_check
          %p262 = pneg %p69
        $region14: #{tpu_custom_call.1} parent=11 // pred_check_branch
          %264 = sbr.rel (%p262) target = $region16
        $region15: #{tpu_custom_call.1} parent=11 // pred_region
          _
        $region16: #{tpu_custom_call.1} parent=11 // pred_fallthru
          _
        // Predicated region
        $region17: #{tpu_custom_call.1} parent=11 // pred_check
          %p265 = pneg %p90
        $region18: #{tpu_custom_call.1} parent=11 // pred_check_branch
          %267 = sbr.rel (%p265) target = $region20
        $region19: #{tpu_custom_call.1} parent=11 // pred_region
          _
        $region20: #{tpu_custom_call.1} parent=11 // pred_fallthru
          _
        // Predicated region
        $region21: #{tpu_custom_call.1} parent=11 // pred_check
          %p268 = pneg %p111
        $region22: #{tpu_custom_call.1} parent=11 // pred_check_branch
          %270 = sbr.rel (%p268) target = $region24
        $region23: #{tpu_custom_call.1} parent=11 // pred_region
          _
        $region24: #{tpu_custom_call.1} parent=11 // pred_fallthru
          _
        // Predicated region
        $region25: #{tpu_custom_call.1} parent=11 // pred_check
          %p271 = pneg %p132
        $region26: #{tpu_custom_call.1} parent=11 // pred_check_branch
          %273 = sbr.rel (%p271) target = $region28
        $region27: #{tpu_custom_call.1} parent=11 // pred_region
          _
        $region28: #{tpu_custom_call.1} parent=11 // pred_fallthru
          _
        // Predicated region
        $region29: #{tpu_custom_call.1} parent=11 // pred_check
          %p274 = pneg %p153
        $region30: #{tpu_custom_call.1} parent=11 // pred_check_branch
          %276 = sbr.rel (%p274) target = $region32
        $region31: #{tpu_custom_call.1} parent=11 // pred_region
          _
        $region32: #{tpu_custom_call.1} parent=11 // pred_fallthru
          _
        // Predicated region
        $region33: #{tpu_custom_call.1} parent=11 // pred_check
          %p277 = pneg %p174
        $region34: #{tpu_custom_call.1} parent=11 // pred_check_branch
          %279 = sbr.rel (%p277) target = $region36
        $region35: #{tpu_custom_call.1} parent=11 // pred_region
          _
        $region36: #{tpu_custom_call.1} parent=11 // pred_fallthru
          _
        // Predicated region
        $region37: #{tpu_custom_call.1} parent=11 // pred_check
          %p280 = pneg %p195
        $region38: #{tpu_custom_call.1} parent=11 // pred_check_branch
          %282 = sbr.rel (%p280) target = $region40
        $region39: #{tpu_custom_call.1} parent=11 // pred_region
          _
        $region40: #{tpu_custom_call.1} parent=11 // pred_fallthru
          _
      $region12: #{tpu_custom_call.1} parent=5 // pred_fallthru
        _
      %p283 = scmp.lt.s32.totalorder %s22, 2
      // Predicated region
      $region41: #{tpu_custom_call.1} parent=5 // pred_check
        %p284 = pneg %p283
      $region42: #{tpu_custom_call.1} parent=5 // pred_check_branch
        %286 = sbr.rel (%p284) target = $region44
      $region43: #{tpu_custom_call.1} parent=5 // pred_region
        // Predicated region
        $region45: #{tpu_custom_call.1} parent=43 // pred_check
          %p287 = pneg %p42
        $region46: #{tpu_custom_call.1} parent=43 // pred_check_branch
          %289 = sbr.rel (%p287) target = $region48
        $region47: #{tpu_custom_call.1} parent=43 // pred_region
          %s290 = smul.u32 32, %s22
          %p291 = scmp.lt.s32.totalorder %s290, 63
          %s292 = scalar_select %p291, %s290, 63
          %s293 = smul.addr %s292, 3
          %s294 = smul.addr %s293, 4
          %s295 = scalar_lea.vmem %s0, %s294
          %s296 = smul.u32 32, %s22
        $region48: #{tpu_custom_call.1} parent=43 // pred_fallthru
          _
      $region44: #{tpu_custom_call.1} parent=5 // pred_fallthru
        _
      %p297 = scmp.le.s32.totalorder 1, %s22
      %p298 = scmp.lt.s32.totalorder %s22, 3
      %p299 = pnand %p297, %p298
      %p300 = pneg %p299
      // Predicated region
      $region49: #{tpu_custom_call.1} parent=5 // pred_check
        _
      $region50: #{tpu_custom_call.1} parent=5 // pred_check_branch
        %302 = sbr.rel (%p299) target = $region52
      $region51: #{tpu_custom_call.1} parent=5 // pred_region
        %s303 = ssub.s32 %s22, 1
        %s304 = smul.u32 32, %s27
        %p305 = scmp.lt.s32.totalorder %s304, 63
        %s306 = scalar_select %p305, %s304, 63
        %s307 = smul.addr %s306, 3
        %s308 = smul.addr %s307, 4
        %s309 = scalar_lea.vmem %s0, %s308
        %p310 = pneg %p48
        %p311 = pneg %p45
        %p312 = pneg %p69
        %p313 = pneg %p66
        %p314 = pneg %p90
        %p315 = pneg %p87
        %p316 = pneg %p111
        %p317 = pneg %p108
        %p318 = pneg %p132
        %p319 = pneg %p129
        %p320 = pneg %p153
        %p321 = pneg %p150
        %p322 = pneg %p174
        %p323 = pneg %p171
        %p324 = pneg %p195
        %p325 = pneg %p192
        %p326 = pneg %p221
        %p327 = pneg %p218
        %s328 = sand.u32 %s208, 1
        %s329 = scalar_lea.sflag [#allocation3], %s328
        %s330 = sand.u32 %s208, 1
        %s331 = smul.addr %s330, 512
        %s332 = scalar_lea.vmem [#allocation2], %s331
        %p333 = pneg %p247
        %p334 = pneg %p244
        %s335 = sand.u32 %s234, 1
        %s336 = scalar_lea.sflag [#allocation5], %s335
        %s337 = sand.u32 %s234, 1
        %s338 = smul.addr %s337, 512
        %s339 = scalar_lea.vmem [#allocation4], %s338
        %s340 = smul.u32 32, %s27
        %p341 = scmp.lt.s32.totalorder %s340, 63
        %s342 = scalar_select %p341, %s340, 63
        %s343 = smul.addr %s342, 3
        %s344 = smul.addr %s343, 4
        %s345 = scalar_lea.vmem %s0, %s344
        %s346 = smul.u32 32, %s27
        %s347 = smul.u32 32, %s27
        %s348 = smul.u32 32, %s27
        %v350 = vld [vmem:[%s345] sm:$0xff]
        %v351 = vld [vmem:[%s345 + $0x8] sm:$0xf]
        %v352 = vld [vmem:[%s345 + $0xc] sm:$0xff]
        %v353 = vld [vmem:[%s345 + $0x14] sm:$0xf]
        %v354 = vld [vmem:[%s345 + $0x18] sm:$0xff]
        %v355 = vld [vmem:[%s345 + $0x20] sm:$0xf]
        %v356 = vld [vmem:[%s345 + $0x24] sm:$0xff]
        %v357 = vld [vmem:[%s345 + $0x2c] sm:$0xf]
        %v358 = vld [vmem:[%s345 + $0x30] sm:$0xff]
        %v359 = vld [vmem:[%s345 + $0x38] sm:$0xf]
        %v360 = vld [vmem:[%s345 + $0x3c] sm:$0xff]
        %v361 = vld [vmem:[%s345 + $0x44] sm:$0xf]
        %v362 = vld [vmem:[%s345 + $0x48] sm:$0xff]
        %v363 = vld [vmem:[%s345 + $0x50] sm:$0xf]
        %v364 = vld [vmem:[%s345 + $0x54] sm:$0xff]
        %v365 = vld [vmem:[%s345 + $0x5c] sm:$0xf]
        %v366 = vld [vmem:[%s345 + $0x60] sm:$0xff]
        %v367 = vld [vmem:[%s345 + $0x68] sm:$0xf]
        %v368 = vld [vmem:[%s345 + $0x6c] sm:$0xff]
        %v369 = vld [vmem:[%s345 + $0x74] sm:$0xf]
        %v370 = vld [vmem:[%s345 + $0x78] sm:$0xff]
        %v371 = vld [vmem:[%s345 + $0x80] sm:$0xf]
        %v372 = vld [vmem:[%s345 + $0x84] sm:$0xff]
        %v373 = vld [vmem:[%s345 + $0x8c] sm:$0xf]
        %v374 = vld [vmem:[%s345 + $0x90] sm:$0xff]
        %v375 = vld [vmem:[%s345 + $0x98] sm:$0xf]
        %v376 = vld [vmem:[%s345 + $0x9c] sm:$0xff]
        %v377 = vld [vmem:[%s345 + $0xa4] sm:$0xf]
        %v378 = vld [vmem:[%s345 + $0xa8] sm:$0xff]
        %v379 = vld [vmem:[%s345 + $0xb0] sm:$0xf]
        %v380 = vld [vmem:[%s345 + $0xb4] sm:$0xff]
        %v381 = vld [vmem:[%s345 + $0xbc] sm:$0xf]
        %v382 = vld [vmem:[%s345 + $0xc0] sm:$0xff]
        %v383 = vld [vmem:[%s345 + $0xc8] sm:$0xf]
        %v384 = vld [vmem:[%s345 + $0xcc] sm:$0xff]
        %v385 = vld [vmem:[%s345 + $0xd4] sm:$0xf]
        %v386 = vld [vmem:[%s345 + $0xd8] sm:$0xff]
        %v387 = vld [vmem:[%s345 + $0xe0] sm:$0xf]
        %v388 = vld [vmem:[%s345 + $0xe4] sm:$0xff]
        %v389 = vld [vmem:[%s345 + $0xec] sm:$0xf]
        %v390 = vld [vmem:[%s345 + $0xf0] sm:$0xff]
        %v391 = vld [vmem:[%s345 + $0xf8] sm:$0xf]
        %v392 = vld [vmem:[%s345 + $0xfc] sm:$0xff]
        %v393 = vld [vmem:[%s345 + $0x104] sm:$0xf]
        %v394 = vld [vmem:[%s345 + $0x108] sm:$0xff]
        %v395 = vld [vmem:[%s345 + $0x110] sm:$0xf]
        %v396 = vld [vmem:[%s345 + $0x114] sm:$0xff]
        %v397 = vld [vmem:[%s345 + $0x11c] sm:$0xf]
        %v398 = vld [vmem:[%s345 + $0x120] sm:$0xff]
        %v399 = vld [vmem:[%s345 + $0x128] sm:$0xf]
        %v400 = vld [vmem:[%s345 + $0x12c] sm:$0xff]
        %v401 = vld [vmem:[%s345 + $0x134] sm:$0xf]
        %v402 = vld [vmem:[%s345 + $0x138] sm:$0xff]
        %v403 = vld [vmem:[%s345 + $0x140] sm:$0xf]
        %v404 = vld [vmem:[%s345 + $0x144] sm:$0xff]
        %v405 = vld [vmem:[%s345 + $0x14c] sm:$0xf]
        %v406 = vld [vmem:[%s345 + $0x150] sm:$0xff]
        %v407 = vld [vmem:[%s345 + $0x158] sm:$0xf]
        %v408 = vld [vmem:[%s345 + $0x15c] sm:$0xff]
        %v409 = vld [vmem:[%s345 + $0x164] sm:$0xf]
        %v410 = vld [vmem:[%s345 + $0x168] sm:$0xff]
        %v411 = vld [vmem:[%s345 + $0x170] sm:$0xf]
        %v412 = vld [vmem:[%s345 + $0x174] sm:$0xff]
        %v413 = vld [vmem:[%s345 + $0x17c] sm:$0xf]
        %v414 = vld [vmem:[%s1] sm:$0xff]
        %v415 = vld [vmem:[%s1 + $0x8] sm:$0xff]
        %v416 = vld [vmem:[%s1 + $0x10] sm:$0xff]
        %v417 = vld [vmem:[%s1 + $0x18] sm:$0xff]
        %v418 = vld [vmem:[%s1 + $0x20] sm:$0xff]
        %v419 = vld [vmem:[%s1 + $0x28] sm:$0xff]
        %v420 = vld [vmem:[%s1 + $0x30] sm:$0xff]
        %v421 = vld [vmem:[%s1 + $0x38] sm:$0xff]
        %v422 = vld [vmem:[%s1 + $0x40] sm:$0xff]
        %v423 = vld [vmem:[%s1 + $0x48] sm:$0xff]
        %v424 = vld [vmem:[%s1 + $0x50] sm:$0xff]
        %v425 = vld [vmem:[%s1 + $0x58] sm:$0xff]
        %v426 = vld [vmem:[%s1 + $0x60] sm:$0xff]
        %v427 = vld [vmem:[%s1 + $0x68] sm:$0xff]
        %v428 = vld [vmem:[%s1 + $0x70] sm:$0xff]
        %v429 = vld [vmem:[%s1 + $0x78] sm:$0xff]
        %v430 = vld [vmem:[%s1 + $0x80] sm:$0xff]
        %v431 = vld [vmem:[%s1 + $0x88] sm:$0xff]
        %v432 = vld [vmem:[%s1 + $0x90] sm:$0xff]
        %v433 = vld [vmem:[%s1 + $0x98] sm:$0xff]
        %v434 = vld [vmem:[%s1 + $0xa0] sm:$0xff]
        %v435 = vld [vmem:[%s1 + $0xa8] sm:$0xff]
        %v436 = vld [vmem:[%s1 + $0xb0] sm:$0xff]
        %v437 = vld [vmem:[%s1 + $0xb8] sm:$0xff]
        %v438 = vld [vmem:[%s1 + $0xc0] sm:$0xff]
        %v439 = vld [vmem:[%s1 + $0xc8] sm:$0xff]
        %v440 = vld [vmem:[%s1 + $0xd0] sm:$0xff]
        %v441 = vld [vmem:[%s1 + $0xd8] sm:$0xff]
        %v442 = vld [vmem:[%s1 + $0xe0] sm:$0xff]
        %v443 = vld [vmem:[%s1 + $0xe8] sm:$0xff]
        %v444 = vld [vmem:[%s1 + $0xf0] sm:$0xff]
        %v445 = vld [vmem:[%s1 + $0xf8] sm:$0xff]
        %v446 = vld [vmem:[%s1 + $0x100] sm:$0xff]
        %v447 = vld [vmem:[%s1 + $0x108] sm:$0xff]
        %v448 = vld [vmem:[%s1 + $0x110] sm:$0xff]
        %v449 = vld [vmem:[%s1 + $0x118] sm:$0xff]
        %v450 = vld [vmem:[%s1 + $0x120] sm:$0xff]
        %v451 = vld [vmem:[%s1 + $0x128] sm:$0xff]
        %v452 = vld [vmem:[%s1 + $0x130] sm:$0xff]
        %v453 = vld [vmem:[%s1 + $0x138] sm:$0xff]
        %v454 = vld [vmem:[%s2] sm:$0x3]
        %v456 = vperm.slane %v454, 0
        %v457 = vperm.slane %v454, 1
        %v524 = vunpack.c.l.b16 %v350
        %v525 = vunpack.c.h.b16 %v350
        %v526 = vunpack.c.l.b16 %v351
        %v527 = vunpack.c.l.b16 %v352
        %v528 = vunpack.c.h.b16 %v352
        %v529 = vunpack.c.l.b16 %v353
        %v530 = vunpack.c.l.b16 %v354
        %v531 = vunpack.c.h.b16 %v354
        %v532 = vunpack.c.l.b16 %v355
        %v533 = vunpack.c.l.b16 %v356
        %v534 = vunpack.c.h.b16 %v356
        %v535 = vunpack.c.l.b16 %v357
        %v536 = vunpack.c.l.b16 %v358
        %v537 = vunpack.c.h.b16 %v358
        %v538 = vunpack.c.l.b16 %v359
        %v539 = vunpack.c.l.b16 %v360
        %v540 = vunpack.c.h.b16 %v360
        %v541 = vunpack.c.l.b16 %v361
        %v542 = vunpack.c.l.b16 %v362
        %v543 = vunpack.c.h.b16 %v362
        %v544 = vunpack.c.l.b16 %v363
        %v545 = vunpack.c.l.b16 %v364
        %v546 = vunpack.c.h.b16 %v364
        %v547 = vunpack.c.l.b16 %v365
        %v548 = vunpack.c.l.b16 %v366
        %v549 = vunpack.c.h.b16 %v366
        %v550 = vunpack.c.l.b16 %v367
        %v551 = vunpack.c.l.b16 %v368
        %v552 = vunpack.c.h.b16 %v368
        %v553 = vunpack.c.l.b16 %v369
        %v554 = vunpack.c.l.b16 %v370
        %v555 = vunpack.c.h.b16 %v370
        %v556 = vunpack.c.l.b16 %v371
        %v557 = vunpack.c.l.b16 %v372
        %v558 = vunpack.c.h.b16 %v372
        %v559 = vunpack.c.l.b16 %v373
        %v560 = vunpack.c.l.b16 %v374
        %v561 = vunpack.c.h.b16 %v374
        %v562 = vunpack.c.l.b16 %v375
        %v563 = vunpack.c.l.b16 %v376
        %v564 = vunpack.c.h.b16 %v376
        %v565 = vunpack.c.l.b16 %v377
        %v566 = vunpack.c.l.b16 %v378
        %v567 = vunpack.c.h.b16 %v378
        %v568 = vunpack.c.l.b16 %v379
        %v569 = vunpack.c.l.b16 %v380
        %v570 = vunpack.c.h.b16 %v380
        %v571 = vunpack.c.l.b16 %v381
        %v572 = vunpack.c.l.b16 %v382
        %v573 = vunpack.c.h.b16 %v382
        %v574 = vunpack.c.l.b16 %v383
        %v575 = vunpack.c.l.b16 %v384
        %v576 = vunpack.c.h.b16 %v384
        %v577 = vunpack.c.l.b16 %v385
        %v578 = vunpack.c.l.b16 %v386
        %v579 = vunpack.c.h.b16 %v386
        %v580 = vunpack.c.l.b16 %v387
        %v581 = vunpack.c.l.b16 %v388
        %v582 = vunpack.c.h.b16 %v388
        %v583 = vunpack.c.l.b16 %v389
        %v584 = vunpack.c.l.b16 %v390
        %v585 = vunpack.c.h.b16 %v390
        %v586 = vunpack.c.l.b16 %v391
        %v587 = vunpack.c.l.b16 %v392
        %v588 = vunpack.c.h.b16 %v392
        %v589 = vunpack.c.l.b16 %v393
        %v590 = vunpack.c.l.b16 %v394
        %v591 = vunpack.c.h.b16 %v394
        %v592 = vunpack.c.l.b16 %v395
        %v593 = vunpack.c.l.b16 %v396
        %v594 = vunpack.c.h.b16 %v396
        %v595 = vunpack.c.l.b16 %v397
        %v596 = vunpack.c.l.b16 %v398
        %v597 = vunpack.c.h.b16 %v398
        %v598 = vunpack.c.l.b16 %v399
        %v599 = vunpack.c.l.b16 %v400
        %v600 = vunpack.c.h.b16 %v400
        %v601 = vunpack.c.l.b16 %v401
        %v602 = vunpack.c.l.b16 %v402
        %v603 = vunpack.c.h.b16 %v402
        %v604 = vunpack.c.l.b16 %v403
        %v605 = vunpack.c.l.b16 %v404
        %v606 = vunpack.c.h.b16 %v404
        %v607 = vunpack.c.l.b16 %v405
        %v608 = vunpack.c.l.b16 %v406
        %v609 = vunpack.c.h.b16 %v406
        %v610 = vunpack.c.l.b16 %v407
        %v611 = vunpack.c.l.b16 %v408
        %v612 = vunpack.c.h.b16 %v408
        %v613 = vunpack.c.l.b16 %v409
        %v614 = vunpack.c.l.b16 %v410
        %v615 = vunpack.c.h.b16 %v410
        %v616 = vunpack.c.l.b16 %v411
        %v617 = vunpack.c.l.b16 %v412
        %v618 = vunpack.c.h.b16 %v412
        %v619 = vunpack.c.l.b16 %v413
        %v620 = vpack.c.b16 %v527, %v524
        %v621 = vpack.c.b16 %v528, %v525
        %v622 = vpack.c.b16 %v529, %v526
        %v623 = vpack.c.b16 %v533, %v530
        %v624 = vpack.c.b16 %v534, %v531
        %v625 = vpack.c.b16 %v535, %v532
        %v626 = vpack.c.b16 %v539, %v536
        %v627 = vpack.c.b16 %v540, %v537
        %v628 = vpack.c.b16 %v541, %v538
        %v629 = vpack.c.b16 %v545, %v542
        %v630 = vpack.c.b16 %v546, %v543
        %v631 = vpack.c.b16 %v547, %v544
        %v632 = vpack.c.b16 %v551, %v548
        %v633 = vpack.c.b16 %v552, %v549
        %v634 = vpack.c.b16 %v553, %v550
        %v635 = vpack.c.b16 %v557, %v554
        %v636 = vpack.c.b16 %v558, %v555
        %v637 = vpack.c.b16 %v559, %v556
        %v638 = vpack.c.b16 %v563, %v560
        %v639 = vpack.c.b16 %v564, %v561
        %v640 = vpack.c.b16 %v565, %v562
        %v641 = vpack.c.b16 %v569, %v566
        %v642 = vpack.c.b16 %v570, %v567
        %v643 = vpack.c.b16 %v571, %v568
        %v644 = vpack.c.b16 %v575, %v572
        %v645 = vpack.c.b16 %v576, %v573
        %v646 = vpack.c.b16 %v577, %v574
        %v647 = vpack.c.b16 %v581, %v578
        %v648 = vpack.c.b16 %v582, %v579
        %v649 = vpack.c.b16 %v583, %v580
        %v650 = vpack.c.b16 %v587, %v584
        %v651 = vpack.c.b16 %v588, %v585
        %v652 = vpack.c.b16 %v589, %v586
        %v653 = vpack.c.b16 %v593, %v590
        %v654 = vpack.c.b16 %v594, %v591
        %v655 = vpack.c.b16 %v595, %v592
        %v656 = vpack.c.b16 %v599, %v596
        %v657 = vpack.c.b16 %v600, %v597
        %v658 = vpack.c.b16 %v601, %v598
        %v659 = vpack.c.b16 %v605, %v602
        %v660 = vpack.c.b16 %v606, %v603
        %v661 = vpack.c.b16 %v607, %v604
        %v662 = vpack.c.b16 %v611, %v608
        %v663 = vpack.c.b16 %v612, %v609
        %v664 = vpack.c.b16 %v613, %v610
        %v665 = vpack.c.b16 %v617, %v614
        %v666 = vpack.c.b16 %v618, %v615
        %v667 = vpack.c.b16 %v619, %v616
        %v740 = vunpack.c.l.b16 %v414
        %v741 = vunpack.c.h.b16 %v414
        %v742 = vunpack.c.l.b16 %v415
        %v743 = vunpack.c.h.b16 %v415
        %v744 = vunpack.c.l.b16 %v416
        %v745 = vunpack.c.h.b16 %v416
        %v746 = vunpack.c.l.b16 %v417
        %v747 = vunpack.c.h.b16 %v417
        %v748 = vunpack.c.l.b16 %v418
        %v749 = vunpack.c.h.b16 %v418
        %v750 = vunpack.c.l.b16 %v419
        %v751 = vunpack.c.h.b16 %v419
        %v752 = vunpack.c.l.b16 %v420
        %v753 = vunpack.c.h.b16 %v420
        %v754 = vunpack.c.l.b16 %v421
        %v755 = vunpack.c.h.b16 %v421
        %v756 = vunpack.c.l.b16 %v422
        %v757 = vunpack.c.h.b16 %v422
        %v758 = vunpack.c.l.b16 %v423
        %v759 = vunpack.c.h.b16 %v423
        %v760 = vunpack.c.l.b16 %v424
        %v761 = vunpack.c.h.b16 %v424
        %v762 = vunpack.c.l.b16 %v425
        %v763 = vunpack.c.h.b16 %v425
        %v764 = vunpack.c.l.b16 %v426
        %v765 = vunpack.c.h.b16 %v426
        %v766 = vunpack.c.l.b16 %v427
        %v767 = vunpack.c.h.b16 %v427
        %v768 = vunpack.c.l.b16 %v428
        %v769 = vunpack.c.h.b16 %v428
        %v770 = vunpack.c.l.b16 %v429
        %v771 = vunpack.c.h.b16 %v429
        %v772 = vunpack.c.l.b16 %v430
        %v773 = vunpack.c.h.b16 %v430
        %v774 = vunpack.c.l.b16 %v431
        %v775 = vunpack.c.h.b16 %v431
        %v776 = vunpack.c.l.b16 %v432
        %v777 = vunpack.c.h.b16 %v432
        %v778 = vunpack.c.l.b16 %v433
        %v779 = vunpack.c.h.b16 %v433
        %v780 = vunpack.c.l.b16 %v434
        %v781 = vunpack.c.h.b16 %v434
        %v782 = vunpack.c.l.b16 %v435
        %v783 = vunpack.c.h.b16 %v435
        %v784 = vunpack.c.l.b16 %v436
        %v785 = vunpack.c.h.b16 %v436
        %v786 = vunpack.c.l.b16 %v437
        %v787 = vunpack.c.h.b16 %v437
        %v788 = vunpack.c.l.b16 %v438
        %v789 = vunpack.c.h.b16 %v438
        %v790 = vunpack.c.l.b16 %v439
        %v791 = vunpack.c.h.b16 %v439
        %v792 = vunpack.c.l.b16 %v440
        %v793 = vunpack.c.h.b16 %v440
        %v794 = vunpack.c.l.b16 %v441
        %v795 = vunpack.c.h.b16 %v441
        %v796 = vunpack.c.l.b16 %v442
        %v797 = vunpack.c.h.b16 %v442
        %v798 = vunpack.c.l.b16 %v443
        %v799 = vunpack.c.h.b16 %v443
        %v800 = vunpack.c.l.b16 %v444
        %v801 = vunpack.c.h.b16 %v444
        %v802 = vunpack.c.l.b16 %v445
        %v803 = vunpack.c.h.b16 %v445
        %v804 = vunpack.c.l.b16 %v446
        %v805 = vunpack.c.h.b16 %v446
        %v806 = vunpack.c.l.b16 %v447
        %v807 = vunpack.c.h.b16 %v447
        %v808 = vunpack.c.l.b16 %v448
        %v809 = vunpack.c.h.b16 %v448
        %v810 = vunpack.c.l.b16 %v449
        %v811 = vunpack.c.h.b16 %v449
        %v812 = vunpack.c.l.b16 %v450
        %v813 = vunpack.c.h.b16 %v450
        %v814 = vunpack.c.l.b16 %v451
        %v815 = vunpack.c.h.b16 %v451
        %v816 = vunpack.c.l.b16 %v452
        %v817 = vunpack.c.h.b16 %v452
        %v818 = vunpack.c.l.b16 %v453
        %v819 = vunpack.c.h.b16 %v453
        %v820 = vpack.c.b16 %v742, %v740
        %v821 = vpack.c.b16 %v743, %v741
        %v822 = vpack.c.b16 %v746, %v744
        %v823 = vpack.c.b16 %v747, %v745
        %v824 = vpack.c.b16 %v750, %v748
        %v825 = vpack.c.b16 %v751, %v749
        %v826 = vpack.c.b16 %v754, %v752
        %v827 = vpack.c.b16 %v755, %v753
        %v828 = vpack.c.b16 %v758, %v756
        %v829 = vpack.c.b16 %v759, %v757
        %v830 = vpack.c.b16 %v762, %v760
        %v831 = vpack.c.b16 %v763, %v761
        %v832 = vpack.c.b16 %v766, %v764
        %v833 = vpack.c.b16 %v767, %v765
        %v834 = vpack.c.b16 %v770, %v768
        %v835 = vpack.c.b16 %v771, %v769
        %v836 = vpack.c.b16 %v774, %v772
        %v837 = vpack.c.b16 %v775, %v773
        %v838 = vpack.c.b16 %v778, %v776
        %v839 = vpack.c.b16 %v779, %v777
        %v840 = vpack.c.b16 %v782, %v780
        %v841 = vpack.c.b16 %v783, %v781
        %v842 = vpack.c.b16 %v786, %v784
        %v843 = vpack.c.b16 %v787, %v785
        %v844 = vpack.c.b16 %v790, %v788
        %v845 = vpack.c.b16 %v791, %v789
        %v846 = vpack.c.b16 %v794, %v792
        %v847 = vpack.c.b16 %v795, %v793
        %v848 = vpack.c.b16 %v798, %v796
        %v849 = vpack.c.b16 %v799, %v797
        %v850 = vpack.c.b16 %v802, %v800
        %v851 = vpack.c.b16 %v803, %v801
        %v852 = vpack.c.b16 %v806, %v804
        %v853 = vpack.c.b16 %v807, %v805
        %v854 = vpack.c.b16 %v810, %v808
        %v855 = vpack.c.b16 %v811, %v809
        %v856 = vpack.c.b16 %v814, %v812
        %v857 = vpack.c.b16 %v815, %v813
        %v858 = vpack.c.b16 %v818, %v816
        %v859 = vpack.c.b16 %v819, %v817
        %vm900 = vcmask 523264
        %v902 = vsel %vm900, %v622, 0
        %v905 = vsel %vm900, %v625, 0
        %v908 = vsel %vm900, %v628, 0
        %v911 = vsel %vm900, %v631, 0
        %v914 = vsel %vm900, %v634, 0
        %v917 = vsel %vm900, %v637, 0
        %v920 = vsel %vm900, %v640, 0
        %v923 = vsel %vm900, %v643, 0
        %v926 = vsel %vm900, %v646, 0
        %v929 = vsel %vm900, %v649, 0
        %v932 = vsel %vm900, %v652, 0
        %v935 = vsel %vm900, %v655, 0
        %v938 = vsel %vm900, %v658, 0
        %v941 = vsel %vm900, %v661, 0
        %v944 = vsel %vm900, %v664, 0
        %v947 = vsel %vm900, %v667, 0
        %949 = vmatpush.bf16.msra.mxu0 %v834
        %950 = vmatpush.bf16.msra.mxu0 %v832
        %951 = vmatpush.bf16.msra.mxu0 %v830
        %952 = vmatpush.bf16.msra.mxu0 %v828
        %953 = vmatpush.bf16.msra.mxu0 %v826
        %954 = vmatpush.bf16.msra.mxu0 %v824
        %955 = vmatpush.bf16.msra.mxu0 %v822
        %956 = vmatpush.bf16.msra.mxu0 %v820
        %957 = vmatmul.bf16.gmra.mxu0 %v620
        %v958 = vpop.f32.mrf.mxu0
        %v959 = vadd.f32 %v456, %v958
        %v960 = vpop.f32.mrf.mxu0
        %v961 = vadd.f32 %v456, %v960
        %962 = vmatmul.bf16.gmra.mxu0 %v623
        %v963 = vpop.f32.mrf.mxu0
        %v964 = vadd.f32 %v456, %v963
        %v965 = vpop.f32.mrf.mxu0
        %v966 = vadd.f32 %v456, %v965
        %967 = vmatmul.bf16.gmra.mxu0 %v626
        %v968 = vpop.f32.mrf.mxu0
        %v969 = vadd.f32 %v456, %v968
        %v970 = vpop.f32.mrf.mxu0
        %v971 = vadd.f32 %v456, %v970
        %972 = vmatmul.bf16.gmra.mxu0 %v629
        %v973 = vpop.f32.mrf.mxu0
        %v974 = vadd.f32 %v456, %v973
        %v975 = vpop.f32.mrf.mxu0
        %v976 = vadd.f32 %v456, %v975
        %977 = vmatmul.bf16.gmra.mxu0 %v632
        %v978 = vpop.f32.mrf.mxu0
        %v979 = vadd.f32 %v456, %v978
        %v980 = vpop.f32.mrf.mxu0
        %v981 = vadd.f32 %v456, %v980
        %982 = vmatmul.bf16.gmra.mxu0 %v635
        %v983 = vpop.f32.mrf.mxu0
        %v984 = vadd.f32 %v456, %v983
        %v985 = vpop.f32.mrf.mxu0
        %v986 = vadd.f32 %v456, %v985
        %987 = vmatmul.bf16.gmra.mxu0 %v638
        %v988 = vpop.f32.mrf.mxu0
        %v989 = vadd.f32 %v456, %v988
        %v990 = vpop.f32.mrf.mxu0
        %v991 = vadd.f32 %v456, %v990
        %992 = vmatmul.bf16.gmra.mxu0 %v641
        %v993 = vpop.f32.mrf.mxu0
        %v994 = vadd.f32 %v456, %v993
        %v995 = vpop.f32.mrf.mxu0
        %v996 = vadd.f32 %v456, %v995
        %997 = vmatmul.bf16.gmra.mxu0 %v644
        %v998 = vpop.f32.mrf.mxu0
        %v999 = vadd.f32 %v456, %v998
        %v1000 = vpop.f32.mrf.mxu0
        %v1001 = vadd.f32 %v456, %v1000
        %1002 = vmatmul.bf16.gmra.mxu0 %v647
        %v1003 = vpop.f32.mrf.mxu0
        %v1004 = vadd.f32 %v456, %v1003
        %v1005 = vpop.f32.mrf.mxu0
        %v1006 = vadd.f32 %v456, %v1005
        %1007 = vmatmul.bf16.gmra.mxu0 %v650
        %v1008 = vpop.f32.mrf.mxu0
        %v1009 = vadd.f32 %v456, %v1008
        %v1010 = vpop.f32.mrf.mxu0
        %v1011 = vadd.f32 %v456, %v1010
        %1012 = vmatmul.bf16.gmra.mxu0 %v653
        %v1013 = vpop.f32.mrf.mxu0
        %v1014 = vadd.f32 %v456, %v1013
        %v1015 = vpop.f32.mrf.mxu0
        %v1016 = vadd.f32 %v456, %v1015
        %1017 = vmatmul.bf16.gmra.mxu0 %v656
        %v1018 = vpop.f32.mrf.mxu0
        %v1019 = vadd.f32 %v456, %v1018
        %v1020 = vpop.f32.mrf.mxu0
        %v1021 = vadd.f32 %v456, %v1020
        %1022 = vmatmul.bf16.gmra.mxu0 %v659
        %v1023 = vpop.f32.mrf.mxu0
        %v1024 = vadd.f32 %v456, %v1023
        %v1025 = vpop.f32.mrf.mxu0
        %v1026 = vadd.f32 %v456, %v1025
        %1027 = vmatmul.bf16.gmra.mxu0 %v662
        %v1028 = vpop.f32.mrf.mxu0
        %v1029 = vadd.f32 %v456, %v1028
        %v1030 = vpop.f32.mrf.mxu0
        %v1031 = vadd.f32 %v456, %v1030
        %1032 = vmatmul.bf16.gmra.mxu0 %v665
        %v1033 = vpop.f32.mrf.mxu0
        %v1034 = vadd.f32 %v456, %v1033
        %v1035 = vpop.f32.mrf.mxu0
        %v1036 = vadd.f32 %v456, %v1035
        %1037 = vdwg.mxu0
        %1038 = vmatpush.bf16.msra.mxu0 %v850
        %1039 = vmatpush.bf16.msra.mxu0 %v848
        %1040 = vmatpush.bf16.msra.mxu0 %v846
        %1041 = vmatpush.bf16.msra.mxu0 %v844
        %1042 = vmatpush.bf16.msra.mxu0 %v842
        %1043 = vmatpush.bf16.msra.mxu0 %v840
        %1044 = vmatpush.bf16.msra.mxu0 %v838
        %1045 = vmatpush.bf16.msra.mxu0 %v836
        %1046 = vmatmul.bf16.gmra.mxu0 %v621
        %v1047 = vpop.f32.mrf.mxu0
        %v1048 = vadd.f32 %v959, %v1047
        %v1049 = vpop.f32.mrf.mxu0
        %v1050 = vadd.f32 %v961, %v1049
        %1051 = vmatmul.bf16.gmra.mxu0 %v624
        %v1052 = vpop.f32.mrf.mxu0
        %v1053 = vadd.f32 %v964, %v1052
        %v1054 = vpop.f32.mrf.mxu0
        %v1055 = vadd.f32 %v966, %v1054
        %1056 = vmatmul.bf16.gmra.mxu0 %v627
        %v1057 = vpop.f32.mrf.mxu0
        %v1058 = vadd.f32 %v969, %v1057
        %v1059 = vpop.f32.mrf.mxu0
        %v1060 = vadd.f32 %v971, %v1059
        %1061 = vmatmul.bf16.gmra.mxu0 %v630
        %v1062 = vpop.f32.mrf.mxu0
        %v1063 = vadd.f32 %v974, %v1062
        %v1064 = vpop.f32.mrf.mxu0
        %v1065 = vadd.f32 %v976, %v1064
        %1066 = vmatmul.bf16.gmra.mxu0 %v633
        %v1067 = vpop.f32.mrf.mxu0
        %v1068 = vadd.f32 %v979, %v1067
        %v1069 = vpop.f32.mrf.mxu0
        %v1070 = vadd.f32 %v981, %v1069
        %1071 = vmatmul.bf16.gmra.mxu0 %v636
        %v1072 = vpop.f32.mrf.mxu0
        %v1073 = vadd.f32 %v984, %v1072
        %v1074 = vpop.f32.mrf.mxu0
        %v1075 = vadd.f32 %v986, %v1074
        %1076 = vmatmul.bf16.gmra.mxu0 %v639
        %v1077 = vpop.f32.mrf.mxu0
        %v1078 = vadd.f32 %v989, %v1077
        %v1079 = vpop.f32.mrf.mxu0
        %v1080 = vadd.f32 %v991, %v1079
        %1081 = vmatmul.bf16.gmra.mxu0 %v642
        %v1082 = vpop.f32.mrf.mxu0
        %v1083 = vadd.f32 %v994, %v1082
        %v1084 = vpop.f32.mrf.mxu0
        %v1085 = vadd.f32 %v996, %v1084
        %1086 = vmatmul.bf16.gmra.mxu0 %v645
        %v1087 = vpop.f32.mrf.mxu0
        %v1088 = vadd.f32 %v999, %v1087
        %v1089 = vpop.f32.mrf.mxu0
        %v1090 = vadd.f32 %v1001, %v1089
        %1091 = vmatmul.bf16.gmra.mxu0 %v648
        %v1092 = vpop.f32.mrf.mxu0
        %v1093 = vadd.f32 %v1004, %v1092
        %v1094 = vpop.f32.mrf.mxu0
        %v1095 = vadd.f32 %v1006, %v1094
        %1096 = vmatmul.bf16.gmra.mxu0 %v651
        %v1097 = vpop.f32.mrf.mxu0
        %v1098 = vadd.f32 %v1009, %v1097
        %v1099 = vpop.f32.mrf.mxu0
        %v1100 = vadd.f32 %v1011, %v1099
        %1101 = vmatmul.bf16.gmra.mxu0 %v654
        %v1102 = vpop.f32.mrf.mxu0
        %v1103 = vadd.f32 %v1014, %v1102
        %v1104 = vpop.f32.mrf.mxu0
        %v1105 = vadd.f32 %v1016, %v1104
        %1106 = vmatmul.bf16.gmra.mxu0 %v657
        %v1107 = vpop.f32.mrf.mxu0
        %v1108 = vadd.f32 %v1019, %v1107
        %v1109 = vpop.f32.mrf.mxu0
        %v1110 = vadd.f32 %v1021, %v1109
        %1111 = vmatmul.bf16.gmra.mxu0 %v660
        %v1112 = vpop.f32.mrf.mxu0
        %v1113 = vadd.f32 %v1024, %v1112
        %v1114 = vpop.f32.mrf.mxu0
        %v1115 = vadd.f32 %v1026, %v1114
        %1116 = vmatmul.bf16.gmra.mxu0 %v663
        %v1117 = vpop.f32.mrf.mxu0
        %v1118 = vadd.f32 %v1029, %v1117
        %v1119 = vpop.f32.mrf.mxu0
        %v1120 = vadd.f32 %v1031, %v1119
        %1121 = vmatmul.bf16.gmra.mxu0 %v666
        %v1122 = vpop.f32.mrf.mxu0
        %v1123 = vadd.f32 %v1034, %v1122
        %v1124 = vpop.f32.mrf.mxu0
        %v1125 = vadd.f32 %v1036, %v1124
        %1126 = vdwg.mxu0
        %1127 = vmatpush.bf16.msra.mxu0 0
        %1128 = vmatpush.bf16.msra.mxu0 0
        %1129 = vmatpush.bf16.msra.mxu0 0
        %1130 = vmatpush.bf16.msra.mxu0 0
        %1131 = vmatpush.bf16.msra.mxu0 %v858
        %1132 = vmatpush.bf16.msra.mxu0 %v856
        %1133 = vmatpush.bf16.msra.mxu0 %v854
        %1134 = vmatpush.bf16.msra.mxu0 %v852
        %1135 = vmatmul.bf16.gmra.mxu0 %v902
        %v1136 = vpop.f32.mrf.mxu0
        %v1137 = vadd.f32 %v1048, %v1136
        %v1138 = vpop.f32.mrf.mxu0
        %v1139 = vadd.f32 %v1050, %v1138
        %1140 = vmatmul.bf16.gmra.mxu0 %v905
        %v1141 = vpop.f32.mrf.mxu0
        %v1142 = vadd.f32 %v1053, %v1141
        %v1143 = vpop.f32.mrf.mxu0
        %v1144 = vadd.f32 %v1055, %v1143
        %1145 = vmatmul.bf16.gmra.mxu0 %v908
        %v1146 = vpop.f32.mrf.mxu0
        %v1147 = vadd.f32 %v1058, %v1146
        %v1148 = vpop.f32.mrf.mxu0
        %v1149 = vadd.f32 %v1060, %v1148
        %1150 = vmatmul.bf16.gmra.mxu0 %v911
        %v1151 = vpop.f32.mrf.mxu0
        %v1152 = vadd.f32 %v1063, %v1151
        %v1153 = vpop.f32.mrf.mxu0
        %v1154 = vadd.f32 %v1065, %v1153
        %1155 = vmatmul.bf16.gmra.mxu0 %v914
        %v1156 = vpop.f32.mrf.mxu0
        %v1157 = vadd.f32 %v1068, %v1156
        %v1158 = vpop.f32.mrf.mxu0
        %v1159 = vadd.f32 %v1070, %v1158
        %1160 = vmatmul.bf16.gmra.mxu0 %v917
        %v1161 = vpop.f32.mrf.mxu0
        %v1162 = vadd.f32 %v1073, %v1161
        %v1163 = vpop.f32.mrf.mxu0
        %v1164 = vadd.f32 %v1075, %v1163
        %1165 = vmatmul.bf16.gmra.mxu0 %v920
        %v1166 = vpop.f32.mrf.mxu0
        %v1167 = vadd.f32 %v1078, %v1166
        %v1168 = vpop.f32.mrf.mxu0
        %v1169 = vadd.f32 %v1080, %v1168
        %1170 = vmatmul.bf16.gmra.mxu0 %v923
        %v1171 = vpop.f32.mrf.mxu0
        %v1172 = vadd.f32 %v1083, %v1171
        %v1173 = vpop.f32.mrf.mxu0
        %v1174 = vadd.f32 %v1085, %v1173
        %1175 = vmatmul.bf16.gmra.mxu0 %v926
        %v1176 = vpop.f32.mrf.mxu0
        %v1177 = vadd.f32 %v1088, %v1176
        %v1178 = vpop.f32.mrf.mxu0
        %v1179 = vadd.f32 %v1090, %v1178
        %1180 = vmatmul.bf16.gmra.mxu0 %v929
        %v1181 = vpop.f32.mrf.mxu0
        %v1182 = vadd.f32 %v1093, %v1181
        %v1183 = vpop.f32.mrf.mxu0
        %v1184 = vadd.f32 %v1095, %v1183
        %1185 = vmatmul.bf16.gmra.mxu0 %v932
        %v1186 = vpop.f32.mrf.mxu0
        %v1187 = vadd.f32 %v1098, %v1186
        %v1188 = vpop.f32.mrf.mxu0
        %v1189 = vadd.f32 %v1100, %v1188
        %1190 = vmatmul.bf16.gmra.mxu0 %v935
        %v1191 = vpop.f32.mrf.mxu0
        %v1192 = vadd.f32 %v1103, %v1191
        %v1193 = vpop.f32.mrf.mxu0
        %v1194 = vadd.f32 %v1105, %v1193
        %1195 = vmatmul.bf16.gmra.mxu0 %v938
        %v1196 = vpop.f32.mrf.mxu0
        %v1197 = vadd.f32 %v1108, %v1196
        %v1198 = vpop.f32.mrf.mxu0
        %v1199 = vadd.f32 %v1110, %v1198
        %1200 = vmatmul.bf16.gmra.mxu0 %v941
        %v1201 = vpop.f32.mrf.mxu0
        %v1202 = vadd.f32 %v1113, %v1201
        %v1203 = vpop.f32.mrf.mxu0
        %v1204 = vadd.f32 %v1115, %v1203
        %1205 = vmatmul.bf16.gmra.mxu0 %v944
        %v1206 = vpop.f32.mrf.mxu0
        %v1207 = vadd.f32 %v1118, %v1206
        %v1208 = vpop.f32.mrf.mxu0
        %v1209 = vadd.f32 %v1120, %v1208
        %1210 = vmatmul.bf16.gmra.mxu0 %v947
        %v1211 = vpop.f32.mrf.mxu0
        %v1212 = vadd.f32 %v1123, %v1211
        %v1213 = vpop.f32.mrf.mxu0
        %v1214 = vadd.f32 %v1125, %v1213
        %1215 = vdwg.mxu0
        %1216 = vmatpush.bf16.msra.mxu0 %v835
        %1217 = vmatpush.bf16.msra.mxu0 %v833
        %1218 = vmatpush.bf16.msra.mxu0 %v831
        %1219 = vmatpush.bf16.msra.mxu0 %v829
        %1220 = vmatpush.bf16.msra.mxu0 %v827
        %1221 = vmatpush.bf16.msra.mxu0 %v825
        %1222 = vmatpush.bf16.msra.mxu0 %v823
        %1223 = vmatpush.bf16.msra.mxu0 %v821
        %1224 = vmatmul.bf16.gmra.mxu0 %v620
        %v1225 = vpop.f32.mrf.mxu0
        %v1226 = vadd.f32 %v457, %v1225
        %v1227 = vpop.f32.mrf.mxu0
        %v1228 = vadd.f32 %v457, %v1227
        %1229 = vmatmul.bf16.gmra.mxu0 %v623
        %v1230 = vpop.f32.mrf.mxu0
        %v1231 = vadd.f32 %v457, %v1230
        %v1232 = vpop.f32.mrf.mxu0
        %v1233 = vadd.f32 %v457, %v1232
        %1234 = vmatmul.bf16.gmra.mxu0 %v626
        %v1235 = vpop.f32.mrf.mxu0
        %v1236 = vadd.f32 %v457, %v1235
        %v1237 = vpop.f32.mrf.mxu0
        %v1238 = vadd.f32 %v457, %v1237
        %1239 = vmatmul.bf16.gmra.mxu0 %v629
        %v1240 = vpop.f32.mrf.mxu0
        %v1241 = vadd.f32 %v457, %v1240
        %v1242 = vpop.f32.mrf.mxu0
        %v1243 = vadd.f32 %v457, %v1242
        %1244 = vmatmul.bf16.gmra.mxu0 %v632
        %v1245 = vpop.f32.mrf.mxu0
        %v1246 = vadd.f32 %v457, %v1245
        %v1247 = vpop.f32.mrf.mxu0
        %v1248 = vadd.f32 %v457, %v1247
        %1249 = vmatmul.bf16.gmra.mxu0 %v635
        %v1250 = vpop.f32.mrf.mxu0
        %v1251 = vadd.f32 %v457, %v1250
        %v1252 = vpop.f32.mrf.mxu0
        %v1253 = vadd.f32 %v457, %v1252
        %1254 = vmatmul.bf16.gmra.mxu0 %v638
        %v1255 = vpop.f32.mrf.mxu0
        %v1256 = vadd.f32 %v457, %v1255
        %v1257 = vpop.f32.mrf.mxu0
        %v1258 = vadd.f32 %v457, %v1257
        %1259 = vmatmul.bf16.gmra.mxu0 %v641
        %v1260 = vpop.f32.mrf.mxu0
        %v1261 = vadd.f32 %v457, %v1260
        %v1262 = vpop.f32.mrf.mxu0
        %v1263 = vadd.f32 %v457, %v1262
        %1264 = vmatmul.bf16.gmra.mxu0 %v644
        %v1265 = vpop.f32.mrf.mxu0
        %v1266 = vadd.f32 %v457, %v1265
        %v1267 = vpop.f32.mrf.mxu0
        %v1268 = vadd.f32 %v457, %v1267
        %1269 = vmatmul.bf16.gmra.mxu0 %v647
        %v1270 = vpop.f32.mrf.mxu0
        %v1271 = vadd.f32 %v457, %v1270
        %v1272 = vpop.f32.mrf.mxu0
        %v1273 = vadd.f32 %v457, %v1272
        %1274 = vmatmul.bf16.gmra.mxu0 %v650
        %v1275 = vpop.f32.mrf.mxu0
        %v1276 = vadd.f32 %v457, %v1275
        %v1277 = vpop.f32.mrf.mxu0
        %v1278 = vadd.f32 %v457, %v1277
        %1279 = vmatmul.bf16.gmra.mxu0 %v653
        %v1280 = vpop.f32.mrf.mxu0
        %v1281 = vadd.f32 %v457, %v1280
        %v1282 = vpop.f32.mrf.mxu0
        %v1283 = vadd.f32 %v457, %v1282
        %1284 = vmatmul.bf16.gmra.mxu0 %v656
        %v1285 = vpop.f32.mrf.mxu0
        %v1286 = vadd.f32 %v457, %v1285
        %v1287 = vpop.f32.mrf.mxu0
        %v1288 = vadd.f32 %v457, %v1287
        %1289 = vmatmul.bf16.gmra.mxu0 %v659
        %v1290 = vpop.f32.mrf.mxu0
        %v1291 = vadd.f32 %v457, %v1290
        %v1292 = vpop.f32.mrf.mxu0
        %v1293 = vadd.f32 %v457, %v1292
        %1294 = vmatmul.bf16.gmra.mxu0 %v662
        %v1295 = vpop.f32.mrf.mxu0
        %v1296 = vadd.f32 %v457, %v1295
        %v1297 = vpop.f32.mrf.mxu0
        %v1298 = vadd.f32 %v457, %v1297
        %1299 = vmatmul.bf16.gmra.mxu0 %v665
        %v1300 = vpop.f32.mrf.mxu0
        %v1301 = vadd.f32 %v457, %v1300
        %v1302 = vpop.f32.mrf.mxu0
        %v1303 = vadd.f32 %v457, %v1302
        %1304 = vdwg.mxu0
        %1305 = vmatpush.bf16.msra.mxu0 %v851
        %1306 = vmatpush.bf16.msra.mxu0 %v849
        %1307 = vmatpush.bf16.msra.mxu0 %v847
        %1308 = vmatpush.bf16.msra.mxu0 %v845
        %1309 = vmatpush.bf16.msra.mxu0 %v843
        %1310 = vmatpush.bf16.msra.mxu0 %v841
        %1311 = vmatpush.bf16.msra.mxu0 %v839
        %1312 = vmatpush.bf16.msra.mxu0 %v837
        %1313 = vmatmul.bf16.gmra.mxu0 %v621
        %v1314 = vpop.f32.mrf.mxu0
        %v1315 = vadd.f32 %v1226, %v1314
        %v1316 = vpop.f32.mrf.mxu0
        %v1317 = vadd.f32 %v1228, %v1316
        %1318 = vmatmul.bf16.gmra.mxu0 %v624
        %v1319 = vpop.f32.mrf.mxu0
        %v1320 = vadd.f32 %v1231, %v1319
        %v1321 = vpop.f32.mrf.mxu0
        %v1322 = vadd.f32 %v1233, %v1321
        %1323 = vmatmul.bf16.gmra.mxu0 %v627
        %v1324 = vpop.f32.mrf.mxu0
        %v1325 = vadd.f32 %v1236, %v1324
        %v1326 = vpop.f32.mrf.mxu0
        %v1327 = vadd.f32 %v1238, %v1326
        %1328 = vmatmul.bf16.gmra.mxu0 %v630
        %v1329 = vpop.f32.mrf.mxu0
        %v1330 = vadd.f32 %v1241, %v1329
        %v1331 = vpop.f32.mrf.mxu0
        %v1332 = vadd.f32 %v1243, %v1331
        %1333 = vmatmul.bf16.gmra.mxu0 %v633
        %v1334 = vpop.f32.mrf.mxu0
        %v1335 = vadd.f32 %v1246, %v1334
        %v1336 = vpop.f32.mrf.mxu0
        %v1337 = vadd.f32 %v1248, %v1336
        %1338 = vmatmul.bf16.gmra.mxu0 %v636
        %v1339 = vpop.f32.mrf.mxu0
        %v1340 = vadd.f32 %v1251, %v1339
        %v1341 = vpop.f32.mrf.mxu0
        %v1342 = vadd.f32 %v1253, %v1341
        %1343 = vmatmul.bf16.gmra.mxu0 %v639
        %v1344 = vpop.f32.mrf.mxu0
        %v1345 = vadd.f32 %v1256, %v1344
        %v1346 = vpop.f32.mrf.mxu0
        %v1347 = vadd.f32 %v1258, %v1346
        %1348 = vmatmul.bf16.gmra.mxu0 %v642
        %v1349 = vpop.f32.mrf.mxu0
        %v1350 = vadd.f32 %v1261, %v1349
        %v1351 = vpop.f32.mrf.mxu0
        %v1352 = vadd.f32 %v1263, %v1351
        %1353 = vmatmul.bf16.gmra.mxu0 %v645
        %v1354 = vpop.f32.mrf.mxu0
        %v1355 = vadd.f32 %v1266, %v1354
        %v1356 = vpop.f32.mrf.mxu0
        %v1357 = vadd.f32 %v1268, %v1356
        %1358 = vmatmul.bf16.gmra.mxu0 %v648
        %v1359 = vpop.f32.mrf.mxu0
        %v1360 = vadd.f32 %v1271, %v1359
        %v1361 = vpop.f32.mrf.mxu0
        %v1362 = vadd.f32 %v1273, %v1361
        %1363 = vmatmul.bf16.gmra.mxu0 %v651
        %v1364 = vpop.f32.mrf.mxu0
        %v1365 = vadd.f32 %v1276, %v1364
        %v1366 = vpop.f32.mrf.mxu0
        %v1367 = vadd.f32 %v1278, %v1366
        %1368 = vmatmul.bf16.gmra.mxu0 %v654
        %v1369 = vpop.f32.mrf.mxu0
        %v1370 = vadd.f32 %v1281, %v1369
        %v1371 = vpop.f32.mrf.mxu0
        %v1372 = vadd.f32 %v1283, %v1371
        %1373 = vmatmul.bf16.gmra.mxu0 %v657
        %v1374 = vpop.f32.mrf.mxu0
        %v1375 = vadd.f32 %v1286, %v1374
        %v1376 = vpop.f32.mrf.mxu0
        %v1377 = vadd.f32 %v1288, %v1376
        %1378 = vmatmul.bf16.gmra.mxu0 %v660
        %v1379 = vpop.f32.mrf.mxu0
        %v1380 = vadd.f32 %v1291, %v1379
        %v1381 = vpop.f32.mrf.mxu0
        %v1382 = vadd.f32 %v1293, %v1381
        %1383 = vmatmul.bf16.gmra.mxu0 %v663
        %v1384 = vpop.f32.mrf.mxu0
        %v1385 = vadd.f32 %v1296, %v1384
        %v1386 = vpop.f32.mrf.mxu0
        %v1387 = vadd.f32 %v1298, %v1386
        %1388 = vmatmul.bf16.gmra.mxu0 %v666
        %v1389 = vpop.f32.mrf.mxu0
        %v1390 = vadd.f32 %v1301, %v1389
        %v1391 = vpop.f32.mrf.mxu0
        %v1392 = vadd.f32 %v1303, %v1391
        %1393 = vdwg.mxu0
        %1394 = vmatpush.bf16.msra.mxu0 0
        %1395 = vmatpush.bf16.msra.mxu0 0
        %1396 = vmatpush.bf16.msra.mxu0 0
        %1397 = vmatpush.bf16.msra.mxu0 0
        %1398 = vmatpush.bf16.msra.mxu0 %v859
        %1399 = vmatpush.bf16.msra.mxu0 %v857
        %1400 = vmatpush.bf16.msra.mxu0 %v855
        %1401 = vmatpush.bf16.msra.mxu0 %v853
        %1402 = vmatmul.bf16.gmra.mxu0 %v902
        %v1403 = vpop.f32.mrf.mxu0
        %v1404 = vadd.f32 %v1315, %v1403
        %v1405 = vpop.f32.mrf.mxu0
        %v1406 = vadd.f32 %v1317, %v1405
        %1407 = vmatmul.bf16.gmra.mxu0 %v905
        %v1408 = vpop.f32.mrf.mxu0
        %v1409 = vadd.f32 %v1320, %v1408
        %v1410 = vpop.f32.mrf.mxu0
        %v1411 = vadd.f32 %v1322, %v1410
        %1412 = vmatmul.bf16.gmra.mxu0 %v908
        %v1413 = vpop.f32.mrf.mxu0
        %v1414 = vadd.f32 %v1325, %v1413
        %v1415 = vpop.f32.mrf.mxu0
        %v1416 = vadd.f32 %v1327, %v1415
        %1417 = vmatmul.bf16.gmra.mxu0 %v911
        %v1418 = vpop.f32.mrf.mxu0
        %v1419 = vadd.f32 %v1330, %v1418
        %v1420 = vpop.f32.mrf.mxu0
        %v1421 = vadd.f32 %v1332, %v1420
        %1422 = vmatmul.bf16.gmra.mxu0 %v914
        %v1423 = vpop.f32.mrf.mxu0
        %v1424 = vadd.f32 %v1335, %v1423
        %v1425 = vpop.f32.mrf.mxu0
        %v1426 = vadd.f32 %v1337, %v1425
        %1427 = vmatmul.bf16.gmra.mxu0 %v917
        %v1428 = vpop.f32.mrf.mxu0
        %v1429 = vadd.f32 %v1340, %v1428
        %v1430 = vpop.f32.mrf.mxu0
        %v1431 = vadd.f32 %v1342, %v1430
        %1432 = vmatmul.bf16.gmra.mxu0 %v920
        %v1433 = vpop.f32.mrf.mxu0
        %v1434 = vadd.f32 %v1345, %v1433
        %v1435 = vpop.f32.mrf.mxu0
        %v1436 = vadd.f32 %v1347, %v1435
        %1437 = vmatmul.bf16.gmra.mxu0 %v923
        %v1438 = vpop.f32.mrf.mxu0
        %v1439 = vadd.f32 %v1350, %v1438
        %v1440 = vpop.f32.mrf.mxu0
        %v1441 = vadd.f32 %v1352, %v1440
        %1442 = vmatmul.bf16.gmra.mxu0 %v926
        %v1443 = vpop.f32.mrf.mxu0
        %v1444 = vadd.f32 %v1355, %v1443
        %v1445 = vpop.f32.mrf.mxu0
        %v1446 = vadd.f32 %v1357, %v1445
        %1447 = vmatmul.bf16.gmra.mxu0 %v929
        %v1448 = vpop.f32.mrf.mxu0
        %v1449 = vadd.f32 %v1360, %v1448
        %v1450 = vpop.f32.mrf.mxu0
        %v1451 = vadd.f32 %v1362, %v1450
        %1452 = vmatmul.bf16.gmra.mxu0 %v932
        %v1453 = vpop.f32.mrf.mxu0
        %v1454 = vadd.f32 %v1365, %v1453
        %v1455 = vpop.f32.mrf.mxu0
        %v1456 = vadd.f32 %v1367, %v1455
        %1457 = vmatmul.bf16.gmra.mxu0 %v935
        %v1458 = vpop.f32.mrf.mxu0
        %v1459 = vadd.f32 %v1370, %v1458
        %v1460 = vpop.f32.mrf.mxu0
        %v1461 = vadd.f32 %v1372, %v1460
        %1462 = vmatmul.bf16.gmra.mxu0 %v938
        %v1463 = vpop.f32.mrf.mxu0
        %v1464 = vadd.f32 %v1375, %v1463
        %v1465 = vpop.f32.mrf.mxu0
        %v1466 = vadd.f32 %v1377, %v1465
        %1467 = vmatmul.bf16.gmra.mxu0 %v941
        %v1468 = vpop.f32.mrf.mxu0
        %v1469 = vadd.f32 %v1380, %v1468
        %v1470 = vpop.f32.mrf.mxu0
        %v1471 = vadd.f32 %v1382, %v1470
        %1472 = vmatmul.bf16.gmra.mxu0 %v944
        %v1473 = vpop.f32.mrf.mxu0
        %v1474 = vadd.f32 %v1385, %v1473
        %v1475 = vpop.f32.mrf.mxu0
        %v1476 = vadd.f32 %v1387, %v1475
        %1477 = vmatmul.bf16.gmra.mxu0 %v947
        %v1478 = vpop.f32.mrf.mxu0
        %v1479 = vadd.f32 %v1390, %v1478
        %v1480 = vpop.f32.mrf.mxu0
        %v1481 = vadd.f32 %v1392, %v1480
        %1482 = vdwg.mxu0
        %1483 = vst [vmem:[%s332] sm:$0xff] %v1137
        %1484 = vst [vmem:[%s332 + $0x8] sm:$0xff] %v1404
        %1485 = vst [vmem:[%s332 + $0x10] sm:$0xff] %v1139
        %1486 = vst [vmem:[%s332 + $0x18] sm:$0xff] %v1406
        %1487 = vst [vmem:[%s332 + $0x20] sm:$0xff] %v1142
        %1488 = vst [vmem:[%s332 + $0x28] sm:$0xff] %v1409
        %1489 = vst [vmem:[%s332 + $0x30] sm:$0xff] %v1144
        %1490 = vst [vmem:[%s332 + $0x38] sm:$0xff] %v1411
        %1491 = vst [vmem:[%s332 + $0x40] sm:$0xff] %v1147
        %1492 = vst [vmem:[%s332 + $0x48] sm:$0xff] %v1414
        %1493 = vst [vmem:[%s332 + $0x50] sm:$0xff] %v1149
        %1494 = vst [vmem:[%s332 + $0x58] sm:$0xff] %v1416
        %1495 = vst [vmem:[%s332 + $0x60] sm:$0xff] %v1152
        %1496 = vst [vmem:[%s332 + $0x68] sm:$0xff] %v1419
        %1497 = vst [vmem:[%s332 + $0x70] sm:$0xff] %v1154
        %1498 = vst [vmem:[%s332 + $0x78] sm:$0xff] %v1421
        %1499 = vst [vmem:[%s332 + $0x80] sm:$0xff] %v1157
        %1500 = vst [vmem:[%s332 + $0x88] sm:$0xff] %v1424
        %1501 = vst [vmem:[%s332 + $0x90] sm:$0xff] %v1159
        %1502 = vst [vmem:[%s332 + $0x98] sm:$0xff] %v1426
        %1503 = vst [vmem:[%s332 + $0xa0] sm:$0xff] %v1162
        %1504 = vst [vmem:[%s332 + $0xa8] sm:$0xff] %v1429
        %1505 = vst [vmem:[%s332 + $0xb0] sm:$0xff] %v1164
        %1506 = vst [vmem:[%s332 + $0xb8] sm:$0xff] %v1431
        %1507 = vst [vmem:[%s332 + $0xc0] sm:$0xff] %v1167
        %1508 = vst [vmem:[%s332 + $0xc8] sm:$0xff] %v1434
        %1509 = vst [vmem:[%s332 + $0xd0] sm:$0xff] %v1169
        %1510 = vst [vmem:[%s332 + $0xd8] sm:$0xff] %v1436
        %1511 = vst [vmem:[%s332 + $0xe0] sm:$0xff] %v1172
        %1512 = vst [vmem:[%s332 + $0xe8] sm:$0xff] %v1439
        %1513 = vst [vmem:[%s332 + $0xf0] sm:$0xff] %v1174
        %1514 = vst [vmem:[%s332 + $0xf8] sm:$0xff] %v1441
        %1515 = vst [vmem:[%s332 + $0x100] sm:$0xff] %v1177
        %1516 = vst [vmem:[%s332 + $0x108] sm:$0xff] %v1444
        %1517 = vst [vmem:[%s332 + $0x110] sm:$0xff] %v1179
        %1518 = vst [vmem:[%s332 + $0x118] sm:$0xff] %v1446
        %1519 = vst [vmem:[%s332 + $0x120] sm:$0xff] %v1182
        %1520 = vst [vmem:[%s332 + $0x128] sm:$0xff] %v1449
        %1521 = vst [vmem:[%s332 + $0x130] sm:$0xff] %v1184
        %1522 = vst [vmem:[%s332 + $0x138] sm:$0xff] %v1451
        %1523 = vst [vmem:[%s332 + $0x140] sm:$0xff] %v1187
        %1524 = vst [vmem:[%s332 + $0x148] sm:$0xff] %v1454
        %1525 = vst [vmem:[%s332 + $0x150] sm:$0xff] %v1189
        %1526 = vst [vmem:[%s332 + $0x158] sm:$0xff] %v1456
        %1527 = vst [vmem:[%s332 + $0x160] sm:$0xff] %v1192
        %1528 = vst [vmem:[%s332 + $0x168] sm:$0xff] %v1459
        %1529 = vst [vmem:[%s332 + $0x170] sm:$0xff] %v1194
        %1530 = vst [vmem:[%s332 + $0x178] sm:$0xff] %v1461
        %1531 = vst [vmem:[%s332 + $0x180] sm:$0xff] %v1197
        %1532 = vst [vmem:[%s332 + $0x188] sm:$0xff] %v1464
        %1533 = vst [vmem:[%s332 + $0x190] sm:$0xff] %v1199
        %1534 = vst [vmem:[%s332 + $0x198] sm:$0xff] %v1466
        %1535 = vst [vmem:[%s332 + $0x1a0] sm:$0xff] %v1202
        %1536 = vst [vmem:[%s332 + $0x1a8] sm:$0xff] %v1469
        %1537 = vst [vmem:[%s332 + $0x1b0] sm:$0xff] %v1204
        %1538 = vst [vmem:[%s332 + $0x1b8] sm:$0xff] %v1471
        %1539 = vst [vmem:[%s332 + $0x1c0] sm:$0xff] %v1207
        %1540 = vst [vmem:[%s332 + $0x1c8] sm:$0xff] %v1474
        %1541 = vst [vmem:[%s332 + $0x1d0] sm:$0xff] %v1209
        %1542 = vst [vmem:[%s332 + $0x1d8] sm:$0xff] %v1476
        %1543 = vst [vmem:[%s332 + $0x1e0] sm:$0xff] %v1212
        %1544 = vst [vmem:[%s332 + $0x1e8] sm:$0xff] %v1479
        %1545 = vst [vmem:[%s332 + $0x1f0] sm:$0xff] %v1214
        %1546 = vst [vmem:[%s332 + $0x1f8] sm:$0xff] %v1481
        %v1547 = vsub.f32 0.0, %v1137
        %v1548 = vsub.f32 0.0, %v1404
        %v1549 = vsub.f32 0.0, %v1139
        %v1550 = vsub.f32 0.0, %v1406
        %v1551 = vsub.f32 0.0, %v1142
        %v1552 = vsub.f32 0.0, %v1409
        %v1553 = vsub.f32 0.0, %v1144
        %v1554 = vsub.f32 0.0, %v1411
        %v1555 = vsub.f32 0.0, %v1147
        %v1556 = vsub.f32 0.0, %v1414
        %v1557 = vsub.f32 0.0, %v1149
        %v1558 = vsub.f32 0.0, %v1416
        %v1559 = vsub.f32 0.0, %v1152
        %v1560 = vsub.f32 0.0, %v1419
        %v1561 = vsub.f32 0.0, %v1154
        %v1562 = vsub.f32 0.0, %v1421
        %v1563 = vsub.f32 0.0, %v1157
        %v1564 = vsub.f32 0.0, %v1424
        %v1565 = vsub.f32 0.0, %v1159
        %v1566 = vsub.f32 0.0, %v1426
        %v1567 = vsub.f32 0.0, %v1162
        %v1568 = vsub.f32 0.0, %v1429
        %v1569 = vsub.f32 0.0, %v1164
        %v1570 = vsub.f32 0.0, %v1431
        %v1571 = vsub.f32 0.0, %v1167
        %v1572 = vsub.f32 0.0, %v1434
        %v1573 = vsub.f32 0.0, %v1169
        %v1574 = vsub.f32 0.0, %v1436
        %v1575 = vsub.f32 0.0, %v1172
        %v1576 = vsub.f32 0.0, %v1439
        %v1577 = vsub.f32 0.0, %v1174
        %v1578 = vsub.f32 0.0, %v1441
        %v1579 = vsub.f32 0.0, %v1177
        %v1580 = vsub.f32 0.0, %v1444
        %v1581 = vsub.f32 0.0, %v1179
        %v1582 = vsub.f32 0.0, %v1446
        %v1583 = vsub.f32 0.0, %v1182
        %v1584 = vsub.f32 0.0, %v1449
        %v1585 = vsub.f32 0.0, %v1184
        %v1586 = vsub.f32 0.0, %v1451
        %v1587 = vsub.f32 0.0, %v1187
        %v1588 = vsub.f32 0.0, %v1454
        %v1589 = vsub.f32 0.0, %v1189
        %v1590 = vsub.f32 0.0, %v1456
        %v1591 = vsub.f32 0.0, %v1192
        %v1592 = vsub.f32 0.0, %v1459
        %v1593 = vsub.f32 0.0, %v1194
        %v1594 = vsub.f32 0.0, %v1461
        %v1595 = vsub.f32 0.0, %v1197
        %v1596 = vsub.f32 0.0, %v1464
        %v1597 = vsub.f32 0.0, %v1199
        %v1598 = vsub.f32 0.0, %v1466
        %v1599 = vsub.f32 0.0, %v1202
        %v1600 = vsub.f32 0.0, %v1469
        %v1601 = vsub.f32 0.0, %v1204
        %v1602 = vsub.f32 0.0, %v1471
        %v1603 = vsub.f32 0.0, %v1207
        %v1604 = vsub.f32 0.0, %v1474
        %v1605 = vsub.f32 0.0, %v1209
        %v1606 = vsub.f32 0.0, %v1476
        %v1607 = vsub.f32 0.0, %v1212
        %v1608 = vsub.f32 0.0, %v1479
        %v1609 = vsub.f32 0.0, %v1214
        %v1610 = vsub.f32 0.0, %v1481
        %v1611 = vmul.f32 %v1547, 1.442695
        %v1612 = vpow.pop %v1611
        %v1613 = vmul.f32 %v1548, 1.442695
        %v1614 = vpow.pop %v1613
        %v1615 = vmul.f32 %v1549, 1.442695
        %v1616 = vpow.pop %v1615
        %v1617 = vmul.f32 %v1550, 1.442695
        %v1618 = vpow.pop %v1617
        %v1619 = vmul.f32 %v1551, 1.442695
        %v1620 = vpow.pop %v1619
        %v1621 = vmul.f32 %v1552, 1.442695
        %v1622 = vpow.pop %v1621
        %v1623 = vmul.f32 %v1553, 1.442695
        %v1624 = vpow.pop %v1623
        %v1625 = vmul.f32 %v1554, 1.442695
        %v1626 = vpow.pop %v1625
        %v1627 = vmul.f32 %v1555, 1.442695
        %v1628 = vpow.pop %v1627
        %v1629 = vmul.f32 %v1556, 1.442695
        %v1630 = vpow.pop %v1629
        %v1631 = vmul.f32 %v1557, 1.442695
        %v1632 = vpow.pop %v1631
        %v1633 = vmul.f32 %v1558, 1.442695
        %v1634 = vpow.pop %v1633
        %v1635 = vmul.f32 %v1559, 1.442695
        %v1636 = vpow.pop %v1635
        %v1637 = vmul.f32 %v1560, 1.442695
        %v1638 = vpow.pop %v1637
        %v1639 = vmul.f32 %v1561, 1.442695
        %v1640 = vpow.pop %v1639
        %v1641 = vmul.f32 %v1562, 1.442695
        %v1642 = vpow.pop %v1641
        %v1643 = vmul.f32 %v1563, 1.442695
        %v1644 = vpow.pop %v1643
        %v1645 = vmul.f32 %v1564, 1.442695
        %v1646 = vpow.pop %v1645
        %v1647 = vmul.f32 %v1565, 1.442695
        %v1648 = vpow.pop %v1647
        %v1649 = vmul.f32 %v1566, 1.442695
        %v1650 = vpow.pop %v1649
        %v1651 = vmul.f32 %v1567, 1.442695
        %v1652 = vpow.pop %v1651
        %v1653 = vmul.f32 %v1568, 1.442695
        %v1654 = vpow.pop %v1653
        %v1655 = vmul.f32 %v1569, 1.442695
        %v1656 = vpow.pop %v1655
        %v1657 = vmul.f32 %v1570, 1.442695
        %v1658 = vpow.pop %v1657
        %v1659 = vmul.f32 %v1571, 1.442695
        %v1660 = vpow.pop %v1659
        %v1661 = vmul.f32 %v1572, 1.442695
        %v1662 = vpow.pop %v1661
        %v1663 = vmul.f32 %v1573, 1.442695
        %v1664 = vpow.pop %v1663
        %v1665 = vmul.f32 %v1574, 1.442695
        %v1666 = vpow.pop %v1665
        %v1667 = vmul.f32 %v1575, 1.442695
        %v1668 = vpow.pop %v1667
        %v1669 = vmul.f32 %v1576, 1.442695
        %v1670 = vpow.pop %v1669
        %v1671 = vmul.f32 %v1577, 1.442695
        %v1672 = vpow.pop %v1671
        %v1673 = vmul.f32 %v1578, 1.442695
        %v1674 = vpow.pop %v1673
        %v1675 = vmul.f32 %v1579, 1.442695
        %v1676 = vpow.pop %v1675
        %v1677 = vmul.f32 %v1580, 1.442695
        %v1678 = vpow.pop %v1677
        %v1679 = vmul.f32 %v1581, 1.442695
        %v1680 = vpow.pop %v1679
        %v1681 = vmul.f32 %v1582, 1.442695
        %v1682 = vpow.pop %v1681
        %v1683 = vmul.f32 %v1583, 1.442695
        %v1684 = vpow.pop %v1683
        %v1685 = vmul.f32 %v1584, 1.442695
        %v1686 = vpow.pop %v1685
        %v1687 = vmul.f32 %v1585, 1.442695
        %v1688 = vpow.pop %v1687
        %v1689 = vmul.f32 %v1586, 1.442695
        %v1690 = vpow.pop %v1689
        %v1691 = vmul.f32 %v1587, 1.442695
        %v1692 = vpow.pop %v1691
        %v1693 = vmul.f32 %v1588, 1.442695
        %v1694 = vpow.pop %v1693
        %v1695 = vmul.f32 %v1589, 1.442695
        %v1696 = vpow.pop %v1695
        %v1697 = vmul.f32 %v1590, 1.442695
        %v1698 = vpow.pop %v1697
        %v1699 = vmul.f32 %v1591, 1.442695
        %v1700 = vpow.pop %v1699
        %v1701 = vmul.f32 %v1592, 1.442695
        %v1702 = vpow.pop %v1701
        %v1703 = vmul.f32 %v1593, 1.442695
        %v1704 = vpow.pop %v1703
        %v1705 = vmul.f32 %v1594, 1.442695
        %v1706 = vpow.pop %v1705
        %v1707 = vmul.f32 %v1595, 1.442695
        %v1708 = vpow.pop %v1707
        %v1709 = vmul.f32 %v1596, 1.442695
        %v1710 = vpow.pop %v1709
        %v1711 = vmul.f32 %v1597, 1.442695
        %v1712 = vpow.pop %v1711
        %v1713 = vmul.f32 %v1598, 1.442695
        %v1714 = vpow.pop %v1713
        %v1715 = vmul.f32 %v1599, 1.442695
        %v1716 = vpow.pop %v1715
        %v1717 = vmul.f32 %v1600, 1.442695
        %v1718 = vpow.pop %v1717
        %v1719 = vmul.f32 %v1601, 1.442695
        %v1720 = vpow.pop %v1719
        %v1721 = vmul.f32 %v1602, 1.442695
        %v1722 = vpow.pop %v1721
        %v1723 = vmul.f32 %v1603, 1.442695
        %v1724 = vpow.pop %v1723
        %v1725 = vmul.f32 %v1604, 1.442695
        %v1726 = vpow.pop %v1725
        %v1727 = vmul.f32 %v1605, 1.442695
        %v1728 = vpow.pop %v1727
        %v1729 = vmul.f32 %v1606, 1.442695
        %v1730 = vpow.pop %v1729
        %v1731 = vmul.f32 %v1607, 1.442695
        %v1732 = vpow.pop %v1731
        %v1733 = vmul.f32 %v1608, 1.442695
        %v1734 = vpow.pop %v1733
        %v1735 = vmul.f32 %v1609, 1.442695
        %v1736 = vpow.pop %v1735
        %v1737 = vmul.f32 %v1610, 1.442695
        %v1738 = vpow.pop %v1737
        %v1739 = vadd.f32 %v1612, 1.0
        %v1740 = vadd.f32 %v1614, 1.0
        %v1741 = vadd.f32 %v1616, 1.0
        %v1742 = vadd.f32 %v1618, 1.0
        %v1743 = vadd.f32 %v1620, 1.0
        %v1744 = vadd.f32 %v1622, 1.0
        %v1745 = vadd.f32 %v1624, 1.0
        %v1746 = vadd.f32 %v1626, 1.0
        %v1747 = vadd.f32 %v1628, 1.0
        %v1748 = vadd.f32 %v1630, 1.0
        %v1749 = vadd.f32 %v1632, 1.0
        %v1750 = vadd.f32 %v1634, 1.0
        %v1751 = vadd.f32 %v1636, 1.0
        %v1752 = vadd.f32 %v1638, 1.0
        %v1753 = vadd.f32 %v1640, 1.0
        %v1754 = vadd.f32 %v1642, 1.0
        %v1755 = vadd.f32 %v1644, 1.0
        %v1756 = vadd.f32 %v1646, 1.0
        %v1757 = vadd.f32 %v1648, 1.0
        %v1758 = vadd.f32 %v1650, 1.0
        %v1759 = vadd.f32 %v1652, 1.0
        %v1760 = vadd.f32 %v1654, 1.0
        %v1761 = vadd.f32 %v1656, 1.0
        %v1762 = vadd.f32 %v1658, 1.0
        %v1763 = vadd.f32 %v1660, 1.0
        %v1764 = vadd.f32 %v1662, 1.0
        %v1765 = vadd.f32 %v1664, 1.0
        %v1766 = vadd.f32 %v1666, 1.0
        %v1767 = vadd.f32 %v1668, 1.0
        %v1768 = vadd.f32 %v1670, 1.0
        %v1769 = vadd.f32 %v1672, 1.0
        %v1770 = vadd.f32 %v1674, 1.0
        %v1771 = vadd.f32 %v1676, 1.0
        %v1772 = vadd.f32 %v1678, 1.0
        %v1773 = vadd.f32 %v1680, 1.0
        %v1774 = vadd.f32 %v1682, 1.0
        %v1775 = vadd.f32 %v1684, 1.0
        %v1776 = vadd.f32 %v1686, 1.0
        %v1777 = vadd.f32 %v1688, 1.0
        %v1778 = vadd.f32 %v1690, 1.0
        %v1779 = vadd.f32 %v1692, 1.0
        %v1780 = vadd.f32 %v1694, 1.0
        %v1781 = vadd.f32 %v1696, 1.0
        %v1782 = vadd.f32 %v1698, 1.0
        %v1783 = vadd.f32 %v1700, 1.0
        %v1784 = vadd.f32 %v1702, 1.0
        %v1785 = vadd.f32 %v1704, 1.0
        %v1786 = vadd.f32 %v1706, 1.0
        %v1787 = vadd.f32 %v1708, 1.0
        %v1788 = vadd.f32 %v1710, 1.0
        %v1789 = vadd.f32 %v1712, 1.0
        %v1790 = vadd.f32 %v1714, 1.0
        %v1791 = vadd.f32 %v1716, 1.0
        %v1792 = vadd.f32 %v1718, 1.0
        %v1793 = vadd.f32 %v1720, 1.0
        %v1794 = vadd.f32 %v1722, 1.0
        %v1795 = vadd.f32 %v1724, 1.0
        %v1796 = vadd.f32 %v1726, 1.0
        %v1797 = vadd.f32 %v1728, 1.0
        %v1798 = vadd.f32 %v1730, 1.0
        %v1799 = vadd.f32 %v1732, 1.0
        %v1800 = vadd.f32 %v1734, 1.0
        %v1801 = vadd.f32 %v1736, 1.0
        %v1802 = vadd.f32 %v1738, 1.0
        %v1803 = vrcp.pop %v1739
        %v1804 = vrcp.pop %v1740
        %v1805 = vrcp.pop %v1741
        %v1806 = vrcp.pop %v1742
        %v1807 = vrcp.pop %v1743
        %v1808 = vrcp.pop %v1744
        %v1809 = vrcp.pop %v1745
        %v1810 = vrcp.pop %v1746
        %v1811 = vrcp.pop %v1747
        %v1812 = vrcp.pop %v1748
        %v1813 = vrcp.pop %v1749
        %v1814 = vrcp.pop %v1750
        %v1815 = vrcp.pop %v1751
        %v1816 = vrcp.pop %v1752
        %v1817 = vrcp.pop %v1753
        %v1818 = vrcp.pop %v1754
        %v1819 = vrcp.pop %v1755
        %v1820 = vrcp.pop %v1756
        %v1821 = vrcp.pop %v1757
        %v1822 = vrcp.pop %v1758
        %v1823 = vrcp.pop %v1759
        %v1824 = vrcp.pop %v1760
        %v1825 = vrcp.pop %v1761
        %v1826 = vrcp.pop %v1762
        %v1827 = vrcp.pop %v1763
        %v1828 = vrcp.pop %v1764
        %v1829 = vrcp.pop %v1765
        %v1830 = vrcp.pop %v1766
        %v1831 = vrcp.pop %v1767
        %v1832 = vrcp.pop %v1768
        %v1833 = vrcp.pop %v1769
        %v1834 = vrcp.pop %v1770
        %v1835 = vrcp.pop %v1771
        %v1836 = vrcp.pop %v1772
        %v1837 = vrcp.pop %v1773
        %v1838 = vrcp.pop %v1774
        %v1839 = vrcp.pop %v1775
        %v1840 = vrcp.pop %v1776
        %v1841 = vrcp.pop %v1777
        %v1842 = vrcp.pop %v1778
        %v1843 = vrcp.pop %v1779
        %v1844 = vrcp.pop %v1780
        %v1845 = vrcp.pop %v1781
        %v1846 = vrcp.pop %v1782
        %v1847 = vrcp.pop %v1783
        %v1848 = vrcp.pop %v1784
        %v1849 = vrcp.pop %v1785
        %v1850 = vrcp.pop %v1786
        %v1851 = vrcp.pop %v1787
        %v1852 = vrcp.pop %v1788
        %v1853 = vrcp.pop %v1789
        %v1854 = vrcp.pop %v1790
        %v1855 = vrcp.pop %v1791
        %v1856 = vrcp.pop %v1792
        %v1857 = vrcp.pop %v1793
        %v1858 = vrcp.pop %v1794
        %v1859 = vrcp.pop %v1795
        %v1860 = vrcp.pop %v1796
        %v1861 = vrcp.pop %v1797
        %v1862 = vrcp.pop %v1798
        %v1863 = vrcp.pop %v1799
        %v1864 = vrcp.pop %v1800
        %v1865 = vrcp.pop %v1801
        %v1866 = vrcp.pop %v1802
        %v1867 = vlaneseq
        %v1868 = vshrl.u32 %v1867, 7
        %v1869 = vadd.s32 %v1868, 8
        %v1870 = vadd.s32 %v1868, 16
        %v1871 = vadd.s32 %v1868, 24
        %v1872 = vadd.s32 %v1868, 32
        %v1873 = vadd.s32 %v1868, 40
        %v1874 = vadd.s32 %v1868, 48
        %v1875 = vadd.s32 %v1868, 56
        %v1876 = vadd.s32 %v1868, 64
        %v1877 = vadd.s32 %v1868, 72
        %v1878 = vadd.s32 %v1868, 80
        %v1879 = vadd.s32 %v1868, 88
        %v1880 = vadd.s32 %v1868, 96
        %v1881 = vadd.s32 %v1868, 104
        %v1882 = vadd.s32 %v1868, 112
        %v1883 = vadd.s32 %v1868, 120
        %v1884 = vadd.s32 %v1868, 128
        %v1885 = vadd.s32 %v1868, 136
        %v1886 = vadd.s32 %v1868, 144
        %v1887 = vadd.s32 %v1868, 152
        %v1888 = vadd.s32 %v1868, 160
        %v1889 = vadd.s32 %v1868, 168
        %v1890 = vadd.s32 %v1868, 176
        %v1891 = vadd.s32 %v1868, 184
        %v1892 = vadd.s32 %v1868, 192
        %v1893 = vadd.s32 %v1868, 200
        %v1894 = vadd.s32 %v1868, 208
        %v1895 = vadd.s32 %v1868, 216
        %v1896 = vadd.s32 %v1868, 224
        %v1897 = vadd.s32 %v1868, 232
        %v1898 = vadd.s32 %v1868, 240
        %v1899 = vadd.s32 %v1868, 248
        %v1900 = vcvt.s32.f32 %v1868
        %v1901 = vcvt.s32.f32 %v1869
        %v1902 = vcvt.s32.f32 %v1870
        %v1903 = vcvt.s32.f32 %v1871
        %v1904 = vcvt.s32.f32 %v1872
        %v1905 = vcvt.s32.f32 %v1873
        %v1906 = vcvt.s32.f32 %v1874
        %v1907 = vcvt.s32.f32 %v1875
        %v1908 = vcvt.s32.f32 %v1876
        %v1909 = vcvt.s32.f32 %v1877
        %v1910 = vcvt.s32.f32 %v1878
        %v1911 = vcvt.s32.f32 %v1879
        %v1912 = vcvt.s32.f32 %v1880
        %v1913 = vcvt.s32.f32 %v1881
        %v1914 = vcvt.s32.f32 %v1882
        %v1915 = vcvt.s32.f32 %v1883
        %v1916 = vcvt.s32.f32 %v1884
        %v1917 = vcvt.s32.f32 %v1885
        %v1918 = vcvt.s32.f32 %v1886
        %v1919 = vcvt.s32.f32 %v1887
        %v1920 = vcvt.s32.f32 %v1888
        %v1921 = vcvt.s32.f32 %v1889
        %v1922 = vcvt.s32.f32 %v1890
        %v1923 = vcvt.s32.f32 %v1891
        %v1924 = vcvt.s32.f32 %v1892
        %v1925 = vcvt.s32.f32 %v1893
        %v1926 = vcvt.s32.f32 %v1894
        %v1927 = vcvt.s32.f32 %v1895
        %v1928 = vcvt.s32.f32 %v1896
        %v1929 = vcvt.s32.f32 %v1897
        %v1930 = vcvt.s32.f32 %v1898
        %v1931 = vcvt.s32.f32 %v1899
        %s1932 = smul.u32 %s27, 256
        %s1933 = scvt.s32.f32 %s1932
        %v1934 = vstv %s1933
        %v1935 = vadd.f32 %v1900, %v1934
        %v1936 = vadd.f32 %v1901, %v1934
        %v1937 = vadd.f32 %v1902, %v1934
        %v1938 = vadd.f32 %v1903, %v1934
        %v1939 = vadd.f32 %v1904, %v1934
        %v1940 = vadd.f32 %v1905, %v1934
        %v1941 = vadd.f32 %v1906, %v1934
        %v1942 = vadd.f32 %v1907, %v1934
        %v1943 = vadd.f32 %v1908, %v1934
        %v1944 = vadd.f32 %v1909, %v1934
        %v1945 = vadd.f32 %v1910, %v1934
        %v1946 = vadd.f32 %v1911, %v1934
        %v1947 = vadd.f32 %v1912, %v1934
        %v1948 = vadd.f32 %v1913, %v1934
        %v1949 = vadd.f32 %v1914, %v1934
        %v1950 = vadd.f32 %v1915, %v1934
        %v1951 = vadd.f32 %v1916, %v1934
        %v1952 = vadd.f32 %v1917, %v1934
        %v1953 = vadd.f32 %v1918, %v1934
        %v1954 = vadd.f32 %v1919, %v1934
        %v1955 = vadd.f32 %v1920, %v1934
        %v1956 = vadd.f32 %v1921, %v1934
        %v1957 = vadd.f32 %v1922, %v1934
        %v1958 = vadd.f32 %v1923, %v1934
        %v1959 = vadd.f32 %v1924, %v1934
        %v1960 = vadd.f32 %v1925, %v1934
        %v1961 = vadd.f32 %v1926, %v1934
        %v1962 = vadd.f32 %v1927, %v1934
        %v1963 = vadd.f32 %v1928, %v1934
        %v1964 = vadd.f32 %v1929, %v1934
        %v1965 = vadd.f32 %v1930, %v1934
        %v1966 = vadd.f32 %v1931, %v1934
        %v1967 = vrcp.pop 256.0
        %v1968 = vmul.f32 256.0, %v1967
        %v1969 = vsub.f32 1.0, %v1968
        %v1970 = vmul.f32 %v1967, %v1969
        %v1971 = vadd.f32 %v1967, %v1970
        %vm1972 = vweird.f32 %v1967
        %v1973 = vsel %vm1972, %v1967, %v1971
        %v1974 = vmul.f32 %v1935, %v1973
        %v1975 = vmul.f32 %v1936, %v1973
        %v1976 = vmul.f32 %v1937, %v1973
        %v1977 = vmul.f32 %v1938, %v1973
        %v1978 = vmul.f32 %v1939, %v1973
        %v1979 = vmul.f32 %v1940, %v1973
        %v1980 = vmul.f32 %v1941, %v1973
        %v1981 = vmul.f32 %v1942, %v1973
        %v1982 = vmul.f32 %v1943, %v1973
        %v1983 = vmul.f32 %v1944, %v1973
        %v1984 = vmul.f32 %v1945, %v1973
        %v1985 = vmul.f32 %v1946, %v1973
        %v1986 = vmul.f32 %v1947, %v1973
        %v1987 = vmul.f32 %v1948, %v1973
        %v1988 = vmul.f32 %v1949, %v1973
        %v1989 = vmul.f32 %v1950, %v1973
        %v1990 = vmul.f32 %v1951, %v1973
        %v1991 = vmul.f32 %v1952, %v1973
        %v1992 = vmul.f32 %v1953, %v1973
        %v1993 = vmul.f32 %v1954, %v1973
        %v1994 = vmul.f32 %v1955, %v1973
        %v1995 = vmul.f32 %v1956, %v1973
        %v1996 = vmul.f32 %v1957, %v1973
        %v1997 = vmul.f32 %v1958, %v1973
        %v1998 = vmul.f32 %v1959, %v1973
        %v1999 = vmul.f32 %v1960, %v1973
        %v2000 = vmul.f32 %v1961, %v1973
        %v2001 = vmul.f32 %v1962, %v1973
        %v2002 = vmul.f32 %v1963, %v1973
        %v2003 = vmul.f32 %v1964, %v1973
        %v2004 = vmul.f32 %v1965, %v1973
        %v2005 = vmul.f32 %v1966, %v1973
        %v2006 = vfloor.f32 %v1974
        %v2007 = vfloor.f32 %v1975
        %v2008 = vfloor.f32 %v1976
        %v2009 = vfloor.f32 %v1977
        %v2010 = vfloor.f32 %v1978
        %v2011 = vfloor.f32 %v1979
        %v2012 = vfloor.f32 %v1980
        %v2013 = vfloor.f32 %v1981
        %v2014 = vfloor.f32 %v1982
        %v2015 = vfloor.f32 %v1983
        %v2016 = vfloor.f32 %v1984
        %v2017 = vfloor.f32 %v1985
        %v2018 = vfloor.f32 %v1986
        %v2019 = vfloor.f32 %v1987
        %v2020 = vfloor.f32 %v1988
        %v2021 = vfloor.f32 %v1989
        %v2022 = vfloor.f32 %v1990
        %v2023 = vfloor.f32 %v1991
        %v2024 = vfloor.f32 %v1992
        %v2025 = vfloor.f32 %v1993
        %v2026 = vfloor.f32 %v1994
        %v2027 = vfloor.f32 %v1995
        %v2028 = vfloor.f32 %v1996
        %v2029 = vfloor.f32 %v1997
        %v2030 = vfloor.f32 %v1998
        %v2031 = vfloor.f32 %v1999
        %v2032 = vfloor.f32 %v2000
        %v2033 = vfloor.f32 %v2001
        %v2034 = vfloor.f32 %v2002
        %v2035 = vfloor.f32 %v2003
        %v2036 = vfloor.f32 %v2004
        %v2037 = vfloor.f32 %v2005
        %v2038 = vmul.f32 %v2006, 256.0
        %v2039 = vmul.f32 %v2007, 256.0
        %v2040 = vmul.f32 %v2008, 256.0
        %v2041 = vmul.f32 %v2009, 256.0
        %v2042 = vmul.f32 %v2010, 256.0
        %v2043 = vmul.f32 %v2011, 256.0
        %v2044 = vmul.f32 %v2012, 256.0
        %v2045 = vmul.f32 %v2013, 256.0
        %v2046 = vmul.f32 %v2014, 256.0
        %v2047 = vmul.f32 %v2015, 256.0
        %v2048 = vmul.f32 %v2016, 256.0
        %v2049 = vmul.f32 %v2017, 256.0
        %v2050 = vmul.f32 %v2018, 256.0
        %v2051 = vmul.f32 %v2019, 256.0
        %v2052 = vmul.f32 %v2020, 256.0
        %v2053 = vmul.f32 %v2021, 256.0
        %v2054 = vmul.f32 %v2022, 256.0
        %v2055 = vmul.f32 %v2023, 256.0
        %v2056 = vmul.f32 %v2024, 256.0
        %v2057 = vmul.f32 %v2025, 256.0
        %v2058 = vmul.f32 %v2026, 256.0
        %v2059 = vmul.f32 %v2027, 256.0
        %v2060 = vmul.f32 %v2028, 256.0
        %v2061 = vmul.f32 %v2029, 256.0
        %v2062 = vmul.f32 %v2030, 256.0
        %v2063 = vmul.f32 %v2031, 256.0
        %v2064 = vmul.f32 %v2032, 256.0
        %v2065 = vmul.f32 %v2033, 256.0
        %v2066 = vmul.f32 %v2034, 256.0
        %v2067 = vmul.f32 %v2035, 256.0
        %v2068 = vmul.f32 %v2036, 256.0
        %v2069 = vmul.f32 %v2037, 256.0
        %v2070 = vsub.f32 %v1935, %v2038
        %v2071 = vsub.f32 %v1936, %v2039
        %v2072 = vsub.f32 %v1937, %v2040
        %v2073 = vsub.f32 %v1938, %v2041
        %v2074 = vsub.f32 %v1939, %v2042
        %v2075 = vsub.f32 %v1940, %v2043
        %v2076 = vsub.f32 %v1941, %v2044
        %v2077 = vsub.f32 %v1942, %v2045
        %v2078 = vsub.f32 %v1943, %v2046
        %v2079 = vsub.f32 %v1944, %v2047
        %v2080 = vsub.f32 %v1945, %v2048
        %v2081 = vsub.f32 %v1946, %v2049
        %v2082 = vsub.f32 %v1947, %v2050
        %v2083 = vsub.f32 %v1948, %v2051
        %v2084 = vsub.f32 %v1949, %v2052
        %v2085 = vsub.f32 %v1950, %v2053
        %v2086 = vsub.f32 %v1951, %v2054
        %v2087 = vsub.f32 %v1952, %v2055
        %v2088 = vsub.f32 %v1953, %v2056
        %v2089 = vsub.f32 %v1954, %v2057
        %v2090 = vsub.f32 %v1955, %v2058
        %v2091 = vsub.f32 %v1956, %v2059
        %v2092 = vsub.f32 %v1957, %v2060
        %v2093 = vsub.f32 %v1958, %v2061
        %v2094 = vsub.f32 %v1959, %v2062
        %v2095 = vsub.f32 %v1960, %v2063
        %v2096 = vsub.f32 %v1961, %v2064
        %v2097 = vsub.f32 %v1962, %v2065
        %v2098 = vsub.f32 %v1963, %v2066
        %v2099 = vsub.f32 %v1964, %v2067
        %v2100 = vsub.f32 %v1965, %v2068
        %v2101 = vsub.f32 %v1966, %v2069
        %v2102 = vrcp.pop 16.0
        %v2103 = vmul.f32 16.0, %v2102
        %v2104 = vsub.f32 1.0, %v2103
        %v2105 = vmul.f32 %v2102, %v2104
        %v2106 = vadd.f32 %v2102, %v2105
        %vm2107 = vweird.f32 %v2102
        %v2108 = vsel %vm2107, %v2102, %v2106
        %v2109 = vmul.f32 %v2070, %v2108
        %v2110 = vmul.f32 %v2071, %v2108
        %v2111 = vmul.f32 %v2072, %v2108
        %v2112 = vmul.f32 %v2073, %v2108
        %v2113 = vmul.f32 %v2074, %v2108
        %v2114 = vmul.f32 %v2075, %v2108
        %v2115 = vmul.f32 %v2076, %v2108
        %v2116 = vmul.f32 %v2077, %v2108
        %v2117 = vmul.f32 %v2078, %v2108
        %v2118 = vmul.f32 %v2079, %v2108
        %v2119 = vmul.f32 %v2080, %v2108
        %v2120 = vmul.f32 %v2081, %v2108
        %v2121 = vmul.f32 %v2082, %v2108
        %v2122 = vmul.f32 %v2083, %v2108
        %v2123 = vmul.f32 %v2084, %v2108
        %v2124 = vmul.f32 %v2085, %v2108
        %v2125 = vmul.f32 %v2086, %v2108
        %v2126 = vmul.f32 %v2087, %v2108
        %v2127 = vmul.f32 %v2088, %v2108
        %v2128 = vmul.f32 %v2089, %v2108
        %v2129 = vmul.f32 %v2090, %v2108
        %v2130 = vmul.f32 %v2091, %v2108
        %v2131 = vmul.f32 %v2092, %v2108
        %v2132 = vmul.f32 %v2093, %v2108
        %v2133 = vmul.f32 %v2094, %v2108
        %v2134 = vmul.f32 %v2095, %v2108
        %v2135 = vmul.f32 %v2096, %v2108
        %v2136 = vmul.f32 %v2097, %v2108
        %v2137 = vmul.f32 %v2098, %v2108
        %v2138 = vmul.f32 %v2099, %v2108
        %v2139 = vmul.f32 %v2100, %v2108
        %v2140 = vmul.f32 %v2101, %v2108
        %v2141 = vfloor.f32 %v2109
        %v2142 = vfloor.f32 %v2110
        %v2143 = vfloor.f32 %v2111
        %v2144 = vfloor.f32 %v2112
        %v2145 = vfloor.f32 %v2113
        %v2146 = vfloor.f32 %v2114
        %v2147 = vfloor.f32 %v2115
        %v2148 = vfloor.f32 %v2116
        %v2149 = vfloor.f32 %v2117
        %v2150 = vfloor.f32 %v2118
        %v2151 = vfloor.f32 %v2119
        %v2152 = vfloor.f32 %v2120
        %v2153 = vfloor.f32 %v2121
        %v2154 = vfloor.f32 %v2122
        %v2155 = vfloor.f32 %v2123
        %v2156 = vfloor.f32 %v2124
        %v2157 = vfloor.f32 %v2125
        %v2158 = vfloor.f32 %v2126
        %v2159 = vfloor.f32 %v2127
        %v2160 = vfloor.f32 %v2128
        %v2161 = vfloor.f32 %v2129
        %v2162 = vfloor.f32 %v2130
        %v2163 = vfloor.f32 %v2131
        %v2164 = vfloor.f32 %v2132
        %v2165 = vfloor.f32 %v2133
        %v2166 = vfloor.f32 %v2134
        %v2167 = vfloor.f32 %v2135
        %v2168 = vfloor.f32 %v2136
        %v2169 = vfloor.f32 %v2137
        %v2170 = vfloor.f32 %v2138
        %v2171 = vfloor.f32 %v2139
        %v2172 = vfloor.f32 %v2140
        %v2173 = vmul.f32 %v2141, 16.0
        %v2174 = vmul.f32 %v2142, 16.0
        %v2175 = vmul.f32 %v2143, 16.0
        %v2176 = vmul.f32 %v2144, 16.0
        %v2177 = vmul.f32 %v2145, 16.0
        %v2178 = vmul.f32 %v2146, 16.0
        %v2179 = vmul.f32 %v2147, 16.0
        %v2180 = vmul.f32 %v2148, 16.0
        %v2181 = vmul.f32 %v2149, 16.0
        %v2182 = vmul.f32 %v2150, 16.0
        %v2183 = vmul.f32 %v2151, 16.0
        %v2184 = vmul.f32 %v2152, 16.0
        %v2185 = vmul.f32 %v2153, 16.0
        %v2186 = vmul.f32 %v2154, 16.0
        %v2187 = vmul.f32 %v2155, 16.0
        %v2188 = vmul.f32 %v2156, 16.0
        %v2189 = vmul.f32 %v2157, 16.0
        %v2190 = vmul.f32 %v2158, 16.0
        %v2191 = vmul.f32 %v2159, 16.0
        %v2192 = vmul.f32 %v2160, 16.0
        %v2193 = vmul.f32 %v2161, 16.0
        %v2194 = vmul.f32 %v2162, 16.0
        %v2195 = vmul.f32 %v2163, 16.0
        %v2196 = vmul.f32 %v2164, 16.0
        %v2197 = vmul.f32 %v2165, 16.0
        %v2198 = vmul.f32 %v2166, 16.0
        %v2199 = vmul.f32 %v2167, 16.0
        %v2200 = vmul.f32 %v2168, 16.0
        %v2201 = vmul.f32 %v2169, 16.0
        %v2202 = vmul.f32 %v2170, 16.0
        %v2203 = vmul.f32 %v2171, 16.0
        %v2204 = vmul.f32 %v2172, 16.0
        %v2205 = vsub.f32 %v2070, %v2173
        %v2206 = vsub.f32 %v2071, %v2174
        %v2207 = vsub.f32 %v2072, %v2175
        %v2208 = vsub.f32 %v2073, %v2176
        %v2209 = vsub.f32 %v2074, %v2177
        %v2210 = vsub.f32 %v2075, %v2178
        %v2211 = vsub.f32 %v2076, %v2179
        %v2212 = vsub.f32 %v2077, %v2180
        %v2213 = vsub.f32 %v2078, %v2181
        %v2214 = vsub.f32 %v2079, %v2182
        %v2215 = vsub.f32 %v2080, %v2183
        %v2216 = vsub.f32 %v2081, %v2184
        %v2217 = vsub.f32 %v2082, %v2185
        %v2218 = vsub.f32 %v2083, %v2186
        %v2219 = vsub.f32 %v2084, %v2187
        %v2220 = vsub.f32 %v2085, %v2188
        %v2221 = vsub.f32 %v2086, %v2189
        %v2222 = vsub.f32 %v2087, %v2190
        %v2223 = vsub.f32 %v2088, %v2191
        %v2224 = vsub.f32 %v2089, %v2192
        %v2225 = vsub.f32 %v2090, %v2193
        %v2226 = vsub.f32 %v2091, %v2194
        %v2227 = vsub.f32 %v2092, %v2195
        %v2228 = vsub.f32 %v2093, %v2196
        %v2229 = vsub.f32 %v2094, %v2197
        %v2230 = vsub.f32 %v2095, %v2198
        %v2231 = vsub.f32 %v2096, %v2199
        %v2232 = vsub.f32 %v2097, %v2200
        %v2233 = vsub.f32 %v2098, %v2201
        %v2234 = vsub.f32 %v2099, %v2202
        %v2235 = vsub.f32 %v2100, %v2203
        %v2236 = vsub.f32 %v2101, %v2204
        %v2237 = vld [vmem:[%s6] sm:$0x3]
        %v2239 = vperm.slane %v2237, 0
        %v2240 = vperm.slane %v2237, 1
        %v2243 = vmul.f32 %v2205, %v2239
        %v2244 = vmul.f32 %v2205, %v2240
        %v2245 = vmul.f32 %v2206, %v2239
        %v2246 = vmul.f32 %v2206, %v2240
        %v2247 = vmul.f32 %v2207, %v2239
        %v2248 = vmul.f32 %v2207, %v2240
        %v2249 = vmul.f32 %v2208, %v2239
        %v2250 = vmul.f32 %v2208, %v2240
        %v2251 = vmul.f32 %v2209, %v2239
        %v2252 = vmul.f32 %v2209, %v2240
        %v2253 = vmul.f32 %v2210, %v2239
        %v2254 = vmul.f32 %v2210, %v2240
        %v2255 = vmul.f32 %v2211, %v2239
        %v2256 = vmul.f32 %v2211, %v2240
        %v2257 = vmul.f32 %v2212, %v2239
        %v2258 = vmul.f32 %v2212, %v2240
        %v2259 = vmul.f32 %v2213, %v2239
        %v2260 = vmul.f32 %v2213, %v2240
        %v2261 = vmul.f32 %v2214, %v2239
        %v2262 = vmul.f32 %v2214, %v2240
        %v2263 = vmul.f32 %v2215, %v2239
        %v2264 = vmul.f32 %v2215, %v2240
        %v2265 = vmul.f32 %v2216, %v2239
        %v2266 = vmul.f32 %v2216, %v2240
        %v2267 = vmul.f32 %v2217, %v2239
        %v2268 = vmul.f32 %v2217, %v2240
        %v2269 = vmul.f32 %v2218, %v2239
        %v2270 = vmul.f32 %v2218, %v2240
        %v2271 = vmul.f32 %v2219, %v2239
        %v2272 = vmul.f32 %v2219, %v2240
        %v2273 = vmul.f32 %v2220, %v2239
        %v2274 = vmul.f32 %v2220, %v2240
        %v2275 = vmul.f32 %v2221, %v2239
        %v2276 = vmul.f32 %v2221, %v2240
        %v2277 = vmul.f32 %v2222, %v2239
        %v2278 = vmul.f32 %v2222, %v2240
        %v2279 = vmul.f32 %v2223, %v2239
        %v2280 = vmul.f32 %v2223, %v2240
        %v2281 = vmul.f32 %v2224, %v2239
        %v2282 = vmul.f32 %v2224, %v2240
        %v2283 = vmul.f32 %v2225, %v2239
        %v2284 = vmul.f32 %v2225, %v2240
        %v2285 = vmul.f32 %v2226, %v2239
        %v2286 = vmul.f32 %v2226, %v2240
        %v2287 = vmul.f32 %v2227, %v2239
        %v2288 = vmul.f32 %v2227, %v2240
        %v2289 = vmul.f32 %v2228, %v2239
        %v2290 = vmul.f32 %v2228, %v2240
        %v2291 = vmul.f32 %v2229, %v2239
        %v2292 = vmul.f32 %v2229, %v2240
        %v2293 = vmul.f32 %v2230, %v2239
        %v2294 = vmul.f32 %v2230, %v2240
        %v2295 = vmul.f32 %v2231, %v2239
        %v2296 = vmul.f32 %v2231, %v2240
        %v2297 = vmul.f32 %v2232, %v2239
        %v2298 = vmul.f32 %v2232, %v2240
        %v2299 = vmul.f32 %v2233, %v2239
        %v2300 = vmul.f32 %v2233, %v2240
        %v2301 = vmul.f32 %v2234, %v2239
        %v2302 = vmul.f32 %v2234, %v2240
        %v2303 = vmul.f32 %v2235, %v2239
        %v2304 = vmul.f32 %v2235, %v2240
        %v2305 = vmul.f32 %v2236, %v2239
        %v2306 = vmul.f32 %v2236, %v2240
        %v2307 = vld [vmem:[%s7] sm:$0x3]
        %v2309 = vperm.slane %v2307, 0
        %v2310 = vperm.slane %v2307, 1
        %v2313 = vmul.f32 %v2141, %v2309
        %v2314 = vmul.f32 %v2141, %v2310
        %v2315 = vmul.f32 %v2142, %v2309
        %v2316 = vmul.f32 %v2142, %v2310
        %v2317 = vmul.f32 %v2143, %v2309
        %v2318 = vmul.f32 %v2143, %v2310
        %v2319 = vmul.f32 %v2144, %v2309
        %v2320 = vmul.f32 %v2144, %v2310
        %v2321 = vmul.f32 %v2145, %v2309
        %v2322 = vmul.f32 %v2145, %v2310
        %v2323 = vmul.f32 %v2146, %v2309
        %v2324 = vmul.f32 %v2146, %v2310
        %v2325 = vmul.f32 %v2147, %v2309
        %v2326 = vmul.f32 %v2147, %v2310
        %v2327 = vmul.f32 %v2148, %v2309
        %v2328 = vmul.f32 %v2148, %v2310
        %v2329 = vmul.f32 %v2149, %v2309
        %v2330 = vmul.f32 %v2149, %v2310
        %v2331 = vmul.f32 %v2150, %v2309
        %v2332 = vmul.f32 %v2150, %v2310
        %v2333 = vmul.f32 %v2151, %v2309
        %v2334 = vmul.f32 %v2151, %v2310
        %v2335 = vmul.f32 %v2152, %v2309
        %v2336 = vmul.f32 %v2152, %v2310
        %v2337 = vmul.f32 %v2153, %v2309
        %v2338 = vmul.f32 %v2153, %v2310
        %v2339 = vmul.f32 %v2154, %v2309
        %v2340 = vmul.f32 %v2154, %v2310
        %v2341 = vmul.f32 %v2155, %v2309
        %v2342 = vmul.f32 %v2155, %v2310
        %v2343 = vmul.f32 %v2156, %v2309
        %v2344 = vmul.f32 %v2156, %v2310
        %v2345 = vmul.f32 %v2157, %v2309
        %v2346 = vmul.f32 %v2157, %v2310
        %v2347 = vmul.f32 %v2158, %v2309
        %v2348 = vmul.f32 %v2158, %v2310
        %v2349 = vmul.f32 %v2159, %v2309
        %v2350 = vmul.f32 %v2159, %v2310
        %v2351 = vmul.f32 %v2160, %v2309
        %v2352 = vmul.f32 %v2160, %v2310
        %v2353 = vmul.f32 %v2161, %v2309
        %v2354 = vmul.f32 %v2161, %v2310
        %v2355 = vmul.f32 %v2162, %v2309
        %v2356 = vmul.f32 %v2162, %v2310
        %v2357 = vmul.f32 %v2163, %v2309
        %v2358 = vmul.f32 %v2163, %v2310
        %v2359 = vmul.f32 %v2164, %v2309
        %v2360 = vmul.f32 %v2164, %v2310
        %v2361 = vmul.f32 %v2165, %v2309
        %v2362 = vmul.f32 %v2165, %v2310
        %v2363 = vmul.f32 %v2166, %v2309
        %v2364 = vmul.f32 %v2166, %v2310
        %v2365 = vmul.f32 %v2167, %v2309
        %v2366 = vmul.f32 %v2167, %v2310
        %v2367 = vmul.f32 %v2168, %v2309
        %v2368 = vmul.f32 %v2168, %v2310
        %v2369 = vmul.f32 %v2169, %v2309
        %v2370 = vmul.f32 %v2169, %v2310
        %v2371 = vmul.f32 %v2170, %v2309
        %v2372 = vmul.f32 %v2170, %v2310
        %v2373 = vmul.f32 %v2171, %v2309
        %v2374 = vmul.f32 %v2171, %v2310
        %v2375 = vmul.f32 %v2172, %v2309
        %v2376 = vmul.f32 %v2172, %v2310
        %v2377 = vadd.f32 %v2243, %v2313
        %v2378 = vadd.f32 %v2244, %v2314
        %v2379 = vadd.f32 %v2245, %v2315
        %v2380 = vadd.f32 %v2246, %v2316
        %v2381 = vadd.f32 %v2247, %v2317
        %v2382 = vadd.f32 %v2248, %v2318
        %v2383 = vadd.f32 %v2249, %v2319
        %v2384 = vadd.f32 %v2250, %v2320
        %v2385 = vadd.f32 %v2251, %v2321
        %v2386 = vadd.f32 %v2252, %v2322
        %v2387 = vadd.f32 %v2253, %v2323
        %v2388 = vadd.f32 %v2254, %v2324
        %v2389 = vadd.f32 %v2255, %v2325
        %v2390 = vadd.f32 %v2256, %v2326
        %v2391 = vadd.f32 %v2257, %v2327
        %v2392 = vadd.f32 %v2258, %v2328
        %v2393 = vadd.f32 %v2259, %v2329
        %v2394 = vadd.f32 %v2260, %v2330
        %v2395 = vadd.f32 %v2261, %v2331
        %v2396 = vadd.f32 %v2262, %v2332
        %v2397 = vadd.f32 %v2263, %v2333
        %v2398 = vadd.f32 %v2264, %v2334
        %v2399 = vadd.f32 %v2265, %v2335
        %v2400 = vadd.f32 %v2266, %v2336
        %v2401 = vadd.f32 %v2267, %v2337
        %v2402 = vadd.f32 %v2268, %v2338
        %v2403 = vadd.f32 %v2269, %v2339
        %v2404 = vadd.f32 %v2270, %v2340
        %v2405 = vadd.f32 %v2271, %v2341
        %v2406 = vadd.f32 %v2272, %v2342
        %v2407 = vadd.f32 %v2273, %v2343
        %v2408 = vadd.f32 %v2274, %v2344
        %v2409 = vadd.f32 %v2275, %v2345
        %v2410 = vadd.f32 %v2276, %v2346
        %v2411 = vadd.f32 %v2277, %v2347
        %v2412 = vadd.f32 %v2278, %v2348
        %v2413 = vadd.f32 %v2279, %v2349
        %v2414 = vadd.f32 %v2280, %v2350
        %v2415 = vadd.f32 %v2281, %v2351
        %v2416 = vadd.f32 %v2282, %v2352
        %v2417 = vadd.f32 %v2283, %v2353
        %v2418 = vadd.f32 %v2284, %v2354
        %v2419 = vadd.f32 %v2285, %v2355
        %v2420 = vadd.f32 %v2286, %v2356
        %v2421 = vadd.f32 %v2287, %v2357
        %v2422 = vadd.f32 %v2288, %v2358
        %v2423 = vadd.f32 %v2289, %v2359
        %v2424 = vadd.f32 %v2290, %v2360
        %v2425 = vadd.f32 %v2291, %v2361
        %v2426 = vadd.f32 %v2292, %v2362
        %v2427 = vadd.f32 %v2293, %v2363
        %v2428 = vadd.f32 %v2294, %v2364
        %v2429 = vadd.f32 %v2295, %v2365
        %v2430 = vadd.f32 %v2296, %v2366
        %v2431 = vadd.f32 %v2297, %v2367
        %v2432 = vadd.f32 %v2298, %v2368
        %v2433 = vadd.f32 %v2299, %v2369
        %v2434 = vadd.f32 %v2300, %v2370
        %v2435 = vadd.f32 %v2301, %v2371
        %v2436 = vadd.f32 %v2302, %v2372
        %v2437 = vadd.f32 %v2303, %v2373
        %v2438 = vadd.f32 %v2304, %v2374
        %v2439 = vadd.f32 %v2305, %v2375
        %v2440 = vadd.f32 %v2306, %v2376
        %v2441 = vmul.f32 %v1803, 2.0
        %v2442 = vmul.f32 %v1804, 2.0
        %v2443 = vmul.f32 %v1805, 2.0
        %v2444 = vmul.f32 %v1806, 2.0
        %v2445 = vmul.f32 %v1807, 2.0
        %v2446 = vmul.f32 %v1808, 2.0
        %v2447 = vmul.f32 %v1809, 2.0
        %v2448 = vmul.f32 %v1810, 2.0
        %v2449 = vmul.f32 %v1811, 2.0
        %v2450 = vmul.f32 %v1812, 2.0
        %v2451 = vmul.f32 %v1813, 2.0
        %v2452 = vmul.f32 %v1814, 2.0
        %v2453 = vmul.f32 %v1815, 2.0
        %v2454 = vmul.f32 %v1816, 2.0
        %v2455 = vmul.f32 %v1817, 2.0
        %v2456 = vmul.f32 %v1818, 2.0
        %v2457 = vmul.f32 %v1819, 2.0
        %v2458 = vmul.f32 %v1820, 2.0
        %v2459 = vmul.f32 %v1821, 2.0
        %v2460 = vmul.f32 %v1822, 2.0
        %v2461 = vmul.f32 %v1823, 2.0
        %v2462 = vmul.f32 %v1824, 2.0
        %v2463 = vmul.f32 %v1825, 2.0
        %v2464 = vmul.f32 %v1826, 2.0
        %v2465 = vmul.f32 %v1827, 2.0
        %v2466 = vmul.f32 %v1828, 2.0
        %v2467 = vmul.f32 %v1829, 2.0
        %v2468 = vmul.f32 %v1830, 2.0
        %v2469 = vmul.f32 %v1831, 2.0
        %v2470 = vmul.f32 %v1832, 2.0
        %v2471 = vmul.f32 %v1833, 2.0
        %v2472 = vmul.f32 %v1834, 2.0
        %v2473 = vmul.f32 %v1835, 2.0
        %v2474 = vmul.f32 %v1836, 2.0
        %v2475 = vmul.f32 %v1837, 2.0
        %v2476 = vmul.f32 %v1838, 2.0
        %v2477 = vmul.f32 %v1839, 2.0
        %v2478 = vmul.f32 %v1840, 2.0
        %v2479 = vmul.f32 %v1841, 2.0
        %v2480 = vmul.f32 %v1842, 2.0
        %v2481 = vmul.f32 %v1843, 2.0
        %v2482 = vmul.f32 %v1844, 2.0
        %v2483 = vmul.f32 %v1845, 2.0
        %v2484 = vmul.f32 %v1846, 2.0
        %v2485 = vmul.f32 %v1847, 2.0
        %v2486 = vmul.f32 %v1848, 2.0
        %v2487 = vmul.f32 %v1849, 2.0
        %v2488 = vmul.f32 %v1850, 2.0
        %v2489 = vmul.f32 %v1851, 2.0
        %v2490 = vmul.f32 %v1852, 2.0
        %v2491 = vmul.f32 %v1853, 2.0
        %v2492 = vmul.f32 %v1854, 2.0
        %v2493 = vmul.f32 %v1855, 2.0
        %v2494 = vmul.f32 %v1856, 2.0
        %v2495 = vmul.f32 %v1857, 2.0
        %v2496 = vmul.f32 %v1858, 2.0
        %v2497 = vmul.f32 %v1859, 2.0
        %v2498 = vmul.f32 %v1860, 2.0
        %v2499 = vmul.f32 %v1861, 2.0
        %v2500 = vmul.f32 %v1862, 2.0
        %v2501 = vmul.f32 %v1863, 2.0
        %v2502 = vmul.f32 %v1864, 2.0
        %v2503 = vmul.f32 %v1865, 2.0
        %v2504 = vmul.f32 %v1866, 2.0
        %v2505 = vsub.f32 %v2441, 0.5
        %v2506 = vsub.f32 %v2442, 0.5
        %v2507 = vsub.f32 %v2443, 0.5
        %v2508 = vsub.f32 %v2444, 0.5
        %v2509 = vsub.f32 %v2445, 0.5
        %v2510 = vsub.f32 %v2446, 0.5
        %v2511 = vsub.f32 %v2447, 0.5
        %v2512 = vsub.f32 %v2448, 0.5
        %v2513 = vsub.f32 %v2449, 0.5
        %v2514 = vsub.f32 %v2450, 0.5
        %v2515 = vsub.f32 %v2451, 0.5
        %v2516 = vsub.f32 %v2452, 0.5
        %v2517 = vsub.f32 %v2453, 0.5
        %v2518 = vsub.f32 %v2454, 0.5
        %v2519 = vsub.f32 %v2455, 0.5
        %v2520 = vsub.f32 %v2456, 0.5
        %v2521 = vsub.f32 %v2457, 0.5
        %v2522 = vsub.f32 %v2458, 0.5
        %v2523 = vsub.f32 %v2459, 0.5
        %v2524 = vsub.f32 %v2460, 0.5
        %v2525 = vsub.f32 %v2461, 0.5
        %v2526 = vsub.f32 %v2462, 0.5
        %v2527 = vsub.f32 %v2463, 0.5
        %v2528 = vsub.f32 %v2464, 0.5
        %v2529 = vsub.f32 %v2465, 0.5
        %v2530 = vsub.f32 %v2466, 0.5
        %v2531 = vsub.f32 %v2467, 0.5
        %v2532 = vsub.f32 %v2468, 0.5
        %v2533 = vsub.f32 %v2469, 0.5
        %v2534 = vsub.f32 %v2470, 0.5
        %v2535 = vsub.f32 %v2471, 0.5
        %v2536 = vsub.f32 %v2472, 0.5
        %v2537 = vsub.f32 %v2473, 0.5
        %v2538 = vsub.f32 %v2474, 0.5
        %v2539 = vsub.f32 %v2475, 0.5
        %v2540 = vsub.f32 %v2476, 0.5
        %v2541 = vsub.f32 %v2477, 0.5
        %v2542 = vsub.f32 %v2478, 0.5
        %v2543 = vsub.f32 %v2479, 0.5
        %v2544 = vsub.f32 %v2480, 0.5
        %v2545 = vsub.f32 %v2481, 0.5
        %v2546 = vsub.f32 %v2482, 0.5
        %v2547 = vsub.f32 %v2483, 0.5
        %v2548 = vsub.f32 %v2484, 0.5
        %v2549 = vsub.f32 %v2485, 0.5
        %v2550 = vsub.f32 %v2486, 0.5
        %v2551 = vsub.f32 %v2487, 0.5
        %v2552 = vsub.f32 %v2488, 0.5
        %v2553 = vsub.f32 %v2489, 0.5
        %v2554 = vsub.f32 %v2490, 0.5
        %v2555 = vsub.f32 %v2491, 0.5
        %v2556 = vsub.f32 %v2492, 0.5
        %v2557 = vsub.f32 %v2493, 0.5
        %v2558 = vsub.f32 %v2494, 0.5
        %v2559 = vsub.f32 %v2495, 0.5
        %v2560 = vsub.f32 %v2496, 0.5
        %v2561 = vsub.f32 %v2497, 0.5
        %v2562 = vsub.f32 %v2498, 0.5
        %v2563 = vsub.f32 %v2499, 0.5
        %v2564 = vsub.f32 %v2500, 0.5
        %v2565 = vsub.f32 %v2501, 0.5
        %v2566 = vsub.f32 %v2502, 0.5
        %v2567 = vsub.f32 %v2503, 0.5
        %v2568 = vsub.f32 %v2504, 0.5
        %v2569 = vadd.f32 %v2505, %v2377
        %v2570 = vadd.f32 %v2506, %v2378
        %v2571 = vadd.f32 %v2507, %v2379
        %v2572 = vadd.f32 %v2508, %v2380
        %v2573 = vadd.f32 %v2509, %v2381
        %v2574 = vadd.f32 %v2510, %v2382
        %v2575 = vadd.f32 %v2511, %v2383
        %v2576 = vadd.f32 %v2512, %v2384
        %v2577 = vadd.f32 %v2513, %v2385
        %v2578 = vadd.f32 %v2514, %v2386
        %v2579 = vadd.f32 %v2515, %v2387
        %v2580 = vadd.f32 %v2516, %v2388
        %v2581 = vadd.f32 %v2517, %v2389
        %v2582 = vadd.f32 %v2518, %v2390
        %v2583 = vadd.f32 %v2519, %v2391
        %v2584 = vadd.f32 %v2520, %v2392
        %v2585 = vadd.f32 %v2521, %v2393
        %v2586 = vadd.f32 %v2522, %v2394
        %v2587 = vadd.f32 %v2523, %v2395
        %v2588 = vadd.f32 %v2524, %v2396
        %v2589 = vadd.f32 %v2525, %v2397
        %v2590 = vadd.f32 %v2526, %v2398
        %v2591 = vadd.f32 %v2527, %v2399
        %v2592 = vadd.f32 %v2528, %v2400
        %v2593 = vadd.f32 %v2529, %v2401
        %v2594 = vadd.f32 %v2530, %v2402
        %v2595 = vadd.f32 %v2531, %v2403
        %v2596 = vadd.f32 %v2532, %v2404
        %v2597 = vadd.f32 %v2533, %v2405
        %v2598 = vadd.f32 %v2534, %v2406
        %v2599 = vadd.f32 %v2535, %v2407
        %v2600 = vadd.f32 %v2536, %v2408
        %v2601 = vadd.f32 %v2537, %v2409
        %v2602 = vadd.f32 %v2538, %v2410
        %v2603 = vadd.f32 %v2539, %v2411
        %v2604 = vadd.f32 %v2540, %v2412
        %v2605 = vadd.f32 %v2541, %v2413
        %v2606 = vadd.f32 %v2542, %v2414
        %v2607 = vadd.f32 %v2543, %v2415
        %v2608 = vadd.f32 %v2544, %v2416
        %v2609 = vadd.f32 %v2545, %v2417
        %v2610 = vadd.f32 %v2546, %v2418
        %v2611 = vadd.f32 %v2547, %v2419
        %v2612 = vadd.f32 %v2548, %v2420
        %v2613 = vadd.f32 %v2549, %v2421
        %v2614 = vadd.f32 %v2550, %v2422
        %v2615 = vadd.f32 %v2551, %v2423
        %v2616 = vadd.f32 %v2552, %v2424
        %v2617 = vadd.f32 %v2553, %v2425
        %v2618 = vadd.f32 %v2554, %v2426
        %v2619 = vadd.f32 %v2555, %v2427
        %v2620 = vadd.f32 %v2556, %v2428
        %v2621 = vadd.f32 %v2557, %v2429
        %v2622 = vadd.f32 %v2558, %v2430
        %v2623 = vadd.f32 %v2559, %v2431
        %v2624 = vadd.f32 %v2560, %v2432
        %v2625 = vadd.f32 %v2561, %v2433
        %v2626 = vadd.f32 %v2562, %v2434
        %v2627 = vadd.f32 %v2563, %v2435
        %v2628 = vadd.f32 %v2564, %v2436
        %v2629 = vadd.f32 %v2565, %v2437
        %v2630 = vadd.f32 %v2566, %v2438
        %v2631 = vadd.f32 %v2567, %v2439
        %v2632 = vadd.f32 %v2568, %v2440
        %v2633 = vmul.f32 %v2569, 8.0
        %v2634 = vmul.f32 %v2570, 8.0
        %v2635 = vmul.f32 %v2571, 8.0
        %v2636 = vmul.f32 %v2572, 8.0
        %v2637 = vmul.f32 %v2573, 8.0
        %v2638 = vmul.f32 %v2574, 8.0
        %v2639 = vmul.f32 %v2575, 8.0
        %v2640 = vmul.f32 %v2576, 8.0
        %v2641 = vmul.f32 %v2577, 8.0
        %v2642 = vmul.f32 %v2578, 8.0
        %v2643 = vmul.f32 %v2579, 8.0
        %v2644 = vmul.f32 %v2580, 8.0
        %v2645 = vmul.f32 %v2581, 8.0
        %v2646 = vmul.f32 %v2582, 8.0
        %v2647 = vmul.f32 %v2583, 8.0
        %v2648 = vmul.f32 %v2584, 8.0
        %v2649 = vmul.f32 %v2585, 8.0
        %v2650 = vmul.f32 %v2586, 8.0
        %v2651 = vmul.f32 %v2587, 8.0
        %v2652 = vmul.f32 %v2588, 8.0
        %v2653 = vmul.f32 %v2589, 8.0
        %v2654 = vmul.f32 %v2590, 8.0
        %v2655 = vmul.f32 %v2591, 8.0
        %v2656 = vmul.f32 %v2592, 8.0
        %v2657 = vmul.f32 %v2593, 8.0
        %v2658 = vmul.f32 %v2594, 8.0
        %v2659 = vmul.f32 %v2595, 8.0
        %v2660 = vmul.f32 %v2596, 8.0
        %v2661 = vmul.f32 %v2597, 8.0
        %v2662 = vmul.f32 %v2598, 8.0
        %v2663 = vmul.f32 %v2599, 8.0
        %v2664 = vmul.f32 %v2600, 8.0
        %v2665 = vmul.f32 %v2601, 8.0
        %v2666 = vmul.f32 %v2602, 8.0
        %v2667 = vmul.f32 %v2603, 8.0
        %v2668 = vmul.f32 %v2604, 8.0
        %v2669 = vmul.f32 %v2605, 8.0
        %v2670 = vmul.f32 %v2606, 8.0
        %v2671 = vmul.f32 %v2607, 8.0
        %v2672 = vmul.f32 %v2608, 8.0
        %v2673 = vmul.f32 %v2609, 8.0
        %v2674 = vmul.f32 %v2610, 8.0
        %v2675 = vmul.f32 %v2611, 8.0
        %v2676 = vmul.f32 %v2612, 8.0
        %v2677 = vmul.f32 %v2613, 8.0
        %v2678 = vmul.f32 %v2614, 8.0
        %v2679 = vmul.f32 %v2615, 8.0
        %v2680 = vmul.f32 %v2616, 8.0
        %v2681 = vmul.f32 %v2617, 8.0
        %v2682 = vmul.f32 %v2618, 8.0
        %v2683 = vmul.f32 %v2619, 8.0
        %v2684 = vmul.f32 %v2620, 8.0
        %v2685 = vmul.f32 %v2621, 8.0
        %v2686 = vmul.f32 %v2622, 8.0
        %v2687 = vmul.f32 %v2623, 8.0
        %v2688 = vmul.f32 %v2624, 8.0
        %v2689 = vmul.f32 %v2625, 8.0
        %v2690 = vmul.f32 %v2626, 8.0
        %v2691 = vmul.f32 %v2627, 8.0
        %v2692 = vmul.f32 %v2628, 8.0
        %v2693 = vmul.f32 %v2629, 8.0
        %v2694 = vmul.f32 %v2630, 8.0
        %v2695 = vmul.f32 %v2631, 8.0
        %v2696 = vmul.f32 %v2632, 8.0
        %v2697 = vmul.f32 %v2441, %v2441
        %v2698 = vmul.f32 %v2442, %v2442
        %v2699 = vmul.f32 %v2443, %v2443
        %v2700 = vmul.f32 %v2444, %v2444
        %v2701 = vmul.f32 %v2445, %v2445
        %v2702 = vmul.f32 %v2446, %v2446
        %v2703 = vmul.f32 %v2447, %v2447
        %v2704 = vmul.f32 %v2448, %v2448
        %v2705 = vmul.f32 %v2449, %v2449
        %v2706 = vmul.f32 %v2450, %v2450
        %v2707 = vmul.f32 %v2451, %v2451
        %v2708 = vmul.f32 %v2452, %v2452
        %v2709 = vmul.f32 %v2453, %v2453
        %v2710 = vmul.f32 %v2454, %v2454
        %v2711 = vmul.f32 %v2455, %v2455
        %v2712 = vmul.f32 %v2456, %v2456
        %v2713 = vmul.f32 %v2457, %v2457
        %v2714 = vmul.f32 %v2458, %v2458
        %v2715 = vmul.f32 %v2459, %v2459
        %v2716 = vmul.f32 %v2460, %v2460
        %v2717 = vmul.f32 %v2461, %v2461
        %v2718 = vmul.f32 %v2462, %v2462
        %v2719 = vmul.f32 %v2463, %v2463
        %v2720 = vmul.f32 %v2464, %v2464
        %v2721 = vmul.f32 %v2465, %v2465
        %v2722 = vmul.f32 %v2466, %v2466
        %v2723 = vmul.f32 %v2467, %v2467
        %v2724 = vmul.f32 %v2468, %v2468
        %v2725 = vmul.f32 %v2469, %v2469
        %v2726 = vmul.f32 %v2470, %v2470
        %v2727 = vmul.f32 %v2471, %v2471
        %v2728 = vmul.f32 %v2472, %v2472
        %v2729 = vmul.f32 %v2473, %v2473
        %v2730 = vmul.f32 %v2474, %v2474
        %v2731 = vmul.f32 %v2475, %v2475
        %v2732 = vmul.f32 %v2476, %v2476
        %v2733 = vmul.f32 %v2477, %v2477
        %v2734 = vmul.f32 %v2478, %v2478
        %v2735 = vmul.f32 %v2479, %v2479
        %v2736 = vmul.f32 %v2480, %v2480
        %v2737 = vmul.f32 %v2481, %v2481
        %v2738 = vmul.f32 %v2482, %v2482
        %v2739 = vmul.f32 %v2483, %v2483
        %v2740 = vmul.f32 %v2484, %v2484
        %v2741 = vmul.f32 %v2485, %v2485
        %v2742 = vmul.f32 %v2486, %v2486
        %v2743 = vmul.f32 %v2487, %v2487
        %v2744 = vmul.f32 %v2488, %v2488
        %v2745 = vmul.f32 %v2489, %v2489
        %v2746 = vmul.f32 %v2490, %v2490
        %v2747 = vmul.f32 %v2491, %v2491
        %v2748 = vmul.f32 %v2492, %v2492
        %v2749 = vmul.f32 %v2493, %v2493
        %v2750 = vmul.f32 %v2494, %v2494
        %v2751 = vmul.f32 %v2495, %v2495
        %v2752 = vmul.f32 %v2496, %v2496
        %v2753 = vmul.f32 %v2497, %v2497
        %v2754 = vmul.f32 %v2498, %v2498
        %v2755 = vmul.f32 %v2499, %v2499
        %v2756 = vmul.f32 %v2500, %v2500
        %v2757 = vmul.f32 %v2501, %v2501
        %v2758 = vmul.f32 %v2502, %v2502
        %v2759 = vmul.f32 %v2503, %v2503
        %v2760 = vmul.f32 %v2504, %v2504
        %v2761 = vld [vmem:[%s3] sm:$0x3]
        %v2763 = vperm.slane %v2761, 0
        %v2764 = vperm.slane %v2761, 1
        %v2767 = vmul.f32 %v2697, %v2763
        %v2768 = vmul.f32 %v2698, %v2764
        %v2769 = vmul.f32 %v2699, %v2763
        %v2770 = vmul.f32 %v2700, %v2764
        %v2771 = vmul.f32 %v2701, %v2763
        %v2772 = vmul.f32 %v2702, %v2764
        %v2773 = vmul.f32 %v2703, %v2763
        %v2774 = vmul.f32 %v2704, %v2764
        %v2775 = vmul.f32 %v2705, %v2763
        %v2776 = vmul.f32 %v2706, %v2764
        %v2777 = vmul.f32 %v2707, %v2763
        %v2778 = vmul.f32 %v2708, %v2764
        %v2779 = vmul.f32 %v2709, %v2763
        %v2780 = vmul.f32 %v2710, %v2764
        %v2781 = vmul.f32 %v2711, %v2763
        %v2782 = vmul.f32 %v2712, %v2764
        %v2783 = vmul.f32 %v2713, %v2763
        %v2784 = vmul.f32 %v2714, %v2764
        %v2785 = vmul.f32 %v2715, %v2763
        %v2786 = vmul.f32 %v2716, %v2764
        %v2787 = vmul.f32 %v2717, %v2763
        %v2788 = vmul.f32 %v2718, %v2764
        %v2789 = vmul.f32 %v2719, %v2763
        %v2790 = vmul.f32 %v2720, %v2764
        %v2791 = vmul.f32 %v2721, %v2763
        %v2792 = vmul.f32 %v2722, %v2764
        %v2793 = vmul.f32 %v2723, %v2763
        %v2794 = vmul.f32 %v2724, %v2764
        %v2795 = vmul.f32 %v2725, %v2763
        %v2796 = vmul.f32 %v2726, %v2764
        %v2797 = vmul.f32 %v2727, %v2763
        %v2798 = vmul.f32 %v2728, %v2764
        %v2799 = vmul.f32 %v2729, %v2763
        %v2800 = vmul.f32 %v2730, %v2764
        %v2801 = vmul.f32 %v2731, %v2763
        %v2802 = vmul.f32 %v2732, %v2764
        %v2803 = vmul.f32 %v2733, %v2763
        %v2804 = vmul.f32 %v2734, %v2764
        %v2805 = vmul.f32 %v2735, %v2763
        %v2806 = vmul.f32 %v2736, %v2764
        %v2807 = vmul.f32 %v2737, %v2763
        %v2808 = vmul.f32 %v2738, %v2764
        %v2809 = vmul.f32 %v2739, %v2763
        %v2810 = vmul.f32 %v2740, %v2764
        %v2811 = vmul.f32 %v2741, %v2763
        %v2812 = vmul.f32 %v2742, %v2764
        %v2813 = vmul.f32 %v2743, %v2763
        %v2814 = vmul.f32 %v2744, %v2764
        %v2815 = vmul.f32 %v2745, %v2763
        %v2816 = vmul.f32 %v2746, %v2764
        %v2817 = vmul.f32 %v2747, %v2763
        %v2818 = vmul.f32 %v2748, %v2764
        %v2819 = vmul.f32 %v2749, %v2763
        %v2820 = vmul.f32 %v2750, %v2764
        %v2821 = vmul.f32 %v2751, %v2763
        %v2822 = vmul.f32 %v2752, %v2764
        %v2823 = vmul.f32 %v2753, %v2763
        %v2824 = vmul.f32 %v2754, %v2764
        %v2825 = vmul.f32 %v2755, %v2763
        %v2826 = vmul.f32 %v2756, %v2764
        %v2827 = vmul.f32 %v2757, %v2763
        %v2828 = vmul.f32 %v2758, %v2764
        %v2829 = vmul.f32 %v2759, %v2763
        %v2830 = vmul.f32 %v2760, %v2764
        %v2831 = vld [vmem:[%s4] sm:$0x3]
        %v2832 = vsub.f32 %v2633, %v1803
        %v2833 = vsub.f32 %v2634, %v1804
        %v2834 = vsub.f32 %v2635, %v1805
        %v2835 = vsub.f32 %v2636, %v1806
        %v2836 = vsub.f32 %v2637, %v1807
        %v2837 = vsub.f32 %v2638, %v1808
        %v2838 = vsub.f32 %v2639, %v1809
        %v2839 = vsub.f32 %v2640, %v1810
        %v2840 = vsub.f32 %v2641, %v1811
        %v2841 = vsub.f32 %v2642, %v1812
        %v2842 = vsub.f32 %v2643, %v1813
        %v2843 = vsub.f32 %v2644, %v1814
        %v2844 = vsub.f32 %v2645, %v1815
        %v2845 = vsub.f32 %v2646, %v1816
        %v2846 = vsub.f32 %v2647, %v1817
        %v2847 = vsub.f32 %v2648, %v1818
        %v2848 = vsub.f32 %v2649, %v1819
        %v2849 = vsub.f32 %v2650, %v1820
        %v2850 = vsub.f32 %v2651, %v1821
        %v2851 = vsub.f32 %v2652, %v1822
        %v2852 = vsub.f32 %v2653, %v1823
        %v2853 = vsub.f32 %v2654, %v1824
        %v2854 = vsub.f32 %v2655, %v1825
        %v2855 = vsub.f32 %v2656, %v1826
        %v2856 = vsub.f32 %v2657, %v1827
        %v2857 = vsub.f32 %v2658, %v1828
        %v2858 = vsub.f32 %v2659, %v1829
        %v2859 = vsub.f32 %v2660, %v1830
        %v2860 = vsub.f32 %v2661, %v1831
        %v2861 = vsub.f32 %v2662, %v1832
        %v2862 = vsub.f32 %v2663, %v1833
        %v2863 = vsub.f32 %v2664, %v1834
        %v2864 = vsub.f32 %v2665, %v1835
        %v2865 = vsub.f32 %v2666, %v1836
        %v2866 = vsub.f32 %v2667, %v1837
        %v2867 = vsub.f32 %v2668, %v1838
        %v2868 = vsub.f32 %v2669, %v1839
        %v2869 = vsub.f32 %v2670, %v1840
        %v2870 = vsub.f32 %v2671, %v1841
        %v2871 = vsub.f32 %v2672, %v1842
        %v2872 = vsub.f32 %v2673, %v1843
        %v2873 = vsub.f32 %v2674, %v1844
        %v2874 = vsub.f32 %v2675, %v1845
        %v2875 = vsub.f32 %v2676, %v1846
        %v2876 = vsub.f32 %v2677, %v1847
        %v2877 = vsub.f32 %v2678, %v1848
        %v2878 = vsub.f32 %v2679, %v1849
        %v2879 = vsub.f32 %v2680, %v1850
        %v2880 = vsub.f32 %v2681, %v1851
        %v2881 = vsub.f32 %v2682, %v1852
        %v2882 = vsub.f32 %v2683, %v1853
        %v2883 = vsub.f32 %v2684, %v1854
        %v2884 = vsub.f32 %v2685, %v1855
        %v2885 = vsub.f32 %v2686, %v1856
        %v2886 = vsub.f32 %v2687, %v1857
        %v2887 = vsub.f32 %v2688, %v1858
        %v2888 = vsub.f32 %v2689, %v1859
        %v2889 = vsub.f32 %v2690, %v1860
        %v2890 = vsub.f32 %v2691, %v1861
        %v2891 = vsub.f32 %v2692, %v1862
        %v2892 = vsub.f32 %v2693, %v1863
        %v2893 = vsub.f32 %v2694, %v1864
        %v2894 = vsub.f32 %v2695, %v1865
        %v2895 = vsub.f32 %v2696, %v1866
        %v2897 = vperm.slane %v2831, 0
        %v2898 = vperm.slane %v2831, 1
        %v2901 = vmul.f32 %v2897, %v2832
        %v2902 = vmul.f32 %v2898, %v2833
        %v2903 = vmul.f32 %v2897, %v2834
        %v2904 = vmul.f32 %v2898, %v2835
        %v2905 = vmul.f32 %v2897, %v2836
        %v2906 = vmul.f32 %v2898, %v2837
        %v2907 = vmul.f32 %v2897, %v2838
        %v2908 = vmul.f32 %v2898, %v2839
        %v2909 = vmul.f32 %v2897, %v2840
        %v2910 = vmul.f32 %v2898, %v2841
        %v2911 = vmul.f32 %v2897, %v2842
        %v2912 = vmul.f32 %v2898, %v2843
        %v2913 = vmul.f32 %v2897, %v2844
        %v2914 = vmul.f32 %v2898, %v2845
        %v2915 = vmul.f32 %v2897, %v2846
        %v2916 = vmul.f32 %v2898, %v2847
        %v2917 = vmul.f32 %v2897, %v2848
        %v2918 = vmul.f32 %v2898, %v2849
        %v2919 = vmul.f32 %v2897, %v2850
        %v2920 = vmul.f32 %v2898, %v2851
        %v2921 = vmul.f32 %v2897, %v2852
        %v2922 = vmul.f32 %v2898, %v2853
        %v2923 = vmul.f32 %v2897, %v2854
        %v2924 = vmul.f32 %v2898, %v2855
        %v2925 = vmul.f32 %v2897, %v2856
        %v2926 = vmul.f32 %v2898, %v2857
        %v2927 = vmul.f32 %v2897, %v2858
        %v2928 = vmul.f32 %v2898, %v2859
        %v2929 = vmul.f32 %v2897, %v2860
        %v2930 = vmul.f32 %v2898, %v2861
        %v2931 = vmul.f32 %v2897, %v2862
        %v2932 = vmul.f32 %v2898, %v2863
        %v2933 = vmul.f32 %v2897, %v2864
        %v2934 = vmul.f32 %v2898, %v2865
        %v2935 = vmul.f32 %v2897, %v2866
        %v2936 = vmul.f32 %v2898, %v2867
        %v2937 = vmul.f32 %v2897, %v2868
        %v2938 = vmul.f32 %v2898, %v2869
        %v2939 = vmul.f32 %v2897, %v2870
        %v2940 = vmul.f32 %v2898, %v2871
        %v2941 = vmul.f32 %v2897, %v2872
        %v2942 = vmul.f32 %v2898, %v2873
        %v2943 = vmul.f32 %v2897, %v2874
        %v2944 = vmul.f32 %v2898, %v2875
        %v2945 = vmul.f32 %v2897, %v2876
        %v2946 = vmul.f32 %v2898, %v2877
        %v2947 = vmul.f32 %v2897, %v2878
        %v2948 = vmul.f32 %v2898, %v2879
        %v2949 = vmul.f32 %v2897, %v2880
        %v2950 = vmul.f32 %v2898, %v2881
        %v2951 = vmul.f32 %v2897, %v2882
        %v2952 = vmul.f32 %v2898, %v2883
        %v2953 = vmul.f32 %v2897, %v2884
        %v2954 = vmul.f32 %v2898, %v2885
        %v2955 = vmul.f32 %v2897, %v2886
        %v2956 = vmul.f32 %v2898, %v2887
        %v2957 = vmul.f32 %v2897, %v2888
        %v2958 = vmul.f32 %v2898, %v2889
        %v2959 = vmul.f32 %v2897, %v2890
        %v2960 = vmul.f32 %v2898, %v2891
        %v2961 = vmul.f32 %v2897, %v2892
        %v2962 = vmul.f32 %v2898, %v2893
        %v2963 = vmul.f32 %v2897, %v2894
        %v2964 = vmul.f32 %v2898, %v2895
        %v2965 = vadd.f32 %v1803, %v2901
        %v2966 = vadd.f32 %v1804, %v2902
        %v2967 = vadd.f32 %v1805, %v2903
        %v2968 = vadd.f32 %v1806, %v2904
        %v2969 = vadd.f32 %v1807, %v2905
        %v2970 = vadd.f32 %v1808, %v2906
        %v2971 = vadd.f32 %v1809, %v2907
        %v2972 = vadd.f32 %v1810, %v2908
        %v2973 = vadd.f32 %v1811, %v2909
        %v2974 = vadd.f32 %v1812, %v2910
        %v2975 = vadd.f32 %v1813, %v2911
        %v2976 = vadd.f32 %v1814, %v2912
        %v2977 = vadd.f32 %v1815, %v2913
        %v2978 = vadd.f32 %v1816, %v2914
        %v2979 = vadd.f32 %v1817, %v2915
        %v2980 = vadd.f32 %v1818, %v2916
        %v2981 = vadd.f32 %v1819, %v2917
        %v2982 = vadd.f32 %v1820, %v2918
        %v2983 = vadd.f32 %v1821, %v2919
        %v2984 = vadd.f32 %v1822, %v2920
        %v2985 = vadd.f32 %v1823, %v2921
        %v2986 = vadd.f32 %v1824, %v2922
        %v2987 = vadd.f32 %v1825, %v2923
        %v2988 = vadd.f32 %v1826, %v2924
        %v2989 = vadd.f32 %v1827, %v2925
        %v2990 = vadd.f32 %v1828, %v2926
        %v2991 = vadd.f32 %v1829, %v2927
        %v2992 = vadd.f32 %v1830, %v2928
        %v2993 = vadd.f32 %v1831, %v2929
        %v2994 = vadd.f32 %v1832, %v2930
        %v2995 = vadd.f32 %v1833, %v2931
        %v2996 = vadd.f32 %v1834, %v2932
        %v2997 = vadd.f32 %v1835, %v2933
        %v2998 = vadd.f32 %v1836, %v2934
        %v2999 = vadd.f32 %v1837, %v2935
        %v3000 = vadd.f32 %v1838, %v2936
        %v3001 = vadd.f32 %v1839, %v2937
        %v3002 = vadd.f32 %v1840, %v2938
        %v3003 = vadd.f32 %v1841, %v2939
        %v3004 = vadd.f32 %v1842, %v2940
        %v3005 = vadd.f32 %v1843, %v2941
        %v3006 = vadd.f32 %v1844, %v2942
        %v3007 = vadd.f32 %v1845, %v2943
        %v3008 = vadd.f32 %v1846, %v2944
        %v3009 = vadd.f32 %v1847, %v2945
        %v3010 = vadd.f32 %v1848, %v2946
        %v3011 = vadd.f32 %v1849, %v2947
        %v3012 = vadd.f32 %v1850, %v2948
        %v3013 = vadd.f32 %v1851, %v2949
        %v3014 = vadd.f32 %v1852, %v2950
        %v3015 = vadd.f32 %v1853, %v2951
        %v3016 = vadd.f32 %v1854, %v2952
        %v3017 = vadd.f32 %v1855, %v2953
        %v3018 = vadd.f32 %v1856, %v2954
        %v3019 = vadd.f32 %v1857, %v2955
        %v3020 = vadd.f32 %v1858, %v2956
        %v3021 = vadd.f32 %v1859, %v2957
        %v3022 = vadd.f32 %v1860, %v2958
        %v3023 = vadd.f32 %v1861, %v2959
        %v3024 = vadd.f32 %v1862, %v2960
        %v3025 = vadd.f32 %v1863, %v2961
        %v3026 = vadd.f32 %v1864, %v2962
        %v3027 = vadd.f32 %v1865, %v2963
        %v3028 = vadd.f32 %v1866, %v2964
        %v3029 = vld [vmem:[%s5] sm:$0x3]
        %v3030 = vsub.f32 %v2767, %v1803
        %v3031 = vsub.f32 %v2768, %v1804
        %v3032 = vsub.f32 %v2769, %v1805
        %v3033 = vsub.f32 %v2770, %v1806
        %v3034 = vsub.f32 %v2771, %v1807
        %v3035 = vsub.f32 %v2772, %v1808
        %v3036 = vsub.f32 %v2773, %v1809
        %v3037 = vsub.f32 %v2774, %v1810
        %v3038 = vsub.f32 %v2775, %v1811
        %v3039 = vsub.f32 %v2776, %v1812
        %v3040 = vsub.f32 %v2777, %v1813
        %v3041 = vsub.f32 %v2778, %v1814
        %v3042 = vsub.f32 %v2779, %v1815
        %v3043 = vsub.f32 %v2780, %v1816
        %v3044 = vsub.f32 %v2781, %v1817
        %v3045 = vsub.f32 %v2782, %v1818
        %v3046 = vsub.f32 %v2783, %v1819
        %v3047 = vsub.f32 %v2784, %v1820
        %v3048 = vsub.f32 %v2785, %v1821
        %v3049 = vsub.f32 %v2786, %v1822
        %v3050 = vsub.f32 %v2787, %v1823
        %v3051 = vsub.f32 %v2788, %v1824
        %v3052 = vsub.f32 %v2789, %v1825
        %v3053 = vsub.f32 %v2790, %v1826
        %v3054 = vsub.f32 %v2791, %v1827
        %v3055 = vsub.f32 %v2792, %v1828
        %v3056 = vsub.f32 %v2793, %v1829
        %v3057 = vsub.f32 %v2794, %v1830
        %v3058 = vsub.f32 %v2795, %v1831
        %v3059 = vsub.f32 %v2796, %v1832
        %v3060 = vsub.f32 %v2797, %v1833
        %v3061 = vsub.f32 %v2798, %v1834
        %v3062 = vsub.f32 %v2799, %v1835
        %v3063 = vsub.f32 %v2800, %v1836
        %v3064 = vsub.f32 %v2801, %v1837
        %v3065 = vsub.f32 %v2802, %v1838
        %v3066 = vsub.f32 %v2803, %v1839
        %v3067 = vsub.f32 %v2804, %v1840
        %v3068 = vsub.f32 %v2805, %v1841
        %v3069 = vsub.f32 %v2806, %v1842
        %v3070 = vsub.f32 %v2807, %v1843
        %v3071 = vsub.f32 %v2808, %v1844
        %v3072 = vsub.f32 %v2809, %v1845
        %v3073 = vsub.f32 %v2810, %v1846
        %v3074 = vsub.f32 %v2811, %v1847
        %v3075 = vsub.f32 %v2812, %v1848
        %v3076 = vsub.f32 %v2813, %v1849
        %v3077 = vsub.f32 %v2814, %v1850
        %v3078 = vsub.f32 %v2815, %v1851
        %v3079 = vsub.f32 %v2816, %v1852
        %v3080 = vsub.f32 %v2817, %v1853
        %v3081 = vsub.f32 %v2818, %v1854
        %v3082 = vsub.f32 %v2819, %v1855
        %v3083 = vsub.f32 %v2820, %v1856
        %v3084 = vsub.f32 %v2821, %v1857
        %v3085 = vsub.f32 %v2822, %v1858
        %v3086 = vsub.f32 %v2823, %v1859
        %v3087 = vsub.f32 %v2824, %v1860
        %v3088 = vsub.f32 %v2825, %v1861
        %v3089 = vsub.f32 %v2826, %v1862
        %v3090 = vsub.f32 %v2827, %v1863
        %v3091 = vsub.f32 %v2828, %v1864
        %v3092 = vsub.f32 %v2829, %v1865
        %v3093 = vsub.f32 %v2830, %v1866
        %v3095 = vperm.slane %v3029, 0
        %v3096 = vperm.slane %v3029, 1
        %v3099 = vmul.f32 %v3095, %v3030
        %v3100 = vmul.f32 %v3096, %v3031
        %v3101 = vmul.f32 %v3095, %v3032
        %v3102 = vmul.f32 %v3096, %v3033
        %v3103 = vmul.f32 %v3095, %v3034
        %v3104 = vmul.f32 %v3096, %v3035
        %v3105 = vmul.f32 %v3095, %v3036
        %v3106 = vmul.f32 %v3096, %v3037
        %v3107 = vmul.f32 %v3095, %v3038
        %v3108 = vmul.f32 %v3096, %v3039
        %v3109 = vmul.f32 %v3095, %v3040
        %v3110 = vmul.f32 %v3096, %v3041
        %v3111 = vmul.f32 %v3095, %v3042
        %v3112 = vmul.f32 %v3096, %v3043
        %v3113 = vmul.f32 %v3095, %v3044
        %v3114 = vmul.f32 %v3096, %v3045
        %v3115 = vmul.f32 %v3095, %v3046
        %v3116 = vmul.f32 %v3096, %v3047
        %v3117 = vmul.f32 %v3095, %v3048
        %v3118 = vmul.f32 %v3096, %v3049
        %v3119 = vmul.f32 %v3095, %v3050
        %v3120 = vmul.f32 %v3096, %v3051
        %v3121 = vmul.f32 %v3095, %v3052
        %v3122 = vmul.f32 %v3096, %v3053
        %v3123 = vmul.f32 %v3095, %v3054
        %v3124 = vmul.f32 %v3096, %v3055
        %v3125 = vmul.f32 %v3095, %v3056
        %v3126 = vmul.f32 %v3096, %v3057
        %v3127 = vmul.f32 %v3095, %v3058
        %v3128 = vmul.f32 %v3096, %v3059
        %v3129 = vmul.f32 %v3095, %v3060
        %v3130 = vmul.f32 %v3096, %v3061
        %v3131 = vmul.f32 %v3095, %v3062
        %v3132 = vmul.f32 %v3096, %v3063
        %v3133 = vmul.f32 %v3095, %v3064
        %v3134 = vmul.f32 %v3096, %v3065
        %v3135 = vmul.f32 %v3095, %v3066
        %v3136 = vmul.f32 %v3096, %v3067
        %v3137 = vmul.f32 %v3095, %v3068
        %v3138 = vmul.f32 %v3096, %v3069
        %v3139 = vmul.f32 %v3095, %v3070
        %v3140 = vmul.f32 %v3096, %v3071
        %v3141 = vmul.f32 %v3095, %v3072
        %v3142 = vmul.f32 %v3096, %v3073
        %v3143 = vmul.f32 %v3095, %v3074
        %v3144 = vmul.f32 %v3096, %v3075
        %v3145 = vmul.f32 %v3095, %v3076
        %v3146 = vmul.f32 %v3096, %v3077
        %v3147 = vmul.f32 %v3095, %v3078
        %v3148 = vmul.f32 %v3096, %v3079
        %v3149 = vmul.f32 %v3095, %v3080
        %v3150 = vmul.f32 %v3096, %v3081
        %v3151 = vmul.f32 %v3095, %v3082
        %v3152 = vmul.f32 %v3096, %v3083
        %v3153 = vmul.f32 %v3095, %v3084
        %v3154 = vmul.f32 %v3096, %v3085
        %v3155 = vmul.f32 %v3095, %v3086
        %v3156 = vmul.f32 %v3096, %v3087
        %v3157 = vmul.f32 %v3095, %v3088
        %v3158 = vmul.f32 %v3096, %v3089
        %v3159 = vmul.f32 %v3095, %v3090
        %v3160 = vmul.f32 %v3096, %v3091
        %v3161 = vmul.f32 %v3095, %v3092
        %v3162 = vmul.f32 %v3096, %v3093
        %v3163 = vadd.f32 %v2965, %v3099
        %v3164 = vadd.f32 %v2966, %v3100
        %v3165 = vadd.f32 %v2967, %v3101
        %v3166 = vadd.f32 %v2968, %v3102
        %v3167 = vadd.f32 %v2969, %v3103
        %v3168 = vadd.f32 %v2970, %v3104
        %v3169 = vadd.f32 %v2971, %v3105
        %v3170 = vadd.f32 %v2972, %v3106
        %v3171 = vadd.f32 %v2973, %v3107
        %v3172 = vadd.f32 %v2974, %v3108
        %v3173 = vadd.f32 %v2975, %v3109
        %v3174 = vadd.f32 %v2976, %v3110
        %v3175 = vadd.f32 %v2977, %v3111
        %v3176 = vadd.f32 %v2978, %v3112
        %v3177 = vadd.f32 %v2979, %v3113
        %v3178 = vadd.f32 %v2980, %v3114
        %v3179 = vadd.f32 %v2981, %v3115
        %v3180 = vadd.f32 %v2982, %v3116
        %v3181 = vadd.f32 %v2983, %v3117
        %v3182 = vadd.f32 %v2984, %v3118
        %v3183 = vadd.f32 %v2985, %v3119
        %v3184 = vadd.f32 %v2986, %v3120
        %v3185 = vadd.f32 %v2987, %v3121
        %v3186 = vadd.f32 %v2988, %v3122
        %v3187 = vadd.f32 %v2989, %v3123
        %v3188 = vadd.f32 %v2990, %v3124
        %v3189 = vadd.f32 %v2991, %v3125
        %v3190 = vadd.f32 %v2992, %v3126
        %v3191 = vadd.f32 %v2993, %v3127
        %v3192 = vadd.f32 %v2994, %v3128
        %v3193 = vadd.f32 %v2995, %v3129
        %v3194 = vadd.f32 %v2996, %v3130
        %v3195 = vadd.f32 %v2997, %v3131
        %v3196 = vadd.f32 %v2998, %v3132
        %v3197 = vadd.f32 %v2999, %v3133
        %v3198 = vadd.f32 %v3000, %v3134
        %v3199 = vadd.f32 %v3001, %v3135
        %v3200 = vadd.f32 %v3002, %v3136
        %v3201 = vadd.f32 %v3003, %v3137
        %v3202 = vadd.f32 %v3004, %v3138
        %v3203 = vadd.f32 %v3005, %v3139
        %v3204 = vadd.f32 %v3006, %v3140
        %v3205 = vadd.f32 %v3007, %v3141
        %v3206 = vadd.f32 %v3008, %v3142
        %v3207 = vadd.f32 %v3009, %v3143
        %v3208 = vadd.f32 %v3010, %v3144
        %v3209 = vadd.f32 %v3011, %v3145
        %v3210 = vadd.f32 %v3012, %v3146
        %v3211 = vadd.f32 %v3013, %v3147
        %v3212 = vadd.f32 %v3014, %v3148
        %v3213 = vadd.f32 %v3015, %v3149
        %v3214 = vadd.f32 %v3016, %v3150
        %v3215 = vadd.f32 %v3017, %v3151
        %v3216 = vadd.f32 %v3018, %v3152
        %v3217 = vadd.f32 %v3019, %v3153
        %v3218 = vadd.f32 %v3020, %v3154
        %v3219 = vadd.f32 %v3021, %v3155
        %v3220 = vadd.f32 %v3022, %v3156
        %v3221 = vadd.f32 %v3023, %v3157
        %v3222 = vadd.f32 %v3024, %v3158
        %v3223 = vadd.f32 %v3025, %v3159
        %v3224 = vadd.f32 %v3026, %v3160
        %v3225 = vadd.f32 %v3027, %v3161
        %v3226 = vadd.f32 %v3028, %v3162
        %3227 = vst [vmem:[%s339] sm:$0xff] %v3163
        %3228 = vst [vmem:[%s339 + $0x8] sm:$0xff] %v3164
        %3229 = vst [vmem:[%s339 + $0x10] sm:$0xff] %v3165
        %3230 = vst [vmem:[%s339 + $0x18] sm:$0xff] %v3166
        %3231 = vst [vmem:[%s339 + $0x20] sm:$0xff] %v3167
        %3232 = vst [vmem:[%s339 + $0x28] sm:$0xff] %v3168
        %3233 = vst [vmem:[%s339 + $0x30] sm:$0xff] %v3169
        %3234 = vst [vmem:[%s339 + $0x38] sm:$0xff] %v3170
        %3235 = vst [vmem:[%s339 + $0x40] sm:$0xff] %v3171
        %3236 = vst [vmem:[%s339 + $0x48] sm:$0xff] %v3172
        %3237 = vst [vmem:[%s339 + $0x50] sm:$0xff] %v3173
        %3238 = vst [vmem:[%s339 + $0x58] sm:$0xff] %v3174
        %3239 = vst [vmem:[%s339 + $0x60] sm:$0xff] %v3175
        %3240 = vst [vmem:[%s339 + $0x68] sm:$0xff] %v3176
        %3241 = vst [vmem:[%s339 + $0x70] sm:$0xff] %v3177
        %3242 = vst [vmem:[%s339 + $0x78] sm:$0xff] %v3178
        %3243 = vst [vmem:[%s339 + $0x80] sm:$0xff] %v3179
        %3244 = vst [vmem:[%s339 + $0x88] sm:$0xff] %v3180
        %3245 = vst [vmem:[%s339 + $0x90] sm:$0xff] %v3181
        %3246 = vst [vmem:[%s339 + $0x98] sm:$0xff] %v3182
        %3247 = vst [vmem:[%s339 + $0xa0] sm:$0xff] %v3183
        %3248 = vst [vmem:[%s339 + $0xa8] sm:$0xff] %v3184
        %3249 = vst [vmem:[%s339 + $0xb0] sm:$0xff] %v3185
        %3250 = vst [vmem:[%s339 + $0xb8] sm:$0xff] %v3186
        %3251 = vst [vmem:[%s339 + $0xc0] sm:$0xff] %v3187
        %3252 = vst [vmem:[%s339 + $0xc8] sm:$0xff] %v3188
        %3253 = vst [vmem:[%s339 + $0xd0] sm:$0xff] %v3189
        %3254 = vst [vmem:[%s339 + $0xd8] sm:$0xff] %v3190
        %3255 = vst [vmem:[%s339 + $0xe0] sm:$0xff] %v3191
        %3256 = vst [vmem:[%s339 + $0xe8] sm:$0xff] %v3192
        %3257 = vst [vmem:[%s339 + $0xf0] sm:$0xff] %v3193
        %3258 = vst [vmem:[%s339 + $0xf8] sm:$0xff] %v3194
        %3259 = vst [vmem:[%s339 + $0x100] sm:$0xff] %v3195
        %3260 = vst [vmem:[%s339 + $0x108] sm:$0xff] %v3196
        %3261 = vst [vmem:[%s339 + $0x110] sm:$0xff] %v3197
        %3262 = vst [vmem:[%s339 + $0x118] sm:$0xff] %v3198
        %3263 = vst [vmem:[%s339 + $0x120] sm:$0xff] %v3199
        %3264 = vst [vmem:[%s339 + $0x128] sm:$0xff] %v3200
        %3265 = vst [vmem:[%s339 + $0x130] sm:$0xff] %v3201
        %3266 = vst [vmem:[%s339 + $0x138] sm:$0xff] %v3202
        %3267 = vst [vmem:[%s339 + $0x140] sm:$0xff] %v3203
        %3268 = vst [vmem:[%s339 + $0x148] sm:$0xff] %v3204
        %3269 = vst [vmem:[%s339 + $0x150] sm:$0xff] %v3205
        %3270 = vst [vmem:[%s339 + $0x158] sm:$0xff] %v3206
        %3271 = vst [vmem:[%s339 + $0x160] sm:$0xff] %v3207
        %3272 = vst [vmem:[%s339 + $0x168] sm:$0xff] %v3208
        %3273 = vst [vmem:[%s339 + $0x170] sm:$0xff] %v3209
        %3274 = vst [vmem:[%s339 + $0x178] sm:$0xff] %v3210
        %3275 = vst [vmem:[%s339 + $0x180] sm:$0xff] %v3211
        %3276 = vst [vmem:[%s339 + $0x188] sm:$0xff] %v3212
        %3277 = vst [vmem:[%s339 + $0x190] sm:$0xff] %v3213
        %3278 = vst [vmem:[%s339 + $0x198] sm:$0xff] %v3214
        %3279 = vst [vmem:[%s339 + $0x1a0] sm:$0xff] %v3215
        %3280 = vst [vmem:[%s339 + $0x1a8] sm:$0xff] %v3216
        %3281 = vst [vmem:[%s339 + $0x1b0] sm:$0xff] %v3217
        %3282 = vst [vmem:[%s339 + $0x1b8] sm:$0xff] %v3218
        %3283 = vst [vmem:[%s339 + $0x1c0] sm:$0xff] %v3219
        %3284 = vst [vmem:[%s339 + $0x1c8] sm:$0xff] %v3220
        %3285 = vst [vmem:[%s339 + $0x1d0] sm:$0xff] %v3221
        %3286 = vst [vmem:[%s339 + $0x1d8] sm:$0xff] %v3222
        %3287 = vst [vmem:[%s339 + $0x1e0] sm:$0xff] %v3223
        %3288 = vst [vmem:[%s339 + $0x1e8] sm:$0xff] %v3224
        %3289 = vst [vmem:[%s339 + $0x1f0] sm:$0xff] %v3225
        %3290 = vst [vmem:[%s339 + $0x1f8] sm:$0xff] %v3226
        %s3291 = sand.u32 %s208, 1
        %s3292 = scalar_lea.sflag [#allocation3], %s3291
        %s3293 = sand.u32 %s208, 1
        %s3294 = smul.addr %s3293, 512
        %s3295 = scalar_lea.vmem [#allocation2], %s3294
        %s3296 = sand.u32 %s234, 1
        %s3297 = scalar_lea.sflag [#allocation5], %s3296
        %s3298 = sand.u32 %s234, 1
        %s3299 = smul.addr %s3298, 512
        %s3300 = scalar_lea.vmem [#allocation4], %s3299
        // Predicated region
        $region53: #{tpu_custom_call.1} parent=51 // pred_check
          %p3301 = pneg %p218
        $region54: #{tpu_custom_call.1} parent=51 // pred_check_branch
          %3303 = sbr.rel (%p3301) target = $region56
        $region55: #{tpu_custom_call.1} parent=51 // pred_region
          %s3304 = smul.u32 32, %s27
          %3306 = vsyncadd %s3292, 0
          %s3307 = smul.addr %s3304, 2
          %s3308 = smul.addr %s3307, 8
          %s3309 = scalar_lea.hbm %s8, %s3308
          %s3310 = sshll.u32 %s3295, 4
          %s3311 = int_to_ptr.vmem [resolvable:$true] %s3310
          %s3312 = sshll.u32 %s3309, 4
          %s3313 = int_to_ptr.hbm [resolvable:$true] %s3312
          %3318 = dma.vmem_to_hbm [thread:$0]  %s3311, 8192, %s3313, %s3292, 256, 256, 16
        $region56: #{tpu_custom_call.1} parent=51 // pred_fallthru
          _
        // Predicated region
        $region57: #{tpu_custom_call.1} parent=51 // pred_check
          %p3319 = pneg %p244
        $region58: #{tpu_custom_call.1} parent=51 // pred_check_branch
          %3321 = sbr.rel (%p3319) target = $region60
        $region59: #{tpu_custom_call.1} parent=51 // pred_region
          %s3322 = smul.u32 32, %s27
          %3324 = vsyncadd %s3297, 0
          %s3325 = smul.addr %s3322, 2
          %s3326 = smul.addr %s3325, 8
          %s3327 = scalar_lea.hbm %s9, %s3326
          %s3328 = sshll.u32 %s3300, 4
          %s3329 = int_to_ptr.vmem [resolvable:$true] %s3328
          %s3330 = sshll.u32 %s3327, 4
          %s3331 = int_to_ptr.hbm [resolvable:$true] %s3330
          %3336 = dma.vmem_to_hbm [thread:$0]  %s3329, 8192, %s3331, %s3297, 256, 256, 16
        $region60: #{tpu_custom_call.1} parent=51 // pred_fallthru
          _
      $region52: #{tpu_custom_call.1} parent=5 // pred_fallthru
        _
      %p3337 = scmp.le.s32.totalorder 2, %s22
      // Predicated region
      $region61: #{tpu_custom_call.1} parent=5 // pred_check
        %p3338 = pneg %p3337
      $region62: #{tpu_custom_call.1} parent=5 // pred_check_branch
        %3340 = sbr.rel (%p3338) target = $region64
      $region63: #{tpu_custom_call.1} parent=5 // pred_region
        %s3341 = ssub.s32 %s22, 2
        // Predicated region
        $region65: #{tpu_custom_call.1} parent=63 // pred_check
          %p3342 = pneg %p224
        $region66: #{tpu_custom_call.1} parent=63 // pred_check_branch
          %3344 = sbr.rel (%p3342) target = $region68
        $region67: #{tpu_custom_call.1} parent=63 // pred_region
          %s3345 = sand.u32 %s209, 1
          %s3346 = scalar_lea.sflag [#allocation3], %s3345
          %s3347 = sand.u32 %s209, 1
          %s3348 = smul.addr %s3347, 512
          %s3349 = scalar_lea.vmem [#allocation2], %s3348
          %3351 = dma.done %s3346, 8192
        $region68: #{tpu_custom_call.1} parent=63 // pred_fallthru
          _
        // Predicated region
        $region69: #{tpu_custom_call.1} parent=63 // pred_check
          %p3352 = pneg %p250
        $region70: #{tpu_custom_call.1} parent=63 // pred_check_branch
          %3354 = sbr.rel (%p3352) target = $region72
        $region71: #{tpu_custom_call.1} parent=63 // pred_region
          %s3355 = sand.u32 %s235, 1
          %s3356 = scalar_lea.sflag [#allocation5], %s3355
          %s3357 = sand.u32 %s235, 1
          %s3358 = smul.addr %s3357, 512
          %s3359 = scalar_lea.vmem [#allocation4], %s3358
          %3361 = dma.done %s3356, 8192
        $region72: #{tpu_custom_call.1} parent=63 // pred_fallthru
          _
      $region64: #{tpu_custom_call.1} parent=5 // pred_fallthru
        _
    $region6: #{tpu_custom_call.1} parent=1 // loop_footer
      %s26 = sadd.s32 1, %s22
    $region7: #{tpu_custom_call.1} parent=1 // loop_footer_branch
      %21 = sbr.rel target = $region3
    $region8: #{tpu_custom_call.1} parent=1 // loop_exit
      _
    %3362 = vsyncpa [#allocation3], 1
    %s3363 = scalar_lea.sflag [#allocation3], 1
    %3364 = vsyncpa %s3363, 1
    %3365 = vsyncpa [#allocation5], 1
    %s3366 = scalar_lea.sflag [#allocation5], 1
    %3367 = vsyncpa %s3366, 1

</llo_original>
